<compile_context>
chip_gen: v5e
topology: v5e:2x2
jax: 0.10.0
libtpu: 0.0.40
codegen_flags: <defaults>
</compile_context>

<pallas_src>
import functools

import jax
import jax.numpy as jnp
import numpy as np
from jax import lax
from jax.experimental import pallas as pl
from jax.experimental.pallas import tpu as pltpu


def _round_up(x, m):
    return (x + m - 1) // m * m


def _conv3x3_from_scratch(scr, w_ref, H, W, matmul_dtype):
    """3x3 'SAME' conv as 9 shifted lane-dense matmuls.

    scr   : VMEM scratch ref (H+2, W+2, Cin)  with a zero 1-pixel halo
    w_ref : weight ref (3, 3, Cin, Cout)      (channel dims padded to 128k)
    returns f32 accumulator of shape (H*W, Cout).
    """
    cin = scr.shape[-1]
    cout = w_ref.shape[-1]
    acc = jnp.zeros((H * W, cout), jnp.float32)
    for ky in range(3):
        for kx in range(3):
            # With cin a multiple of 128 (lane-dense) this slice+reshape is a
            # dense sublane shift, not a sparse relayout.
            patch = scr[ky:ky + H, kx:kx + W, :].reshape(H * W, cin)
            w_tap = w_ref[ky, kx, :, :]
            acc += jnp.dot(patch.astype(matmul_dtype),
                           w_tap.astype(matmul_dtype),
                           preferred_element_type=jnp.float32)
    return acc


def _basic_block_kernel(x_ref, w1_ref, s1_ref, b1_ref, w2_ref, s2_ref, b2_ref,
                        out_ref, x_scr, mid_scr, *, matmul_dtype):
    """Fused conv3x3 -> bn -> relu -> conv3x3 -> bn -> (+residual) -> relu.

    x_ref  : (1, H, W, Cp)        unpadded input tile (channels padded to 128k)
    w*_ref : (3, 3, Cp, Cop)      conv weights, HWIO, channel-padded
    s*/b*  : (1, Cop)             folded BN scale / bias, channel-padded
    out_ref: (1, H, W, Cop)       lane-dense output block
    x_scr  : (H+2, W+2, Cp)       zero-halo staging scratch for the input
    mid_scr: (H+2, W+2, Cop)      zero-halo scratch for the conv1 activation
    """
    H = out_ref.shape[1]
    W = out_ref.shape[2]
    Hp, Wp = H + 2, W + 2
    cp = x_ref.shape[3]
    cop = out_ref.shape[3]

    # ---- zero only the 1-pixel halo of both scratches (every grid step). ----
    # The interior is fully rewritten below.  Do NOT gate this on
    # program_id(0) == 0: the batch axis is "parallel" (megacore) and each
    # TensorCore has its own scratch, so only one core would ever run the init.
    for scr, c in ((x_scr, cp), (mid_scr, cop)):
        scr[0:1, :, :] = jnp.zeros((1, Wp, c), jnp.float32)
        scr[Hp - 1:Hp, :, :] = jnp.zeros((1, Wp, c), jnp.float32)
        scr[1:1 + H, 0:1, :] = jnp.zeros((H, 1, c), jnp.float32)
        scr[1:1 + H, Wp - 1:Wp, :] = jnp.zeros((H, 1, c), jnp.float32)

    # ---- stage the input tile into the zero-halo scratch (full-lane store) --
    x_scr[1:1 + H, 1:1 + W, :] = x_ref[0, :, :, :]

    # ---- conv1 -> folded bn1 -> relu ----
    acc1 = _conv3x3_from_scratch(x_scr, w1_ref, H, W, matmul_dtype)
    h = jnp.maximum(acc1 * s1_ref[...] + b1_ref[...], 0.0)
    mid_scr[1:1 + H, 1:1 + W, :] = h.reshape(H, W, cop)

    # ---- conv2 -> folded bn2 ----
    acc2 = _conv3x3_from_scratch(mid_scr, w2_ref, H, W, matmul_dtype)
    o = acc2 * s2_ref[...] + b2_ref[...]

    # ---- identity residual add + relu (Cin == Cout, stride == 1) ----
    residual = x_scr[1:1 + H, 1:1 + W, :].reshape(H * W, cp)
    o = jnp.maximum(o + residual, 0.0)

    # Lane-dense (cop is a multiple of 128) unmasked output store.
    out_ref[...] = o.reshape(1, H, W, cop)


@functools.partial(jax.jit, static_argnames=("use_bf16_matmul",))
def basic_block_forward(x_nchw, w1, s1, b1, w2, s2, b2, *,
                        use_bf16_matmul=False):
    """NCHW in / NCHW out wrapper (PyTorch layout at the boundary).

    In a full network the activations would stay NHWC / channel-padded across
    blocks so the transposes and channel pad/strip below are boundary-only.
    """
    N, C, H, W = x_nchw.shape
    cout = w1.shape[-1]
    # TODO(synk): downsample / stride>1 path not implemented (identity residual).
    assert w1.shape == (3, 3, C, cout) and w2.shape == (3, 3, cout, cout)
    assert C == cout, "identity residual requires in_planes == out_planes"

    cp = _round_up(C, 128)      # lane-dense padded channel counts
    cop = _round_up(cout, 128)

    # NHWC + channel pad (for real ResNet channel counts >=64 this pad is <=2x
    # or a no-op; the spatial halo pad is handled inside the kernel in VMEM).
    x = jnp.transpose(x_nchw, (0, 2, 3, 1)).astype(jnp.float32)
    x = jnp.pad(x, ((0, 0), (0, 0), (0, 0), (0, cp - C)))

    w1p = jnp.pad(w1.astype(jnp.float32),
                  ((0, 0), (0, 0), (0, cp - C), (0, cop - cout)))
    w2p = jnp.pad(w2.astype(jnp.float32),
                  ((0, 0), (0, 0), (0, cop - cout), (0, cop - cout)))

    def _vec(v):
        return jnp.pad(v.astype(jnp.float32).reshape(1, cout),
                       ((0, 0), (0, cop - cout)))

    s1p, b1p, s2p, b2p = _vec(s1), _vec(b1), _vec(s2), _vec(b2)

    kernel = functools.partial(
        _basic_block_kernel,
        matmul_dtype=jnp.bfloat16 if use_bf16_matmul else jnp.float32)

    out_nhwc = pl.pallas_call(
        kernel,
        out_shape=jax.ShapeDtypeStruct((N, H, W, cop), jnp.float32),
        grid_spec=pltpu.PrefetchScalarGridSpec(
            num_scalar_prefetch=0,
            grid=(N,),
            in_specs=[
                pl.BlockSpec((1, H, W, cp), lambda n: (n, 0, 0, 0)),
                pl.BlockSpec((3, 3, cp, cop), lambda n: (0, 0, 0, 0)),
                pl.BlockSpec((1, cop), lambda n: (0, 0)),
                pl.BlockSpec((1, cop), lambda n: (0, 0)),
                pl.BlockSpec((3, 3, cop, cop), lambda n: (0, 0, 0, 0)),
                pl.BlockSpec((1, cop), lambda n: (0, 0)),
                pl.BlockSpec((1, cop), lambda n: (0, 0)),
            ],
            out_specs=pl.BlockSpec((1, H, W, cop), lambda n: (n, 0, 0, 0)),
            scratch_shapes=[
                pltpu.VMEM((H + 2, W + 2, cp), jnp.float32),   # x staging
                pltpu.VMEM((H + 2, W + 2, cop), jnp.float32),  # conv1 act
            ],
        ),
        compiler_params=pltpu.CompilerParams(
            dimension_semantics=("parallel",)),
    )(x, w1p, s1p, b1p, w2p, s2p, b2p)

    out_nhwc = out_nhwc[..., :cout]                       # strip channel pad
    return jnp.transpose(out_nhwc, (0, 3, 1, 2))          # back to NCHW


def _reference_forward(x_nchw, w1, s1, b1, w2, s2, b2):
    """Pure-JAX reference (NHWC convs, f32) for correctness checking."""
    x = jnp.transpose(x_nchw, (0, 2, 3, 1)).astype(jnp.float32)
    dn = ("NHWC", "HWIO", "NHWC")
    y = lax.conv_general_dilated(x, w1, (1, 1), "SAME", dimension_numbers=dn)
    y = jnp.maximum(y * s1 + b1, 0.0)
    z = lax.conv_general_dilated(y, w2, (1, 1), "SAME", dimension_numbers=dn)
    z = z * s2 + b2
    z = jnp.maximum(z + x, 0.0)
    return jnp.transpose(z, (0, 3, 1, 2))


def _fold_bn(gamma, beta, running_mean, running_var, eps=1e-5):
    scale = gamma / jnp.sqrt(running_var + eps)
    bias = beta - running_mean * scale
    return scale, bias


if __name__ == "__main__":
    key = jax.random.PRNGKey(0)
    N, C, H, W = 2, 4, 16, 16      # in_planes = out_planes = 4, stride = 1
    cout = C

    keys = jax.random.split(key, 8)
    x = jax.random.normal(keys[0], (N, C, H, W), jnp.float32)

    # Conv weights (HWIO), Kaiming-ish scale, deterministic.
    fan1 = 3 * 3 * C
    w1 = jax.random.normal(keys[1], (3, 3, C, cout), jnp.float32) * np.sqrt(2.0 / fan1)
    fan2 = 3 * 3 * cout
    w2 = jax.random.normal(keys[2], (3, 3, cout, cout), jnp.float32) * np.sqrt(2.0 / fan2)

    # BatchNorm params + running stats (eval mode), deterministic non-trivial.
    g1 = 1.0 + 0.1 * jax.random.normal(keys[3], (cout,), jnp.float32)
    be1 = 0.1 * jax.random.normal(keys[4], (cout,), jnp.float32)
    g2 = 1.0 + 0.1 * jax.random.normal(keys[5], (cout,), jnp.float32)
    be2 = 0.1 * jax.random.normal(keys[6], (cout,), jnp.float32)
    rm1 = 0.05 * jax.random.normal(keys[7], (cout,), jnp.float32)
    rv1 = jnp.ones((cout,), jnp.float32)
    rm2 = jnp.zeros((cout,), jnp.float32)
    rv2 = jnp.ones((cout,), jnp.float32)

    s1, b1 = _fold_bn(g1, be1, rm1, rv1)
    s2, b2 = _fold_bn(g2, be2, rm2, rv2)

    out = basic_block_forward(x, w1, s1, b1, w2, s2, b2)   # f32 matmul path
    out = jax.block_until_ready(out)

    ref = jax.block_until_ready(_reference_forward(x, w1, s1, b1, w2, s2, b2))
    np.testing.assert_allclose(np.asarray(out), np.asarray(ref),
                               rtol=1e-5, atol=1e-5)

    print("KERNEL_OK")
</pallas_src>

<mosaic_0001>
module attributes {stable_mosaic.version = 11 : i64} {
  func.func @_basic_block_kernel(%arg0: i32, %arg1: memref<1x16x16x128xf32, #tpu.memory_space<vmem>>, %arg2: memref<3x3x128x128xf32, #tpu.memory_space<vmem>>, %arg3: memref<1x128xf32, #tpu.memory_space<vmem>>, %arg4: memref<1x128xf32, #tpu.memory_space<vmem>>, %arg5: memref<3x3x128x128xf32, #tpu.memory_space<vmem>>, %arg6: memref<1x128xf32, #tpu.memory_space<vmem>>, %arg7: memref<1x128xf32, #tpu.memory_space<vmem>>, %arg8: memref<1x16x16x128xf32, #tpu.memory_space<vmem>>, %arg9: memref<18x18x128xf32, #tpu.memory_space<vmem>>, %arg10: memref<18x18x128xf32, #tpu.memory_space<vmem>>) attributes {dimension_semantics = [#tpu.dimension_semantics<parallel>], iteration_bounds = array<i64: 2>, scalar_prefetch = 0 : i64, scratch_operands = 2 : i64, tpu.core_type = #tpu.core_type<tc>, window_params = [{transform_indices = @transform_0, window_bounds = array<i64: 1, 16, 16, 128>}, {pipeline_mode = #tpu.pipeline_mode<synchronous>, transform_indices = @transform_1, window_bounds = array<i64: 3, 3, 128, 128>}, {pipeline_mode = #tpu.pipeline_mode<synchronous>, transform_indices = @transform_2, window_bounds = array<i64: 1, 128>}, {pipeline_mode = #tpu.pipeline_mode<synchronous>, transform_indices = @transform_3, window_bounds = array<i64: 1, 128>}, {pipeline_mode = #tpu.pipeline_mode<synchronous>, transform_indices = @transform_4, window_bounds = array<i64: 3, 3, 128, 128>}, {pipeline_mode = #tpu.pipeline_mode<synchronous>, transform_indices = @transform_5, window_bounds = array<i64: 1, 128>}, {pipeline_mode = #tpu.pipeline_mode<synchronous>, transform_indices = @transform_6, window_bounds = array<i64: 1, 128>}, {transform_indices = @transform_7, window_bounds = array<i64: 1, 16, 16, 128>}]} {
    %cst = arith.constant 0.000000e+00 : f32
    %0 = vector.broadcast %cst : f32 to vector<1x18x128xf32>
    %c0 = arith.constant 0 : index
    %c0_0 = arith.constant 0 : index
    %c0_1 = arith.constant 0 : index
    %1 = vector.load %arg9[%c0, %c0_0, %c0_1] : memref<18x18x128xf32, #tpu.memory_space<vmem>>, vector<1x18x128xf32>
    tpu.vector_store %arg9[%c0, %c0_0, %c0_1], %0 {strides = array<i32>} : memref<18x18x128xf32, #tpu.memory_space<vmem>>, vector<1x18x128xf32>,
    %cst_2 = arith.constant 0.000000e+00 : f32
    %2 = vector.broadcast %cst_2 : f32 to vector<1x18x128xf32>
    %c17 = arith.constant 17 : index
    %c0_3 = arith.constant 0 : index
    %c0_4 = arith.constant 0 : index
    %3 = vector.load %arg9[%c17, %c0_3, %c0_4] : memref<18x18x128xf32, #tpu.memory_space<vmem>>, vector<1x18x128xf32>
    tpu.vector_store %arg9[%c17, %c0_3, %c0_4], %2 {strides = array<i32>} : memref<18x18x128xf32, #tpu.memory_space<vmem>>, vector<1x18x128xf32>,
    %cst_5 = arith.constant 0.000000e+00 : f32
    %4 = vector.broadcast %cst_5 : f32 to vector<16x1x128xf32>
    %c1 = arith.constant 1 : index
    %c0_6 = arith.constant 0 : index
    %c0_7 = arith.constant 0 : index
    %5 = vector.load %arg9[%c1, %c0_6, %c0_7] : memref<18x18x128xf32, #tpu.memory_space<vmem>>, vector<16x1x128xf32>
    tpu.vector_store %arg9[%c1, %c0_6, %c0_7], %4 {strides = array<i32>} : memref<18x18x128xf32, #tpu.memory_space<vmem>>, vector<16x1x128xf32>,
    %cst_8 = arith.constant 0.000000e+00 : f32
    %6 = vector.broadcast %cst_8 : f32 to vector<16x1x128xf32>
    %c1_9 = arith.constant 1 : index
    %c17_10 = arith.constant 17 : index
    %c0_11 = arith.constant 0 : index
    %7 = vector.load %arg9[%c1_9, %c17_10, %c0_11] : memref<18x18x128xf32, #tpu.memory_space<vmem>>, vector<16x1x128xf32>
    tpu.vector_store %arg9[%c1_9, %c17_10, %c0_11], %6 {strides = array<i32>} : memref<18x18x128xf32, #tpu.memory_space<vmem>>, vector<16x1x128xf32>,
    %cst_12 = arith.constant 0.000000e+00 : f32
    %8 = vector.broadcast %cst_12 : f32 to vector<1x18x128xf32>
    %c0_13 = arith.constant 0 : index
    %c0_14 = arith.constant 0 : index
    %c0_15 = arith.constant 0 : index
    %9 = vector.load %arg10[%c0_13, %c0_14, %c0_15] : memref<18x18x128xf32, #tpu.memory_space<vmem>>, vector<1x18x128xf32>
    tpu.vector_store %arg10[%c0_13, %c0_14, %c0_15], %8 {strides = array<i32>} : memref<18x18x128xf32, #tpu.memory_space<vmem>>, vector<1x18x128xf32>,
    %cst_16 = arith.constant 0.000000e+00 : f32
    %10 = vector.broadcast %cst_16 : f32 to vector<1x18x128xf32>
    %c17_17 = arith.constant 17 : index
    %c0_18 = arith.constant 0 : index
    %c0_19 = arith.constant 0 : index
    %11 = vector.load %arg10[%c17_17, %c0_18, %c0_19] : memref<18x18x128xf32, #tpu.memory_space<vmem>>, vector<1x18x128xf32>
    tpu.vector_store %arg10[%c17_17, %c0_18, %c0_19], %10 {strides = array<i32>} : memref<18x18x128xf32, #tpu.memory_space<vmem>>, vector<1x18x128xf32>,
    %cst_20 = arith.constant 0.000000e+00 : f32
    %12 = vector.broadcast %cst_20 : f32 to vector<16x1x128xf32>
    %c1_21 = arith.constant 1 : index
    %c0_22 = arith.constant 0 : index
    %c0_23 = arith.constant 0 : index
    %13 = vector.load %arg10[%c1_21, %c0_22, %c0_23] : memref<18x18x128xf32, #tpu.memory_space<vmem>>, vector<16x1x128xf32>
    tpu.vector_store %arg10[%c1_21, %c0_22, %c0_23], %12 {strides = array<i32>} : memref<18x18x128xf32, #tpu.memory_space<vmem>>, vector<16x1x128xf32>,
    %cst_24 = arith.constant 0.000000e+00 : f32
    %14 = vector.broadcast %cst_24 : f32 to vector<16x1x128xf32>
    %c1_25 = arith.constant 1 : index
    %c17_26 = arith.constant 17 : index
    %c0_27 = arith.constant 0 : index
    %15 = vector.load %arg10[%c1_25, %c17_26, %c0_27] : memref<18x18x128xf32, #tpu.memory_space<vmem>>, vector<16x1x128xf32>
    tpu.vector_store %arg10[%c1_25, %c17_26, %c0_27], %14 {strides = array<i32>} : memref<18x18x128xf32, #tpu.memory_space<vmem>>, vector<16x1x128xf32>,
    %c0_28 = arith.constant 0 : index
    %c0_29 = arith.constant 0 : index
    %c0_30 = arith.constant 0 : index
    %c0_31 = arith.constant 0 : index
    %16 = vector.load %arg1[%c0_28, %c0_29, %c0_30, %c0_31] : memref<1x16x16x128xf32, #tpu.memory_space<vmem>>, vector<1x16x16x128xf32>
    %17 = vector.shape_cast %16 : vector<1x16x16x128xf32> to vector<16x16x128xf32>
    %c1_32 = arith.constant 1 : index
    %c1_33 = arith.constant 1 : index
    %c0_34 = arith.constant 0 : index
    %18 = vector.load %arg9[%c1_32, %c1_33, %c0_34] : memref<18x18x128xf32, #tpu.memory_space<vmem>>, vector<16x16x128xf32>
    tpu.vector_store %arg9[%c1_32, %c1_33, %c0_34], %17 {strides = array<i32>} : memref<18x18x128xf32, #tpu.memory_space<vmem>>, vector<16x16x128xf32>,
    %cst_35 = arith.constant 0.000000e+00 : f32
    %19 = vector.broadcast %cst_35 : f32 to vector<256x128xf32>
    %c0_36 = arith.constant 0 : index
    %c0_37 = arith.constant 0 : index
    %c0_38 = arith.constant 0 : index
    %20 = vector.load %arg9[%c0_36, %c0_37, %c0_38] : memref<18x18x128xf32, #tpu.memory_space<vmem>>, vector<16x16x128xf32>
    %21 = vector.shape_cast %20 : vector<16x16x128xf32> to vector<256x128xf32>
    %c0_39 = arith.constant 0 : index
    %c0_40 = arith.constant 0 : index
    %c0_41 = arith.constant 0 : index
    %c0_42 = arith.constant 0 : index
    %22 = vector.load %arg2[%c0_39, %c0_40, %c0_41, %c0_42] : memref<3x3x128x128xf32, #tpu.memory_space<vmem>>, vector<1x1x128x128xf32>
    %23 = vector.shape_cast %22 : vector<1x1x128x128xf32> to vector<128x128xf32>
    %cst_43 = arith.constant dense<0.000000e+00> : vector<256x128xf32>
    %24 = tpu.matmul %21, %23, %cst_43 {dimension_numbers = #tpu.dot_dimension_numbers<[1], [0], [0], [1], [0, 0, 1, 1], [], []>} : vector<256x128xf32>, vector<128x128xf32>, vector<256x128xf32> -> vector<256x128xf32>
    %25 = arith.addf %19, %24 : vector<256x128xf32>
    %c0_44 = arith.constant 0 : index
    %c1_45 = arith.constant 1 : index
    %c0_46 = arith.constant 0 : index
    %26 = vector.load %arg9[%c0_44, %c1_45, %c0_46] : memref<18x18x128xf32, #tpu.memory_space<vmem>>, vector<16x16x128xf32>
    %27 = vector.shape_cast %26 : vector<16x16x128xf32> to vector<256x128xf32>
    %c0_47 = arith.constant 0 : index
    %c1_48 = arith.constant 1 : index
    %c0_49 = arith.constant 0 : index
    %c0_50 = arith.constant 0 : index
    %28 = vector.load %arg2[%c0_47, %c1_48, %c0_49, %c0_50] : memref<3x3x128x128xf32, #tpu.memory_space<vmem>>, vector<1x1x128x128xf32>
    %29 = vector.shape_cast %28 : vector<1x1x128x128xf32> to vector<128x128xf32>
    %cst_51 = arith.constant dense<0.000000e+00> : vector<256x128xf32>
    %30 = tpu.matmul %27, %29, %cst_51 {dimension_numbers = #tpu.dot_dimension_numbers<[1], [0], [0], [1], [0, 0, 1, 1], [], []>} : vector<256x128xf32>, vector<128x128xf32>, vector<256x128xf32> -> vector<256x128xf32>
    %31 = arith.addf %25, %30 : vector<256x128xf32>
    %c0_52 = arith.constant 0 : index
    %c2 = arith.constant 2 : index
    %c0_53 = arith.constant 0 : index
    %32 = vector.load %arg9[%c0_52, %c2, %c0_53] : memref<18x18x128xf32, #tpu.memory_space<vmem>>, vector<16x16x128xf32>
    %33 = vector.shape_cast %32 : vector<16x16x128xf32> to vector<256x128xf32>
    %c0_54 = arith.constant 0 : index
    %c2_55 = arith.constant 2 : index
    %c0_56 = arith.constant 0 : index
    %c0_57 = arith.constant 0 : index
    %34 = vector.load %arg2[%c0_54, %c2_55, %c0_56, %c0_57] : memref<3x3x128x128xf32, #tpu.memory_space<vmem>>, vector<1x1x128x128xf32>
    %35 = vector.shape_cast %34 : vector<1x1x128x128xf32> to vector<128x128xf32>
    %cst_58 = arith.constant dense<0.000000e+00> : vector<256x128xf32>
    %36 = tpu.matmul %33, %35, %cst_58 {dimension_numbers = #tpu.dot_dimension_numbers<[1], [0], [0], [1], [0, 0, 1, 1], [], []>} : vector<256x128xf32>, vector<128x128xf32>, vector<256x128xf32> -> vector<256x128xf32>
    %37 = arith.addf %31, %36 : vector<256x128xf32>
    %c1_59 = arith.constant 1 : index
    %c0_60 = arith.constant 0 : index
    %c0_61 = arith.constant 0 : index
    %38 = vector.load %arg9[%c1_59, %c0_60, %c0_61] : memref<18x18x128xf32, #tpu.memory_space<vmem>>, vector<16x16x128xf32>
    %39 = vector.shape_cast %38 : vector<16x16x128xf32> to vector<256x128xf32>
    %c1_62 = arith.constant 1 : index
    %c0_63 = arith.constant 0 : index
    %c0_64 = arith.constant 0 : index
    %c0_65 = arith.constant 0 : index
    %40 = vector.load %arg2[%c1_62, %c0_63, %c0_64, %c0_65] : memref<3x3x128x128xf32, #tpu.memory_space<vmem>>, vector<1x1x128x128xf32>
    %41 = vector.shape_cast %40 : vector<1x1x128x128xf32> to vector<128x128xf32>
    %cst_66 = arith.constant dense<0.000000e+00> : vector<256x128xf32>
    %42 = tpu.matmul %39, %41, %cst_66 {dimension_numbers = #tpu.dot_dimension_numbers<[1], [0], [0], [1], [0, 0, 1, 1], [], []>} : vector<256x128xf32>, vector<128x128xf32>, vector<256x128xf32> -> vector<256x128xf32>
    %43 = arith.addf %37, %42 : vector<256x128xf32>
    %c1_67 = arith.constant 1 : index
    %c1_68 = arith.constant 1 : index
    %c0_69 = arith.constant 0 : index
    %44 = vector.load %arg9[%c1_67, %c1_68, %c0_69] : memref<18x18x128xf32, #tpu.memory_space<vmem>>, vector<16x16x128xf32>
    %45 = vector.shape_cast %44 : vector<16x16x128xf32> to vector<256x128xf32>
    %c1_70 = arith.constant 1 : index
    %c1_71 = arith.constant 1 : index
    %c0_72 = arith.constant 0 : index
    %c0_73 = arith.constant 0 : index
    %46 = vector.load %arg2[%c1_70, %c1_71, %c0_72, %c0_73] : memref<3x3x128x128xf32, #tpu.memory_space<vmem>>, vector<1x1x128x128xf32>
    %47 = vector.shape_cast %46 : vector<1x1x128x128xf32> to vector<128x128xf32>
    %cst_74 = arith.constant dense<0.000000e+00> : vector<256x128xf32>
    %48 = tpu.matmul %45, %47, %cst_74 {dimension_numbers = #tpu.dot_dimension_numbers<[1], [0], [0], [1], [0, 0, 1, 1], [], []>} : vector<256x128xf32>, vector<128x128xf32>, vector<256x128xf32> -> vector<256x128xf32>
    %49 = arith.addf %43, %48 : vector<256x128xf32>
    %c1_75 = arith.constant 1 : index
    %c2_76 = arith.constant 2 : index
    %c0_77 = arith.constant 0 : index
    %50 = vector.load %arg9[%c1_75, %c2_76, %c0_77] : memref<18x18x128xf32, #tpu.memory_space<vmem>>, vector<16x16x128xf32>
    %51 = vector.shape_cast %50 : vector<16x16x128xf32> to vector<256x128xf32>
    %c1_78 = arith.constant 1 : index
    %c2_79 = arith.constant 2 : index
    %c0_80 = arith.constant 0 : index
    %c0_81 = arith.constant 0 : index
    %52 = vector.load %arg2[%c1_78, %c2_79, %c0_80, %c0_81] : memref<3x3x128x128xf32, #tpu.memory_space<vmem>>, vector<1x1x128x128xf32>
    %53 = vector.shape_cast %52 : vector<1x1x128x128xf32> to vector<128x128xf32>
    %cst_82 = arith.constant dense<0.000000e+00> : vector<256x128xf32>
    %54 = tpu.matmul %51, %53, %cst_82 {dimension_numbers = #tpu.dot_dimension_numbers<[1], [0], [0], [1], [0, 0, 1, 1], [], []>} : vector<256x128xf32>, vector<128x128xf32>, vector<256x128xf32> -> vector<256x128xf32>
    %55 = arith.addf %49, %54 : vector<256x128xf32>
    %c2_83 = arith.constant 2 : index
    %c0_84 = arith.constant 0 : index
    %c0_85 = arith.constant 0 : index
    %56 = vector.load %arg9[%c2_83, %c0_84, %c0_85] : memref<18x18x128xf32, #tpu.memory_space<vmem>>, vector<16x16x128xf32>
    %57 = vector.shape_cast %56 : vector<16x16x128xf32> to vector<256x128xf32>
    %c2_86 = arith.constant 2 : index
    %c0_87 = arith.constant 0 : index
    %c0_88 = arith.constant 0 : index
    %c0_89 = arith.constant 0 : index
    %58 = vector.load %arg2[%c2_86, %c0_87, %c0_88, %c0_89] : memref<3x3x128x128xf32, #tpu.memory_space<vmem>>, vector<1x1x128x128xf32>
    %59 = vector.shape_cast %58 : vector<1x1x128x128xf32> to vector<128x128xf32>
    %cst_90 = arith.constant dense<0.000000e+00> : vector<256x128xf32>
    %60 = tpu.matmul %57, %59, %cst_90 {dimension_numbers = #tpu.dot_dimension_numbers<[1], [0], [0], [1], [0, 0, 1, 1], [], []>} : vector<256x128xf32>, vector<128x128xf32>, vector<256x128xf32> -> vector<256x128xf32>
    %61 = arith.addf %55, %60 : vector<256x128xf32>
    %c2_91 = arith.constant 2 : index
    %c1_92 = arith.constant 1 : index
    %c0_93 = arith.constant 0 : index
    %62 = vector.load %arg9[%c2_91, %c1_92, %c0_93] : memref<18x18x128xf32, #tpu.memory_space<vmem>>, vector<16x16x128xf32>
    %63 = vector.shape_cast %62 : vector<16x16x128xf32> to vector<256x128xf32>
    %c2_94 = arith.constant 2 : index
    %c1_95 = arith.constant 1 : index
    %c0_96 = arith.constant 0 : index
    %c0_97 = arith.constant 0 : index
    %64 = vector.load %arg2[%c2_94, %c1_95, %c0_96, %c0_97] : memref<3x3x128x128xf32, #tpu.memory_space<vmem>>, vector<1x1x128x128xf32>
    %65 = vector.shape_cast %64 : vector<1x1x128x128xf32> to vector<128x128xf32>
    %cst_98 = arith.constant dense<0.000000e+00> : vector<256x128xf32>
    %66 = tpu.matmul %63, %65, %cst_98 {dimension_numbers = #tpu.dot_dimension_numbers<[1], [0], [0], [1], [0, 0, 1, 1], [], []>} : vector<256x128xf32>, vector<128x128xf32>, vector<256x128xf32> -> vector<256x128xf32>
    %67 = arith.addf %61, %66 : vector<256x128xf32>
    %c2_99 = arith.constant 2 : index
    %c2_100 = arith.constant 2 : index
    %c0_101 = arith.constant 0 : index
    %68 = vector.load %arg9[%c2_99, %c2_100, %c0_101] : memref<18x18x128xf32, #tpu.memory_space<vmem>>, vector<16x16x128xf32>
    %69 = vector.shape_cast %68 : vector<16x16x128xf32> to vector<256x128xf32>
    %c2_102 = arith.constant 2 : index
    %c2_103 = arith.constant 2 : index
    %c0_104 = arith.constant 0 : index
    %c0_105 = arith.constant 0 : index
    %70 = vector.load %arg2[%c2_102, %c2_103, %c0_104, %c0_105] : memref<3x3x128x128xf32, #tpu.memory_space<vmem>>, vector<1x1x128x128xf32>
    %71 = vector.shape_cast %70 : vector<1x1x128x128xf32> to vector<128x128xf32>
    %cst_106 = arith.constant dense<0.000000e+00> : vector<256x128xf32>
    %72 = tpu.matmul %69, %71, %cst_106 {dimension_numbers = #tpu.dot_dimension_numbers<[1], [0], [0], [1], [0, 0, 1, 1], [], []>} : vector<256x128xf32>, vector<128x128xf32>, vector<256x128xf32> -> vector<256x128xf32>
    %73 = arith.addf %67, %72 : vector<256x128xf32>
    %c0_107 = arith.constant 0 : index
    %c0_108 = arith.constant 0 : index
    %74 = vector.load %arg3[%c0_107, %c0_108] : memref<1x128xf32, #tpu.memory_space<vmem>>, vector<1x128xf32>
    %75 = vector.broadcast %74 : vector<1x128xf32> to vector<256x128xf32>
    %76 = arith.mulf %73, %75 : vector<256x128xf32>
    %c0_109 = arith.constant 0 : index
    %c0_110 = arith.constant 0 : index
    %77 = vector.load %arg4[%c0_109, %c0_110] : memref<1x128xf32, #tpu.memory_space<vmem>>, vector<1x128xf32>
    %78 = vector.broadcast %77 : vector<1x128xf32> to vector<256x128xf32>
    %79 = arith.addf %76, %78 : vector<256x128xf32>
    %cst_111 = arith.constant 0.000000e+00 : f32
    %80 = vector.broadcast %cst_111 : f32 to vector<256x128xf32>
    %81 = arith.maximumf %79, %80 : vector<256x128xf32>
    %82 = vector.shape_cast %81 : vector<256x128xf32> to vector<16x16x128xf32>
    %c1_112 = arith.constant 1 : index
    %c1_113 = arith.constant 1 : index
    %c0_114 = arith.constant 0 : index
    %83 = vector.load %arg10[%c1_112, %c1_113, %c0_114] : memref<18x18x128xf32, #tpu.memory_space<vmem>>, vector<16x16x128xf32>
    tpu.vector_store %arg10[%c1_112, %c1_113, %c0_114], %82 {strides = array<i32>} : memref<18x18x128xf32, #tpu.memory_space<vmem>>, vector<16x16x128xf32>,
    %cst_115 = arith.constant 0.000000e+00 : f32
    %84 = vector.broadcast %cst_115 : f32 to vector<256x128xf32>
    %c0_116 = arith.constant 0 : index
    %c0_117 = arith.constant 0 : index
    %c0_118 = arith.constant 0 : index
    %85 = vector.load %arg10[%c0_116, %c0_117, %c0_118] : memref<18x18x128xf32, #tpu.memory_space<vmem>>, vector<16x16x128xf32>
    %86 = vector.shape_cast %85 : vector<16x16x128xf32> to vector<256x128xf32>
    %c0_119 = arith.constant 0 : index
    %c0_120 = arith.constant 0 : index
    %c0_121 = arith.constant 0 : index
    %c0_122 = arith.constant 0 : index
    %87 = vector.load %arg5[%c0_119, %c0_120, %c0_121, %c0_122] : memref<3x3x128x128xf32, #tpu.memory_space<vmem>>, vector<1x1x128x128xf32>
    %88 = vector.shape_cast %87 : vector<1x1x128x128xf32> to vector<128x128xf32>
    %cst_123 = arith.constant dense<0.000000e+00> : vector<256x128xf32>
    %89 = tpu.matmul %86, %88, %cst_123 {dimension_numbers = #tpu.dot_dimension_numbers<[1], [0], [0], [1], [0, 0, 1, 1], [], []>} : vector<256x128xf32>, vector<128x128xf32>, vector<256x128xf32> -> vector<256x128xf32>
    %90 = arith.addf %84, %89 : vector<256x128xf32>
    %c0_124 = arith.constant 0 : index
    %c1_125 = arith.constant 1 : index
    %c0_126 = arith.constant 0 : index
    %91 = vector.load %arg10[%c0_124, %c1_125, %c0_126] : memref<18x18x128xf32, #tpu.memory_space<vmem>>, vector<16x16x128xf32>
    %92 = vector.shape_cast %91 : vector<16x16x128xf32> to vector<256x128xf32>
    %c0_127 = arith.constant 0 : index
    %c1_128 = arith.constant 1 : index
    %c0_129 = arith.constant 0 : index
    %c0_130 = arith.constant 0 : index
    %93 = vector.load %arg5[%c0_127, %c1_128, %c0_129, %c0_130] : memref<3x3x128x128xf32, #tpu.memory_space<vmem>>, vector<1x1x128x128xf32>
    %94 = vector.shape_cast %93 : vector<1x1x128x128xf32> to vector<128x128xf32>
    %cst_131 = arith.constant dense<0.000000e+00> : vector<256x128xf32>
    %95 = tpu.matmul %92, %94, %cst_131 {dimension_numbers = #tpu.dot_dimension_numbers<[1], [0], [0], [1], [0, 0, 1, 1], [], []>} : vector<256x128xf32>, vector<128x128xf32>, vector<256x128xf32> -> vector<256x128xf32>
    %96 = arith.addf %90, %95 : vector<256x128xf32>
    %c0_132 = arith.constant 0 : index
    %c2_133 = arith.constant 2 : index
    %c0_134 = arith.constant 0 : index
    %97 = vector.load %arg10[%c0_132, %c2_133, %c0_134] : memref<18x18x128xf32, #tpu.memory_space<vmem>>, vector<16x16x128xf32>
    %98 = vector.shape_cast %97 : vector<16x16x128xf32> to vector<256x128xf32>
    %c0_135 = arith.constant 0 : index
    %c2_136 = arith.constant 2 : index
    %c0_137 = arith.constant 0 : index
    %c0_138 = arith.constant 0 : index
    %99 = vector.load %arg5[%c0_135, %c2_136, %c0_137, %c0_138] : memref<3x3x128x128xf32, #tpu.memory_space<vmem>>, vector<1x1x128x128xf32>
    %100 = vector.shape_cast %99 : vector<1x1x128x128xf32> to vector<128x128xf32>
    %cst_139 = arith.constant dense<0.000000e+00> : vector<256x128xf32>
    %101 = tpu.matmul %98, %100, %cst_139 {dimension_numbers = #tpu.dot_dimension_numbers<[1], [0], [0], [1], [0, 0, 1, 1], [], []>} : vector<256x128xf32>, vector<128x128xf32>, vector<256x128xf32> -> vector<256x128xf32>
    %102 = arith.addf %96, %101 : vector<256x128xf32>
    %c1_140 = arith.constant 1 : index
    %c0_141 = arith.constant 0 : index
    %c0_142 = arith.constant 0 : index
    %103 = vector.load %arg10[%c1_140, %c0_141, %c0_142] : memref<18x18x128xf32, #tpu.memory_space<vmem>>, vector<16x16x128xf32>
    %104 = vector.shape_cast %103 : vector<16x16x128xf32> to vector<256x128xf32>
    %c1_143 = arith.constant 1 : index
    %c0_144 = arith.constant 0 : index
    %c0_145 = arith.constant 0 : index
    %c0_146 = arith.constant 0 : index
    %105 = vector.load %arg5[%c1_143, %c0_144, %c0_145, %c0_146] : memref<3x3x128x128xf32, #tpu.memory_space<vmem>>, vector<1x1x128x128xf32>
    %106 = vector.shape_cast %105 : vector<1x1x128x128xf32> to vector<128x128xf32>
    %cst_147 = arith.constant dense<0.000000e+00> : vector<256x128xf32>
    %107 = tpu.matmul %104, %106, %cst_147 {dimension_numbers = #tpu.dot_dimension_numbers<[1], [0], [0], [1], [0, 0, 1, 1], [], []>} : vector<256x128xf32>, vector<128x128xf32>, vector<256x128xf32> -> vector<256x128xf32>
    %108 = arith.addf %102, %107 : vector<256x128xf32>
    %c1_148 = arith.constant 1 : index
    %c1_149 = arith.constant 1 : index
    %c0_150 = arith.constant 0 : index
    %109 = vector.load %arg10[%c1_148, %c1_149, %c0_150] : memref<18x18x128xf32, #tpu.memory_space<vmem>>, vector<16x16x128xf32>
    %110 = vector.shape_cast %109 : vector<16x16x128xf32> to vector<256x128xf32>
    %c1_151 = arith.constant 1 : index
    %c1_152 = arith.constant 1 : index
    %c0_153 = arith.constant 0 : index
    %c0_154 = arith.constant 0 : index
    %111 = vector.load %arg5[%c1_151, %c1_152, %c0_153, %c0_154] : memref<3x3x128x128xf32, #tpu.memory_space<vmem>>, vector<1x1x128x128xf32>
    %112 = vector.shape_cast %111 : vector<1x1x128x128xf32> to vector<128x128xf32>
    %cst_155 = arith.constant dense<0.000000e+00> : vector<256x128xf32>
    %113 = tpu.matmul %110, %112, %cst_155 {dimension_numbers = #tpu.dot_dimension_numbers<[1], [0], [0], [1], [0, 0, 1, 1], [], []>} : vector<256x128xf32>, vector<128x128xf32>, vector<256x128xf32> -> vector<256x128xf32>
    %114 = arith.addf %108, %113 : vector<256x128xf32>
    %c1_156 = arith.constant 1 : index
    %c2_157 = arith.constant 2 : index
    %c0_158 = arith.constant 0 : index
    %115 = vector.load %arg10[%c1_156, %c2_157, %c0_158] : memref<18x18x128xf32, #tpu.memory_space<vmem>>, vector<16x16x128xf32>
    %116 = vector.shape_cast %115 : vector<16x16x128xf32> to vector<256x128xf32>
    %c1_159 = arith.constant 1 : index
    %c2_160 = arith.constant 2 : index
    %c0_161 = arith.constant 0 : index
    %c0_162 = arith.constant 0 : index
    %117 = vector.load %arg5[%c1_159, %c2_160, %c0_161, %c0_162] : memref<3x3x128x128xf32, #tpu.memory_space<vmem>>, vector<1x1x128x128xf32>
    %118 = vector.shape_cast %117 : vector<1x1x128x128xf32> to vector<128x128xf32>
    %cst_163 = arith.constant dense<0.000000e+00> : vector<256x128xf32>
    %119 = tpu.matmul %116, %118, %cst_163 {dimension_numbers = #tpu.dot_dimension_numbers<[1], [0], [0], [1], [0, 0, 1, 1], [], []>} : vector<256x128xf32>, vector<128x128xf32>, vector<256x128xf32> -> vector<256x128xf32>
    %120 = arith.addf %114, %119 : vector<256x128xf32>
    %c2_164 = arith.constant 2 : index
    %c0_165 = arith.constant 0 : index
    %c0_166 = arith.constant 0 : index
    %121 = vector.load %arg10[%c2_164, %c0_165, %c0_166] : memref<18x18x128xf32, #tpu.memory_space<vmem>>, vector<16x16x128xf32>
    %122 = vector.shape_cast %121 : vector<16x16x128xf32> to vector<256x128xf32>
    %c2_167 = arith.constant 2 : index
    %c0_168 = arith.constant 0 : index
    %c0_169 = arith.constant 0 : index
    %c0_170 = arith.constant 0 : index
    %123 = vector.load %arg5[%c2_167, %c0_168, %c0_169, %c0_170] : memref<3x3x128x128xf32, #tpu.memory_space<vmem>>, vector<1x1x128x128xf32>
    %124 = vector.shape_cast %123 : vector<1x1x128x128xf32> to vector<128x128xf32>
    %cst_171 = arith.constant dense<0.000000e+00> : vector<256x128xf32>
    %125 = tpu.matmul %122, %124, %cst_171 {dimension_numbers = #tpu.dot_dimension_numbers<[1], [0], [0], [1], [0, 0, 1, 1], [], []>} : vector<256x128xf32>, vector<128x128xf32>, vector<256x128xf32> -> vector<256x128xf32>
    %126 = arith.addf %120, %125 : vector<256x128xf32>
    %c2_172 = arith.constant 2 : index
    %c1_173 = arith.constant 1 : index
    %c0_174 = arith.constant 0 : index
    %127 = vector.load %arg10[%c2_172, %c1_173, %c0_174] : memref<18x18x128xf32, #tpu.memory_space<vmem>>, vector<16x16x128xf32>
    %128 = vector.shape_cast %127 : vector<16x16x128xf32> to vector<256x128xf32>
    %c2_175 = arith.constant 2 : index
    %c1_176 = arith.constant 1 : index
    %c0_177 = arith.constant 0 : index
    %c0_178 = arith.constant 0 : index
    %129 = vector.load %arg5[%c2_175, %c1_176, %c0_177, %c0_178] : memref<3x3x128x128xf32, #tpu.memory_space<vmem>>, vector<1x1x128x128xf32>
    %130 = vector.shape_cast %129 : vector<1x1x128x128xf32> to vector<128x128xf32>
    %cst_179 = arith.constant dense<0.000000e+00> : vector<256x128xf32>
    %131 = tpu.matmul %128, %130, %cst_179 {dimension_numbers = #tpu.dot_dimension_numbers<[1], [0], [0], [1], [0, 0, 1, 1], [], []>} : vector<256x128xf32>, vector<128x128xf32>, vector<256x128xf32> -> vector<256x128xf32>
    %132 = arith.addf %126, %131 : vector<256x128xf32>
    %c2_180 = arith.constant 2 : index
    %c2_181 = arith.constant 2 : index
    %c0_182 = arith.constant 0 : index
    %133 = vector.load %arg10[%c2_180, %c2_181, %c0_182] : memref<18x18x128xf32, #tpu.memory_space<vmem>>, vector<16x16x128xf32>
    %134 = vector.shape_cast %133 : vector<16x16x128xf32> to vector<256x128xf32>
    %c2_183 = arith.constant 2 : index
    %c2_184 = arith.constant 2 : index
    %c0_185 = arith.constant 0 : index
    %c0_186 = arith.constant 0 : index
    %135 = vector.load %arg5[%c2_183, %c2_184, %c0_185, %c0_186] : memref<3x3x128x128xf32, #tpu.memory_space<vmem>>, vector<1x1x128x128xf32>
    %136 = vector.shape_cast %135 : vector<1x1x128x128xf32> to vector<128x128xf32>
    %cst_187 = arith.constant dense<0.000000e+00> : vector<256x128xf32>
    %137 = tpu.matmul %134, %136, %cst_187 {dimension_numbers = #tpu.dot_dimension_numbers<[1], [0], [0], [1], [0, 0, 1, 1], [], []>} : vector<256x128xf32>, vector<128x128xf32>, vector<256x128xf32> -> vector<256x128xf32>
    %138 = arith.addf %132, %137 : vector<256x128xf32>
    %c0_188 = arith.constant 0 : index
    %c0_189 = arith.constant 0 : index
    %139 = vector.load %arg6[%c0_188, %c0_189] : memref<1x128xf32, #tpu.memory_space<vmem>>, vector<1x128xf32>
    %140 = vector.broadcast %139 : vector<1x128xf32> to vector<256x128xf32>
    %141 = arith.mulf %138, %140 : vector<256x128xf32>
    %c0_190 = arith.constant 0 : index
    %c0_191 = arith.constant 0 : index
    %142 = vector.load %arg7[%c0_190, %c0_191] : memref<1x128xf32, #tpu.memory_space<vmem>>, vector<1x128xf32>
    %143 = vector.broadcast %142 : vector<1x128xf32> to vector<256x128xf32>
    %144 = arith.addf %141, %143 : vector<256x128xf32>
    %c1_192 = arith.constant 1 : index
    %c1_193 = arith.constant 1 : index
    %c0_194 = arith.constant 0 : index
    %145 = vector.load %arg9[%c1_192, %c1_193, %c0_194] : memref<18x18x128xf32, #tpu.memory_space<vmem>>, vector<16x16x128xf32>
    %146 = vector.shape_cast %145 : vector<16x16x128xf32> to vector<256x128xf32>
    %147 = arith.addf %144, %146 : vector<256x128xf32>
    %cst_195 = arith.constant 0.000000e+00 : f32
    %148 = vector.broadcast %cst_195 : f32 to vector<256x128xf32>
    %149 = arith.maximumf %147, %148 : vector<256x128xf32>
    %150 = vector.shape_cast %149 : vector<256x128xf32> to vector<1x16x16x128xf32>
    %c0_196 = arith.constant 0 : index
    %c0_197 = arith.constant 0 : index
    %c0_198 = arith.constant 0 : index
    %c0_199 = arith.constant 0 : index
    %151 = vector.load %arg8[%c0_196, %c0_197, %c0_198, %c0_199] : memref<1x16x16x128xf32, #tpu.memory_space<vmem>>, vector<1x16x16x128xf32>
    tpu.vector_store %arg8[%c0_196, %c0_197, %c0_198, %c0_199], %150 {strides = array<i32>} : memref<1x16x16x128xf32, #tpu.memory_space<vmem>>, vector<1x16x16x128xf32>,
    return
  }
  func.func @transform_0(%arg0: i32) -> (i32, i32, i32, i32) {
    %c0_i32 = arith.constant 0 : i32
    %c0_i32_0 = arith.constant 0 : i32
    %c0_i32_1 = arith.constant 0 : i32
    %c0_i32_2 = arith.constant 0 : i32
    return %arg0, %c0_i32, %c0_i32_0, %c0_i32_1 : i32, i32, i32, i32
  }
  func.func @transform_1(%arg0: i32) -> (i32, i32, i32, i32) {
    %c0_i32 = arith.constant 0 : i32
    %c0_i32_0 = arith.constant 0 : i32
    %c0_i32_1 = arith.constant 0 : i32
    %c0_i32_2 = arith.constant 0 : i32
    %c0_i32_3 = arith.constant 0 : i32
    return %c0_i32, %c0_i32_0, %c0_i32_1, %c0_i32_2 : i32, i32, i32, i32
  }
  func.func @transform_2(%arg0: i32) -> (i32, i32) {
    %c0_i32 = arith.constant 0 : i32
    %c0_i32_0 = arith.constant 0 : i32
    %c0_i32_1 = arith.constant 0 : i32
    return %c0_i32, %c0_i32_0 : i32, i32
  }
  func.func @transform_3(%arg0: i32) -> (i32, i32) {
    %c0_i32 = arith.constant 0 : i32
    %c0_i32_0 = arith.constant 0 : i32
    %c0_i32_1 = arith.constant 0 : i32
    return %c0_i32, %c0_i32_0 : i32, i32
  }
  func.func @transform_4(%arg0: i32) -> (i32, i32, i32, i32) {
    %c0_i32 = arith.constant 0 : i32
    %c0_i32_0 = arith.constant 0 : i32
    %c0_i32_1 = arith.constant 0 : i32
    %c0_i32_2 = arith.constant 0 : i32
    %c0_i32_3 = arith.constant 0 : i32
    return %c0_i32, %c0_i32_0, %c0_i32_1, %c0_i32_2 : i32, i32, i32, i32
  }
  func.func @transform_5(%arg0: i32) -> (i32, i32) {
    %c0_i32 = arith.constant 0 : i32
    %c0_i32_0 = arith.constant 0 : i32
    %c0_i32_1 = arith.constant 0 : i32
    return %c0_i32, %c0_i32_0 : i32, i32
  }
  func.func @transform_6(%arg0: i32) -> (i32, i32) {
    %c0_i32 = arith.constant 0 : i32
    %c0_i32_0 = arith.constant 0 : i32
    %c0_i32_1 = arith.constant 0 : i32
    return %c0_i32, %c0_i32_0 : i32, i32
  }
  func.func @transform_7(%arg0: i32) -> (i32, i32, i32, i32) {
    %c0_i32 = arith.constant 0 : i32
    %c0_i32_0 = arith.constant 0 : i32
    %c0_i32_1 = arith.constant 0 : i32
    %c0_i32_2 = arith.constant 0 : i32
    return %arg0, %c0_i32, %c0_i32_0, %c0_i32_1 : i32, i32, i32, i32
  }
}

</mosaic_0001>

<llo_original>
// kernel: basic_block_forward.1
$region0: #{basic_block_forward.1}
  #allocation0 [shape = 'u32[]', space=smem, size = 0x4, offset = 0x4, fixed_abs, tag = 'smem constant byte address 0x4 - core index']
  #allocation1 [shape = 'u32[72,128]{1,0:T(1,128)}', space=vmem, size = 0x9000, scoped, tag = 'internal scratch']
  #allocation2 [shape = 'f32[18,18,128]{2,1,0:T(8,128)}', space=vmem, size = 0x36000, scoped, tag = 'scratch operand']
  #allocation3 [shape = 'f32[18,18,128]{2,1,0:T(8,128)}', space=vmem, size = 0x36000, scoped, tag = 'scratch operand']
  %s0 = inlined_call_operand.vmem [shape: f32[2,16,16,128], index: 0, kind: input, shape index: {}]
  %s1 = inlined_call_operand.vmem [shape: f32[3,3,128,128], index: 1, kind: input, shape index: {}]
  %s2 = inlined_call_operand.vmem [shape: f32[1,128], index: 2, kind: input, shape index: {}]
  %s3 = inlined_call_operand.vmem [shape: f32[1,128], index: 3, kind: input, shape index: {}]
  %s4 = inlined_call_operand.vmem [shape: f32[3,3,128,128], index: 4, kind: input, shape index: {}]
  %s5 = inlined_call_operand.vmem [shape: f32[1,128], index: 5, kind: input, shape index: {}]
  %s6 = inlined_call_operand.vmem [shape: f32[1,128], index: 6, kind: input, shape index: {}]
  %s7 = inlined_call_operand.vmem [shape: f32[2,16,16,128], index: 7, kind: output, shape index: {}]
  %s8 = sld [smem:[#allocation0]]
  $region61: #{basic_block_forward.1} parent=0
    _
  %s10 = ssub.s32 1, %s8
  %s11 = scalar_select 0, %s10, %s8
  loop: start=0, step=1, limit=4
  $region2: #{basic_block_forward.1} parent=0 // loop_pre_header
    _
  $region3: #{basic_block_forward.1} parent=0 // loop_header
    %s13 = sphi 0, %s17
    %p14 = scmp.ge.s32.totalorder %s13, 4
    %s23 = sphi 0, %s25
    %s26 = sphi 0, %s23
    %s27 = sphi 0, %s26
    %s43 = sphi 0, %s27
    %s47 = sphi 0, %s47
    %s49 = sphi 0, %s47
    %s50 = sphi 0, %s49
    %s64 = sphi 0, %s50
    %s68 = sphi 0, %s68
    %s70 = sphi 0, %s68
    %s71 = sphi 0, %s70
    %s85 = sphi 0, %s71
    %s89 = sphi 0, %s89
    %s91 = sphi 0, %s89
    %s92 = sphi 0, %s91
    %s106 = sphi 0, %s92
    %s110 = sphi 0, %s110
    %s112 = sphi 0, %s110
    %s113 = sphi 0, %s112
    %s127 = sphi 0, %s113
    %s131 = sphi 0, %s131
    %s133 = sphi 0, %s131
    %s134 = sphi 0, %s133
    %s148 = sphi 0, %s134
    %s152 = sphi 0, %s152
    %s154 = sphi 0, %s152
    %s155 = sphi 0, %s154
    %s169 = sphi 0, %s155
    %s175 = sphi 0, %s177
    %s178 = sphi 0, %s175
    %s179 = sphi 0, %s178
    %s195 = sphi 0, %s179
  $region4: #{basic_block_forward.1} parent=0 // loop_header_branch
    %16 = sbr.rel (%p14) target = $region8
  $region5: #{basic_block_forward.1} parent=0 // loop_body
    %s18 = ssub.s32 %s13, 1
    %s19 = ssub.s32 %s13, 2
    %s20 = sadd.s32 %s13, 1
    %s21 = ssub.s32 %s13, %s20
    %p22 = scmp.eq.s32.totalorder %s21, 0
    %s24 = sadd.s32 %s23, 1
    %s25 = scalar_select %p22, %s23, %s24
    %p28 = pneg %p22
    %p29 = scmp.eq.s32.totalorder %s13, 1
    %p30 = por %p28, %p29
    %p31 = scmp.ne.s32.totalorder %s23, %s26
    %p32 = scmp.eq.s32.totalorder %s13, 0
    %p33 = por %p31, %p32
    %p34 = scmp.ne.s32.totalorder %s23, %s26
    %p35 = scmp.eq.s32.totalorder %s18, 1
    %p36 = por %p34, %p35
    %p37 = scmp.ne.s32.totalorder %s26, %s27
    %p38 = scmp.eq.s32.totalorder %s18, 0
    %p39 = por %p37, %p38
    %p40 = scmp.ne.s32.totalorder %s26, %s27
    %p41 = scmp.eq.s32.totalorder %s19, 1
    %p42 = por %p40, %p41
    %p44 = scmp.ne.s32.totalorder %s27, %s43
    %p45 = scmp.eq.s32.totalorder %s19, 0
    %p46 = por %p44, %p45
    %s48 = sadd.s32 %s47, 1
    %p51 = scmp.eq.s32.totalorder %s13, 1
    %p52 = scmp.ne.s32.totalorder %s47, %s49
    %p53 = scmp.eq.s32.totalorder %s13, 0
    %p54 = por %p52, %p53
    %p55 = scmp.ne.s32.totalorder %s47, %s49
    %p56 = scmp.eq.s32.totalorder %s18, 1
    %p57 = por %p55, %p56
    %p58 = scmp.ne.s32.totalorder %s49, %s50
    %p59 = scmp.eq.s32.totalorder %s18, 0
    %p60 = por %p58, %p59
    %p61 = scmp.ne.s32.totalorder %s49, %s50
    %p62 = scmp.eq.s32.totalorder %s19, 1
    %p63 = por %p61, %p62
    %p65 = scmp.ne.s32.totalorder %s50, %s64
    %p66 = scmp.eq.s32.totalorder %s19, 0
    %p67 = por %p65, %p66
    %s69 = sadd.s32 %s68, 1
    %p72 = scmp.eq.s32.totalorder %s13, 1
    %p73 = scmp.ne.s32.totalorder %s68, %s70
    %p74 = scmp.eq.s32.totalorder %s13, 0
    %p75 = por %p73, %p74
    %p76 = scmp.ne.s32.totalorder %s68, %s70
    %p77 = scmp.eq.s32.totalorder %s18, 1
    %p78 = por %p76, %p77
    %p79 = scmp.ne.s32.totalorder %s70, %s71
    %p80 = scmp.eq.s32.totalorder %s18, 0
    %p81 = por %p79, %p80
    %p82 = scmp.ne.s32.totalorder %s70, %s71
    %p83 = scmp.eq.s32.totalorder %s19, 1
    %p84 = por %p82, %p83
    %p86 = scmp.ne.s32.totalorder %s71, %s85
    %p87 = scmp.eq.s32.totalorder %s19, 0
    %p88 = por %p86, %p87
    %s90 = sadd.s32 %s89, 1
    %p93 = scmp.eq.s32.totalorder %s13, 1
    %p94 = scmp.ne.s32.totalorder %s89, %s91
    %p95 = scmp.eq.s32.totalorder %s13, 0
    %p96 = por %p94, %p95
    %p97 = scmp.ne.s32.totalorder %s89, %s91
    %p98 = scmp.eq.s32.totalorder %s18, 1
    %p99 = por %p97, %p98
    %p100 = scmp.ne.s32.totalorder %s91, %s92
    %p101 = scmp.eq.s32.totalorder %s18, 0
    %p102 = por %p100, %p101
    %p103 = scmp.ne.s32.totalorder %s91, %s92
    %p104 = scmp.eq.s32.totalorder %s19, 1
    %p105 = por %p103, %p104
    %p107 = scmp.ne.s32.totalorder %s92, %s106
    %p108 = scmp.eq.s32.totalorder %s19, 0
    %p109 = por %p107, %p108
    %s111 = sadd.s32 %s110, 1
    %p114 = scmp.eq.s32.totalorder %s13, 1
    %p115 = scmp.ne.s32.totalorder %s110, %s112
    %p116 = scmp.eq.s32.totalorder %s13, 0
    %p117 = por %p115, %p116
    %p118 = scmp.ne.s32.totalorder %s110, %s112
    %p119 = scmp.eq.s32.totalorder %s18, 1
    %p120 = por %p118, %p119
    %p121 = scmp.ne.s32.totalorder %s112, %s113
    %p122 = scmp.eq.s32.totalorder %s18, 0
    %p123 = por %p121, %p122
    %p124 = scmp.ne.s32.totalorder %s112, %s113
    %p125 = scmp.eq.s32.totalorder %s19, 1
    %p126 = por %p124, %p125
    %p128 = scmp.ne.s32.totalorder %s113, %s127
    %p129 = scmp.eq.s32.totalorder %s19, 0
    %p130 = por %p128, %p129
    %s132 = sadd.s32 %s131, 1
    %p135 = scmp.eq.s32.totalorder %s13, 1
    %p136 = scmp.ne.s32.totalorder %s131, %s133
    %p137 = scmp.eq.s32.totalorder %s13, 0
    %p138 = por %p136, %p137
    %p139 = scmp.ne.s32.totalorder %s131, %s133
    %p140 = scmp.eq.s32.totalorder %s18, 1
    %p141 = por %p139, %p140
    %p142 = scmp.ne.s32.totalorder %s133, %s134
    %p143 = scmp.eq.s32.totalorder %s18, 0
    %p144 = por %p142, %p143
    %p145 = scmp.ne.s32.totalorder %s133, %s134
    %p146 = scmp.eq.s32.totalorder %s19, 1
    %p147 = por %p145, %p146
    %p149 = scmp.ne.s32.totalorder %s134, %s148
    %p150 = scmp.eq.s32.totalorder %s19, 0
    %p151 = por %p149, %p150
    %s153 = sadd.s32 %s152, 1
    %p156 = scmp.eq.s32.totalorder %s13, 1
    %p157 = scmp.ne.s32.totalorder %s152, %s154
    %p158 = scmp.eq.s32.totalorder %s13, 0
    %p159 = por %p157, %p158
    %p160 = scmp.ne.s32.totalorder %s152, %s154
    %p161 = scmp.eq.s32.totalorder %s18, 1
    %p162 = por %p160, %p161
    %p163 = scmp.ne.s32.totalorder %s154, %s155
    %p164 = scmp.eq.s32.totalorder %s18, 0
    %p165 = por %p163, %p164
    %p166 = scmp.ne.s32.totalorder %s154, %s155
    %p167 = scmp.eq.s32.totalorder %s19, 1
    %p168 = por %p166, %p167
    %p170 = scmp.ne.s32.totalorder %s155, %s169
    %p171 = scmp.eq.s32.totalorder %s19, 0
    %p172 = por %p170, %p171
    %s173 = ssub.s32 %s13, %s20
    %p174 = scmp.eq.s32.totalorder %s173, 0
    %s176 = sadd.s32 %s175, 1
    %s177 = scalar_select %p174, %s175, %s176
    %p180 = pneg %p174
    %p181 = scmp.eq.s32.totalorder %s13, 1
    %p182 = por %p180, %p181
    %p183 = scmp.ne.s32.totalorder %s175, %s178
    %p184 = scmp.eq.s32.totalorder %s13, 0
    %p185 = por %p183, %p184
    %p186 = scmp.ne.s32.totalorder %s175, %s178
    %p187 = scmp.eq.s32.totalorder %s18, 1
    %p188 = por %p186, %p187
    %p189 = scmp.ne.s32.totalorder %s178, %s179
    %p190 = scmp.eq.s32.totalorder %s18, 0
    %p191 = por %p189, %p190
    %p192 = scmp.ne.s32.totalorder %s178, %s179
    %p193 = scmp.eq.s32.totalorder %s19, 1
    %p194 = por %p192, %p193
    %p196 = scmp.ne.s32.totalorder %s179, %s195
    %p197 = scmp.eq.s32.totalorder %s19, 0
    %p198 = por %p196, %p197
    %p199 = scmp.le.s32.totalorder 1, %s13
    %p200 = scmp.lt.s32.totalorder %s13, 3
    %p201 = pnand %p199, %p200
    %p202 = pneg %p201
    // Predicated region
    $region9: #{basic_block_forward.1} parent=5 // pred_check
      _
    $region10: #{basic_block_forward.1} parent=5 // pred_check_branch
      %204 = sbr.rel (%p201) target = $region12
    $region11: #{basic_block_forward.1} parent=5 // pred_region
      %s205 = ssub.s32 %s13, 1
      // Predicated region
      $region13: #{basic_block_forward.1} parent=11 // pred_check
        %p206 = pneg %p60
      $region14: #{basic_block_forward.1} parent=11 // pred_check_branch
        %208 = sbr.rel (%p206) target = $region16
      $region15: #{basic_block_forward.1} parent=11 // pred_region
        _
      $region16: #{basic_block_forward.1} parent=11 // pred_fallthru
        _
      // Predicated region
      $region17: #{basic_block_forward.1} parent=11 // pred_check
        %p209 = pneg %p81
      $region18: #{basic_block_forward.1} parent=11 // pred_check_branch
        %211 = sbr.rel (%p209) target = $region20
      $region19: #{basic_block_forward.1} parent=11 // pred_region
        _
      $region20: #{basic_block_forward.1} parent=11 // pred_fallthru
        _
      // Predicated region
      $region21: #{basic_block_forward.1} parent=11 // pred_check
        %p212 = pneg %p102
      $region22: #{basic_block_forward.1} parent=11 // pred_check_branch
        %214 = sbr.rel (%p212) target = $region24
      $region23: #{basic_block_forward.1} parent=11 // pred_region
        _
      $region24: #{basic_block_forward.1} parent=11 // pred_fallthru
        _
      // Predicated region
      $region25: #{basic_block_forward.1} parent=11 // pred_check
        %p215 = pneg %p123
      $region26: #{basic_block_forward.1} parent=11 // pred_check_branch
        %217 = sbr.rel (%p215) target = $region28
      $region27: #{basic_block_forward.1} parent=11 // pred_region
        _
      $region28: #{basic_block_forward.1} parent=11 // pred_fallthru
        _
      // Predicated region
      $region29: #{basic_block_forward.1} parent=11 // pred_check
        %p218 = pneg %p144
      $region30: #{basic_block_forward.1} parent=11 // pred_check_branch
        %220 = sbr.rel (%p218) target = $region32
      $region31: #{basic_block_forward.1} parent=11 // pred_region
        _
      $region32: #{basic_block_forward.1} parent=11 // pred_fallthru
        _
      // Predicated region
      $region33: #{basic_block_forward.1} parent=11 // pred_check
        %p221 = pneg %p165
      $region34: #{basic_block_forward.1} parent=11 // pred_check_branch
        %223 = sbr.rel (%p221) target = $region36
      $region35: #{basic_block_forward.1} parent=11 // pred_region
        _
      $region36: #{basic_block_forward.1} parent=11 // pred_fallthru
        _
    $region12: #{basic_block_forward.1} parent=5 // pred_fallthru
      _
    %p224 = scmp.lt.s32.totalorder %s13, 2
    // Predicated region
    $region37: #{basic_block_forward.1} parent=5 // pred_check
      %p225 = pneg %p224
    $region38: #{basic_block_forward.1} parent=5 // pred_check_branch
      %227 = sbr.rel (%p225) target = $region40
    $region39: #{basic_block_forward.1} parent=5 // pred_region
      // Predicated region
      $region41: #{basic_block_forward.1} parent=39 // pred_check
        %p228 = pneg %p33
      $region42: #{basic_block_forward.1} parent=39 // pred_check_branch
        %230 = sbr.rel (%p228) target = $region44
      $region43: #{basic_block_forward.1} parent=39 // pred_region
        %p231 = scmp.lt.s32.totalorder %s13, 1
        %s232 = scalar_select %p231, %s13, 1
        %s233 = smul.addr %s232, 32
        %s234 = smul.addr %s233, 8
        %s235 = scalar_lea.vmem %s0, %s234
      $region44: #{basic_block_forward.1} parent=39 // pred_fallthru
        _
    $region40: #{basic_block_forward.1} parent=5 // pred_fallthru
      _
    %p236 = scmp.le.s32.totalorder 1, %s13
    %p237 = scmp.lt.s32.totalorder %s13, 3
    %p238 = pnand %p236, %p237
    %p239 = pneg %p238
    // Predicated region
    $region45: #{basic_block_forward.1} parent=5 // pred_check
      _
    $region46: #{basic_block_forward.1} parent=5 // pred_check_branch
      %241 = sbr.rel (%p238) target = $region48
    $region47: #{basic_block_forward.1} parent=5 // pred_region
      %s242 = ssub.s32 %s13, 1
      %p243 = scmp.lt.s32.totalorder %s18, 1
      %s244 = scalar_select %p243, %s18, 1
      %s245 = smul.addr %s244, 32
      %s246 = smul.addr %s245, 8
      %s247 = scalar_lea.vmem %s0, %s246
      %p248 = pneg %p39
      %p249 = pneg %p36
      %p250 = pneg %p60
      %p251 = pneg %p57
      %p252 = pneg %p81
      %p253 = pneg %p78
      %p254 = pneg %p102
      %p255 = pneg %p99
      %p256 = pneg %p123
      %p257 = pneg %p120
      %p258 = pneg %p144
      %p259 = pneg %p141
      %p260 = pneg %p165
      %p261 = pneg %p162
      %p262 = pneg %p191
      %p263 = pneg %p188
      %p264 = scmp.lt.s32.totalorder %s18, 1
      %s265 = scalar_select %p264, %s18, 1
      %s266 = smul.addr %s265, 32
      %s267 = smul.addr %s266, 8
      %s268 = scalar_lea.vmem %s7, %s267
      %p269 = scmp.lt.s32.totalorder %s18, 1
      %s270 = scalar_select %p269, %s18, 1
      %s271 = smul.addr %s270, 32
      %s272 = smul.addr %s271, 8
      %s273 = scalar_lea.vmem %s0, %s272
      %p274 = scmp.lt.s32.totalorder %s18, 1
      %s275 = scalar_select %p274, %s18, 1
      %s276 = smul.addr %s275, 32
      %s277 = smul.addr %s276, 8
      %s278 = scalar_lea.vmem %s7, %s277
      %279 = vst [vmem:[#allocation2] sm:$0xff] 0.0
      %280 = vst [vmem:[#allocation2 + $0x8] sm:$0xff] 0.0
      %281 = vst [vmem:[#allocation2 + $0x10] sm:$0x3] 0.0
      %s282 = scalar_lea.vmem [#allocation2], 408
      %283 = vst [vmem:[%s282] sm:$0xff] 0.0
      %284 = vst [vmem:[%s282 + $0x8] sm:$0xff] 0.0
      %285 = vst [vmem:[%s282 + $0x10] sm:$0x3] 0.0
      %s286 = scalar_lea.vmem [#allocation2], 24
      %287 = vst [vmem:[%s286] sm:$0x1] 0.0
      %288 = vst [vmem:[%s286 + $0x18] sm:$0x1] 0.0
      %289 = vst [vmem:[%s286 + $0x30] sm:$0x1] 0.0
      %290 = vst [vmem:[%s286 + $0x48] sm:$0x1] 0.0
      %291 = vst [vmem:[%s286 + $0x60] sm:$0x1] 0.0
      %292 = vst [vmem:[%s286 + $0x78] sm:$0x1] 0.0
      %293 = vst [vmem:[%s286 + $0x90] sm:$0x1] 0.0
      %294 = vst [vmem:[%s286 + $0xa8] sm:$0x1] 0.0
      %295 = vst [vmem:[%s286 + $0xc0] sm:$0x1] 0.0
      %296 = vst [vmem:[%s286 + $0xd8] sm:$0x1] 0.0
      %297 = vst [vmem:[%s286 + $0xf0] sm:$0x1] 0.0
      %298 = vst [vmem:[%s286 + $0x108] sm:$0x1] 0.0
      %299 = vst [vmem:[%s286 + $0x120] sm:$0x1] 0.0
      %300 = vst [vmem:[%s286 + $0x138] sm:$0x1] 0.0
      %301 = vst [vmem:[%s286 + $0x150] sm:$0x1] 0.0
      %302 = vst [vmem:[%s286 + $0x168] sm:$0x1] 0.0
      %303 = vst [vmem:[%s286 + $0x11] sm:$0x1] 0.0
      %304 = vst [vmem:[%s286 + $0x29] sm:$0x1] 0.0
      %305 = vst [vmem:[%s286 + $0x41] sm:$0x1] 0.0
      %306 = vst [vmem:[%s286 + $0x59] sm:$0x1] 0.0
      %307 = vst [vmem:[%s286 + $0x71] sm:$0x1] 0.0
      %308 = vst [vmem:[%s286 + $0x89] sm:$0x1] 0.0
      %309 = vst [vmem:[%s286 + $0xa1] sm:$0x1] 0.0
      %310 = vst [vmem:[%s286 + $0xb9] sm:$0x1] 0.0
      %311 = vst [vmem:[%s286 + $0xd1] sm:$0x1] 0.0
      %312 = vst [vmem:[%s286 + $0xe9] sm:$0x1] 0.0
      %313 = vst [vmem:[%s286 + $0x101] sm:$0x1] 0.0
      %314 = vst [vmem:[%s286 + $0x119] sm:$0x1] 0.0
      %315 = vst [vmem:[%s286 + $0x131] sm:$0x1] 0.0
      %316 = vst [vmem:[%s286 + $0x149] sm:$0x1] 0.0
      %317 = vst [vmem:[%s286 + $0x161] sm:$0x1] 0.0
      %318 = vst [vmem:[%s286 + $0x179] sm:$0x1] 0.0
      %319 = vst [vmem:[#allocation3] sm:$0xff] 0.0
      %320 = vst [vmem:[#allocation3 + $0x8] sm:$0xff] 0.0
      %321 = vst [vmem:[#allocation3 + $0x10] sm:$0x3] 0.0
      %s322 = scalar_lea.vmem [#allocation3], 408
      %323 = vst [vmem:[%s322] sm:$0xff] 0.0
      %324 = vst [vmem:[%s322 + $0x8] sm:$0xff] 0.0
      %325 = vst [vmem:[%s322 + $0x10] sm:$0x3] 0.0
      %s326 = scalar_lea.vmem [#allocation3], 24
      %327 = vst [vmem:[%s326] sm:$0x1] 0.0
      %328 = vst [vmem:[%s326 + $0x18] sm:$0x1] 0.0
      %329 = vst [vmem:[%s326 + $0x30] sm:$0x1] 0.0
      %330 = vst [vmem:[%s326 + $0x48] sm:$0x1] 0.0
      %331 = vst [vmem:[%s326 + $0x60] sm:$0x1] 0.0
      %332 = vst [vmem:[%s326 + $0x78] sm:$0x1] 0.0
      %333 = vst [vmem:[%s326 + $0x90] sm:$0x1] 0.0
      %334 = vst [vmem:[%s326 + $0xa8] sm:$0x1] 0.0
      %335 = vst [vmem:[%s326 + $0xc0] sm:$0x1] 0.0
      %336 = vst [vmem:[%s326 + $0xd8] sm:$0x1] 0.0
      %337 = vst [vmem:[%s326 + $0xf0] sm:$0x1] 0.0
      %338 = vst [vmem:[%s326 + $0x108] sm:$0x1] 0.0
      %339 = vst [vmem:[%s326 + $0x120] sm:$0x1] 0.0
      %340 = vst [vmem:[%s326 + $0x138] sm:$0x1] 0.0
      %341 = vst [vmem:[%s326 + $0x150] sm:$0x1] 0.0
      %342 = vst [vmem:[%s326 + $0x168] sm:$0x1] 0.0
      %343 = vst [vmem:[%s326 + $0x11] sm:$0x1] 0.0
      %344 = vst [vmem:[%s326 + $0x29] sm:$0x1] 0.0
      %345 = vst [vmem:[%s326 + $0x41] sm:$0x1] 0.0
      %346 = vst [vmem:[%s326 + $0x59] sm:$0x1] 0.0
      %347 = vst [vmem:[%s326 + $0x71] sm:$0x1] 0.0
      %348 = vst [vmem:[%s326 + $0x89] sm:$0x1] 0.0
      %349 = vst [vmem:[%s326 + $0xa1] sm:$0x1] 0.0
      %350 = vst [vmem:[%s326 + $0xb9] sm:$0x1] 0.0
      %351 = vst [vmem:[%s326 + $0xd1] sm:$0x1] 0.0
      %352 = vst [vmem:[%s326 + $0xe9] sm:$0x1] 0.0
      %353 = vst [vmem:[%s326 + $0x101] sm:$0x1] 0.0
      %354 = vst [vmem:[%s326 + $0x119] sm:$0x1] 0.0
      %355 = vst [vmem:[%s326 + $0x131] sm:$0x1] 0.0
      %356 = vst [vmem:[%s326 + $0x149] sm:$0x1] 0.0
      %357 = vst [vmem:[%s326 + $0x161] sm:$0x1] 0.0
      %358 = vst [vmem:[%s326 + $0x179] sm:$0x1] 0.0
      %v359 = vld [vmem:[%s273] sm:$0xff]
      %v360 = vld [vmem:[%s273 + $0x8] sm:$0xff]
      %v361 = vld [vmem:[%s273 + $0x10] sm:$0xff]
      %v362 = vld [vmem:[%s273 + $0x18] sm:$0xff]
      %v363 = vld [vmem:[%s273 + $0x20] sm:$0xff]
      %v364 = vld [vmem:[%s273 + $0x28] sm:$0xff]
      %v365 = vld [vmem:[%s273 + $0x30] sm:$0xff]
      %v366 = vld [vmem:[%s273 + $0x38] sm:$0xff]
      %v367 = vld [vmem:[%s273 + $0x40] sm:$0xff]
      %v368 = vld [vmem:[%s273 + $0x48] sm:$0xff]
      %v369 = vld [vmem:[%s273 + $0x50] sm:$0xff]
      %v370 = vld [vmem:[%s273 + $0x58] sm:$0xff]
      %v371 = vld [vmem:[%s273 + $0x60] sm:$0xff]
      %v372 = vld [vmem:[%s273 + $0x68] sm:$0xff]
      %v373 = vld [vmem:[%s273 + $0x70] sm:$0xff]
      %v374 = vld [vmem:[%s273 + $0x78] sm:$0xff]
      %v375 = vld [vmem:[%s273 + $0x80] sm:$0xff]
      %v376 = vld [vmem:[%s273 + $0x88] sm:$0xff]
      %v377 = vld [vmem:[%s273 + $0x90] sm:$0xff]
      %v378 = vld [vmem:[%s273 + $0x98] sm:$0xff]
      %v379 = vld [vmem:[%s273 + $0xa0] sm:$0xff]
      %v380 = vld [vmem:[%s273 + $0xa8] sm:$0xff]
      %v381 = vld [vmem:[%s273 + $0xb0] sm:$0xff]
      %v382 = vld [vmem:[%s273 + $0xb8] sm:$0xff]
      %v383 = vld [vmem:[%s273 + $0xc0] sm:$0xff]
      %v384 = vld [vmem:[%s273 + $0xc8] sm:$0xff]
      %v385 = vld [vmem:[%s273 + $0xd0] sm:$0xff]
      %v386 = vld [vmem:[%s273 + $0xd8] sm:$0xff]
      %v387 = vld [vmem:[%s273 + $0xe0] sm:$0xff]
      %v388 = vld [vmem:[%s273 + $0xe8] sm:$0xff]
      %v389 = vld [vmem:[%s273 + $0xf0] sm:$0xff]
      %v390 = vld [vmem:[%s273 + $0xf8] sm:$0xff]
      %391 = vst [vmem:[%s286 + $0x1] sm:$0xff] %v359
      %392 = vst [vmem:[%s286 + $0x9] sm:$0xff] %v360
      %393 = vst [vmem:[%s286 + $0x19] sm:$0xff] %v361
      %394 = vst [vmem:[%s286 + $0x21] sm:$0xff] %v362
      %395 = vst [vmem:[%s286 + $0x31] sm:$0xff] %v363
      %396 = vst [vmem:[%s286 + $0x39] sm:$0xff] %v364
      %397 = vst [vmem:[%s286 + $0x49] sm:$0xff] %v365
      %398 = vst [vmem:[%s286 + $0x51] sm:$0xff] %v366
      %399 = vst [vmem:[%s286 + $0x61] sm:$0xff] %v367
      %400 = vst [vmem:[%s286 + $0x69] sm:$0xff] %v368
      %401 = vst [vmem:[%s286 + $0x79] sm:$0xff] %v369
      %402 = vst [vmem:[%s286 + $0x81] sm:$0xff] %v370
      %403 = vst [vmem:[%s286 + $0x91] sm:$0xff] %v371
      %404 = vst [vmem:[%s286 + $0x99] sm:$0xff] %v372
      %405 = vst [vmem:[%s286 + $0xa9] sm:$0xff] %v373
      %406 = vst [vmem:[%s286 + $0xb1] sm:$0xff] %v374
      %407 = vst [vmem:[%s286 + $0xc1] sm:$0xff] %v375
      %408 = vst [vmem:[%s286 + $0xc9] sm:$0xff] %v376
      %409 = vst [vmem:[%s286 + $0xd9] sm:$0xff] %v377
      %410 = vst [vmem:[%s286 + $0xe1] sm:$0xff] %v378
      %411 = vst [vmem:[%s286 + $0xf1] sm:$0xff] %v379
      %412 = vst [vmem:[%s286 + $0xf9] sm:$0xff] %v380
      %413 = vst [vmem:[%s286 + $0x109] sm:$0xff] %v381
      %414 = vst [vmem:[%s286 + $0x111] sm:$0xff] %v382
      %415 = vst [vmem:[%s286 + $0x121] sm:$0xff] %v383
      %416 = vst [vmem:[%s286 + $0x129] sm:$0xff] %v384
      %417 = vst [vmem:[%s286 + $0x139] sm:$0xff] %v385
      %418 = vst [vmem:[%s286 + $0x141] sm:$0xff] %v386
      %419 = vst [vmem:[%s286 + $0x151] sm:$0xff] %v387
      %420 = vst [vmem:[%s286 + $0x159] sm:$0xff] %v388
      %421 = vst [vmem:[%s286 + $0x169] sm:$0xff] %v389
      %422 = vst [vmem:[%s286 + $0x171] sm:$0xff] %v390
      %v423 = vld [vmem:[#allocation2] sm:$0xff]
      %v424 = vld [vmem:[#allocation2 + $0x8] sm:$0xff]
      %v425 = vld [vmem:[#allocation2 + $0x18] sm:$0xff]
      %v426 = vld [vmem:[#allocation2 + $0x20] sm:$0xff]
      %v427 = vld [vmem:[#allocation2 + $0x30] sm:$0xff]
      %v428 = vld [vmem:[#allocation2 + $0x38] sm:$0xff]
      %v429 = vld [vmem:[#allocation2 + $0x48] sm:$0xff]
      %v430 = vld [vmem:[#allocation2 + $0x50] sm:$0xff]
      %v431 = vld [vmem:[#allocation2 + $0x60] sm:$0xff]
      %v432 = vld [vmem:[#allocation2 + $0x68] sm:$0xff]
      %v433 = vld [vmem:[#allocation2 + $0x78] sm:$0xff]
      %v434 = vld [vmem:[#allocation2 + $0x80] sm:$0xff]
      %v435 = vld [vmem:[#allocation2 + $0x90] sm:$0xff]
      %v436 = vld [vmem:[#allocation2 + $0x98] sm:$0xff]
      %v437 = vld [vmem:[#allocation2 + $0xa8] sm:$0xff]
      %v438 = vld [vmem:[#allocation2 + $0xb0] sm:$0xff]
      %v439 = vld [vmem:[#allocation2 + $0xc0] sm:$0xff]
      %v440 = vld [vmem:[#allocation2 + $0xc8] sm:$0xff]
      %v441 = vld [vmem:[#allocation2 + $0xd8] sm:$0xff]
      %v442 = vld [vmem:[#allocation2 + $0xe0] sm:$0xff]
      %v443 = vld [vmem:[#allocation2 + $0xf0] sm:$0xff]
      %v444 = vld [vmem:[#allocation2 + $0xf8] sm:$0xff]
      %v445 = vld [vmem:[#allocation2 + $0x108] sm:$0xff]
      %v446 = vld [vmem:[#allocation2 + $0x110] sm:$0xff]
      %v447 = vld [vmem:[#allocation2 + $0x120] sm:$0xff]
      %v448 = vld [vmem:[#allocation2 + $0x128] sm:$0xff]
      %v449 = vld [vmem:[#allocation2 + $0x138] sm:$0xff]
      %v450 = vld [vmem:[#allocation2 + $0x140] sm:$0xff]
      %v451 = vld [vmem:[#allocation2 + $0x150] sm:$0xff]
      %v452 = vld [vmem:[#allocation2 + $0x158] sm:$0xff]
      %v453 = vld [vmem:[#allocation2 + $0x168] sm:$0xff]
      %v454 = vld [vmem:[#allocation2 + $0x170] sm:$0xff]
      %v455 = vld [vmem:[%s1] sm:$0xff]
      %v456 = vld [vmem:[%s1 + $0x8] sm:$0xff]
      %v457 = vld [vmem:[%s1 + $0x10] sm:$0xff]
      %v458 = vld [vmem:[%s1 + $0x18] sm:$0xff]
      %v459 = vld [vmem:[%s1 + $0x20] sm:$0xff]
      %v460 = vld [vmem:[%s1 + $0x28] sm:$0xff]
      %v461 = vld [vmem:[%s1 + $0x30] sm:$0xff]
      %v462 = vld [vmem:[%s1 + $0x38] sm:$0xff]
      %v463 = vld [vmem:[%s1 + $0x40] sm:$0xff]
      %v464 = vld [vmem:[%s1 + $0x48] sm:$0xff]
      %v465 = vld [vmem:[%s1 + $0x50] sm:$0xff]
      %v466 = vld [vmem:[%s1 + $0x58] sm:$0xff]
      %v467 = vld [vmem:[%s1 + $0x60] sm:$0xff]
      %v468 = vld [vmem:[%s1 + $0x68] sm:$0xff]
      %v469 = vld [vmem:[%s1 + $0x70] sm:$0xff]
      %v470 = vld [vmem:[%s1 + $0x78] sm:$0xff]
      %v471 = vld [vmem:[#allocation2 + $0x1] sm:$0xff]
      %v472 = vld [vmem:[#allocation2 + $0x9] sm:$0xff]
      %v473 = vld [vmem:[#allocation2 + $0x19] sm:$0xff]
      %v474 = vld [vmem:[#allocation2 + $0x21] sm:$0xff]
      %v475 = vld [vmem:[#allocation2 + $0x31] sm:$0xff]
      %v476 = vld [vmem:[#allocation2 + $0x39] sm:$0xff]
      %v477 = vld [vmem:[#allocation2 + $0x49] sm:$0xff]
      %v478 = vld [vmem:[#allocation2 + $0x51] sm:$0xff]
      %v479 = vld [vmem:[#allocation2 + $0x61] sm:$0xff]
      %v480 = vld [vmem:[#allocation2 + $0x69] sm:$0xff]
      %v481 = vld [vmem:[#allocation2 + $0x79] sm:$0xff]
      %v482 = vld [vmem:[#allocation2 + $0x81] sm:$0xff]
      %v483 = vld [vmem:[#allocation2 + $0x91] sm:$0xff]
      %v484 = vld [vmem:[#allocation2 + $0x99] sm:$0xff]
      %v485 = vld [vmem:[#allocation2 + $0xa9] sm:$0xff]
      %v486 = vld [vmem:[#allocation2 + $0xb1] sm:$0xff]
      %v487 = vld [vmem:[#allocation2 + $0xc1] sm:$0xff]
      %v488 = vld [vmem:[#allocation2 + $0xc9] sm:$0xff]
      %v489 = vld [vmem:[#allocation2 + $0xd9] sm:$0xff]
      %v490 = vld [vmem:[#allocation2 + $0xe1] sm:$0xff]
      %v491 = vld [vmem:[#allocation2 + $0xf1] sm:$0xff]
      %v492 = vld [vmem:[#allocation2 + $0xf9] sm:$0xff]
      %v493 = vld [vmem:[#allocation2 + $0x109] sm:$0xff]
      %v494 = vld [vmem:[#allocation2 + $0x111] sm:$0xff]
      %v495 = vld [vmem:[#allocation2 + $0x121] sm:$0xff]
      %v496 = vld [vmem:[#allocation2 + $0x129] sm:$0xff]
      %v497 = vld [vmem:[#allocation2 + $0x139] sm:$0xff]
      %v498 = vld [vmem:[#allocation2 + $0x141] sm:$0xff]
      %v499 = vld [vmem:[#allocation2 + $0x151] sm:$0xff]
      %v500 = vld [vmem:[#allocation2 + $0x159] sm:$0xff]
      %v501 = vld [vmem:[#allocation2 + $0x169] sm:$0xff]
      %v502 = vld [vmem:[#allocation2 + $0x171] sm:$0xff]
      %s503 = scalar_lea.vmem %s1, 128
      %v504 = vld [vmem:[%s503] sm:$0xff]
      %v505 = vld [vmem:[%s503 + $0x8] sm:$0xff]
      %v506 = vld [vmem:[%s503 + $0x10] sm:$0xff]
      %v507 = vld [vmem:[%s503 + $0x18] sm:$0xff]
      %v508 = vld [vmem:[%s503 + $0x20] sm:$0xff]
      %v509 = vld [vmem:[%s503 + $0x28] sm:$0xff]
      %v510 = vld [vmem:[%s503 + $0x30] sm:$0xff]
      %v511 = vld [vmem:[%s503 + $0x38] sm:$0xff]
      %v512 = vld [vmem:[%s503 + $0x40] sm:$0xff]
      %v513 = vld [vmem:[%s503 + $0x48] sm:$0xff]
      %v514 = vld [vmem:[%s503 + $0x50] sm:$0xff]
      %v515 = vld [vmem:[%s503 + $0x58] sm:$0xff]
      %v516 = vld [vmem:[%s503 + $0x60] sm:$0xff]
      %v517 = vld [vmem:[%s503 + $0x68] sm:$0xff]
      %v518 = vld [vmem:[%s503 + $0x70] sm:$0xff]
      %v519 = vld [vmem:[%s503 + $0x78] sm:$0xff]
      %520 = vmatpush.msra.mxu0 %v519
      %521 = vmatpush.msra.mxu0 %v518
      %522 = vmatpush.msra.mxu0 %v517
      %523 = vmatpush.msra.mxu0 %v516
      %524 = vmatpush.msra.mxu0 %v515
      %525 = vmatpush.msra.mxu0 %v514
      %526 = vmatpush.msra.mxu0 %v513
      %527 = vmatpush.msra.mxu0 %v512
      %528 = vmatpush.msra.mxu0 %v511
      %529 = vmatpush.msra.mxu0 %v510
      %530 = vmatpush.msra.mxu0 %v509
      %531 = vmatpush.msra.mxu0 %v508
      %532 = vmatpush.msra.mxu0 %v507
      %533 = vmatpush.msra.mxu0 %v506
      %534 = vmatpush.msra.mxu0 %v505
      %535 = vmatpush.msra.mxu0 %v504
      %536 = vmatmul.f32.gmra.mxu0 %v471
      %v537 = vpop.f32.mrf.mxu0
      %v538 = vadd.f32 0.0, %v537
      %539 = vmatmul.f32.gmra.mxu0 %v472
      %v540 = vpop.f32.mrf.mxu0
      %v541 = vadd.f32 0.0, %v540
      %542 = vmatmul.f32.gmra.mxu0 %v473
      %v543 = vpop.f32.mrf.mxu0
      %v544 = vadd.f32 0.0, %v543
      %545 = vmatmul.f32.gmra.mxu0 %v474
      %v546 = vpop.f32.mrf.mxu0
      %v547 = vadd.f32 0.0, %v546
      %548 = vmatmul.f32.gmra.mxu0 %v475
      %v549 = vpop.f32.mrf.mxu0
      %v550 = vadd.f32 0.0, %v549
      %551 = vmatmul.f32.gmra.mxu0 %v476
      %v552 = vpop.f32.mrf.mxu0
      %v553 = vadd.f32 0.0, %v552
      %554 = vmatmul.f32.gmra.mxu0 %v477
      %v555 = vpop.f32.mrf.mxu0
      %v556 = vadd.f32 0.0, %v555
      %557 = vmatmul.f32.gmra.mxu0 %v478
      %v558 = vpop.f32.mrf.mxu0
      %v559 = vadd.f32 0.0, %v558
      %560 = vmatmul.f32.gmra.mxu0 %v479
      %v561 = vpop.f32.mrf.mxu0
      %v562 = vadd.f32 0.0, %v561
      %563 = vmatmul.f32.gmra.mxu0 %v480
      %v564 = vpop.f32.mrf.mxu0
      %v565 = vadd.f32 0.0, %v564
      %566 = vmatmul.f32.gmra.mxu0 %v481
      %v567 = vpop.f32.mrf.mxu0
      %v568 = vadd.f32 0.0, %v567
      %569 = vmatmul.f32.gmra.mxu0 %v482
      %v570 = vpop.f32.mrf.mxu0
      %v571 = vadd.f32 0.0, %v570
      %572 = vmatmul.f32.gmra.mxu0 %v483
      %v573 = vpop.f32.mrf.mxu0
      %v574 = vadd.f32 0.0, %v573
      %575 = vmatmul.f32.gmra.mxu0 %v484
      %v576 = vpop.f32.mrf.mxu0
      %v577 = vadd.f32 0.0, %v576
      %578 = vmatmul.f32.gmra.mxu0 %v485
      %v579 = vpop.f32.mrf.mxu0
      %v580 = vadd.f32 0.0, %v579
      %581 = vmatmul.f32.gmra.mxu0 %v486
      %v582 = vpop.f32.mrf.mxu0
      %v583 = vadd.f32 0.0, %v582
      %584 = vmatmul.f32.gmra.mxu0 %v487
      %v585 = vpop.f32.mrf.mxu0
      %v586 = vadd.f32 0.0, %v585
      %587 = vmatmul.f32.gmra.mxu0 %v488
      %v588 = vpop.f32.mrf.mxu0
      %v589 = vadd.f32 0.0, %v588
      %590 = vmatmul.f32.gmra.mxu0 %v489
      %v591 = vpop.f32.mrf.mxu0
      %v592 = vadd.f32 0.0, %v591
      %593 = vmatmul.f32.gmra.mxu0 %v490
      %v594 = vpop.f32.mrf.mxu0
      %v595 = vadd.f32 0.0, %v594
      %596 = vmatmul.f32.gmra.mxu0 %v491
      %v597 = vpop.f32.mrf.mxu0
      %v598 = vadd.f32 0.0, %v597
      %599 = vmatmul.f32.gmra.mxu0 %v492
      %v600 = vpop.f32.mrf.mxu0
      %v601 = vadd.f32 0.0, %v600
      %602 = vmatmul.f32.gmra.mxu0 %v493
      %v603 = vpop.f32.mrf.mxu0
      %v604 = vadd.f32 0.0, %v603
      %605 = vmatmul.f32.gmra.mxu0 %v494
      %v606 = vpop.f32.mrf.mxu0
      %v607 = vadd.f32 0.0, %v606
      %608 = vmatmul.f32.gmra.mxu0 %v495
      %v609 = vpop.f32.mrf.mxu0
      %v610 = vadd.f32 0.0, %v609
      %611 = vmatmul.f32.gmra.mxu0 %v496
      %v612 = vpop.f32.mrf.mxu0
      %v613 = vadd.f32 0.0, %v612
      %614 = vmatmul.f32.gmra.mxu0 %v497
      %v615 = vpop.f32.mrf.mxu0
      %v616 = vadd.f32 0.0, %v615
      %617 = vmatmul.f32.gmra.mxu0 %v498
      %v618 = vpop.f32.mrf.mxu0
      %v619 = vadd.f32 0.0, %v618
      %620 = vmatmul.f32.gmra.mxu0 %v499
      %v621 = vpop.f32.mrf.mxu0
      %v622 = vadd.f32 0.0, %v621
      %623 = vmatmul.f32.gmra.mxu0 %v500
      %v624 = vpop.f32.mrf.mxu0
      %v625 = vadd.f32 0.0, %v624
      %626 = vmatmul.f32.gmra.mxu0 %v501
      %v627 = vpop.f32.mrf.mxu0
      %v628 = vadd.f32 0.0, %v627
      %629 = vmatmul.f32.gmra.mxu0 %v502
      %v630 = vpop.f32.mrf.mxu0
      %v631 = vadd.f32 0.0, %v630
      %632 = vdwg.mxu0
      %633 = vmatpush.msra.mxu0 %v470
      %634 = vmatpush.msra.mxu0 %v469
      %635 = vmatpush.msra.mxu0 %v468
      %636 = vmatpush.msra.mxu0 %v467
      %637 = vmatpush.msra.mxu0 %v466
      %638 = vmatpush.msra.mxu0 %v465
      %639 = vmatpush.msra.mxu0 %v464
      %640 = vmatpush.msra.mxu0 %v463
      %641 = vmatpush.msra.mxu0 %v462
      %642 = vmatpush.msra.mxu0 %v461
      %643 = vmatpush.msra.mxu0 %v460
      %644 = vmatpush.msra.mxu0 %v459
      %645 = vmatpush.msra.mxu0 %v458
      %646 = vmatpush.msra.mxu0 %v457
      %647 = vmatpush.msra.mxu0 %v456
      %648 = vmatpush.msra.mxu0 %v455
      %649 = vmatmul.f32.gmra.mxu0 %v423
      %v650 = vpop.f32.mrf.mxu0
      %v651 = vadd.f32 %v538, %v650
      %652 = vmatmul.f32.gmra.mxu0 %v424
      %v653 = vpop.f32.mrf.mxu0
      %v654 = vadd.f32 %v541, %v653
      %655 = vmatmul.f32.gmra.mxu0 %v425
      %v656 = vpop.f32.mrf.mxu0
      %v657 = vadd.f32 %v544, %v656
      %658 = vmatmul.f32.gmra.mxu0 %v426
      %v659 = vpop.f32.mrf.mxu0
      %v660 = vadd.f32 %v547, %v659
      %661 = vmatmul.f32.gmra.mxu0 %v427
      %v662 = vpop.f32.mrf.mxu0
      %v663 = vadd.f32 %v550, %v662
      %664 = vmatmul.f32.gmra.mxu0 %v428
      %v665 = vpop.f32.mrf.mxu0
      %v666 = vadd.f32 %v553, %v665
      %667 = vmatmul.f32.gmra.mxu0 %v429
      %v668 = vpop.f32.mrf.mxu0
      %v669 = vadd.f32 %v556, %v668
      %670 = vmatmul.f32.gmra.mxu0 %v430
      %v671 = vpop.f32.mrf.mxu0
      %v672 = vadd.f32 %v559, %v671
      %673 = vmatmul.f32.gmra.mxu0 %v431
      %v674 = vpop.f32.mrf.mxu0
      %v675 = vadd.f32 %v562, %v674
      %676 = vmatmul.f32.gmra.mxu0 %v432
      %v677 = vpop.f32.mrf.mxu0
      %v678 = vadd.f32 %v565, %v677
      %679 = vmatmul.f32.gmra.mxu0 %v433
      %v680 = vpop.f32.mrf.mxu0
      %v681 = vadd.f32 %v568, %v680
      %682 = vmatmul.f32.gmra.mxu0 %v434
      %v683 = vpop.f32.mrf.mxu0
      %v684 = vadd.f32 %v571, %v683
      %685 = vmatmul.f32.gmra.mxu0 %v435
      %v686 = vpop.f32.mrf.mxu0
      %v687 = vadd.f32 %v574, %v686
      %688 = vmatmul.f32.gmra.mxu0 %v436
      %v689 = vpop.f32.mrf.mxu0
      %v690 = vadd.f32 %v577, %v689
      %691 = vmatmul.f32.gmra.mxu0 %v437
      %v692 = vpop.f32.mrf.mxu0
      %v693 = vadd.f32 %v580, %v692
      %694 = vmatmul.f32.gmra.mxu0 %v438
      %v695 = vpop.f32.mrf.mxu0
      %v696 = vadd.f32 %v583, %v695
      %697 = vmatmul.f32.gmra.mxu0 %v439
      %v698 = vpop.f32.mrf.mxu0
      %v699 = vadd.f32 %v586, %v698
      %700 = vmatmul.f32.gmra.mxu0 %v440
      %v701 = vpop.f32.mrf.mxu0
      %v702 = vadd.f32 %v589, %v701
      %703 = vmatmul.f32.gmra.mxu0 %v441
      %v704 = vpop.f32.mrf.mxu0
      %v705 = vadd.f32 %v592, %v704
      %706 = vmatmul.f32.gmra.mxu0 %v442
      %v707 = vpop.f32.mrf.mxu0
      %v708 = vadd.f32 %v595, %v707
      %709 = vmatmul.f32.gmra.mxu0 %v443
      %v710 = vpop.f32.mrf.mxu0
      %v711 = vadd.f32 %v598, %v710
      %712 = vmatmul.f32.gmra.mxu0 %v444
      %v713 = vpop.f32.mrf.mxu0
      %v714 = vadd.f32 %v601, %v713
      %715 = vmatmul.f32.gmra.mxu0 %v445
      %v716 = vpop.f32.mrf.mxu0
      %v717 = vadd.f32 %v604, %v716
      %718 = vmatmul.f32.gmra.mxu0 %v446
      %v719 = vpop.f32.mrf.mxu0
      %v720 = vadd.f32 %v607, %v719
      %721 = vmatmul.f32.gmra.mxu0 %v447
      %v722 = vpop.f32.mrf.mxu0
      %v723 = vadd.f32 %v610, %v722
      %724 = vmatmul.f32.gmra.mxu0 %v448
      %v725 = vpop.f32.mrf.mxu0
      %v726 = vadd.f32 %v613, %v725
      %727 = vmatmul.f32.gmra.mxu0 %v449
      %v728 = vpop.f32.mrf.mxu0
      %v729 = vadd.f32 %v616, %v728
      %730 = vmatmul.f32.gmra.mxu0 %v450
      %v731 = vpop.f32.mrf.mxu0
      %v732 = vadd.f32 %v619, %v731
      %733 = vmatmul.f32.gmra.mxu0 %v451
      %v734 = vpop.f32.mrf.mxu0
      %v735 = vadd.f32 %v622, %v734
      %736 = vmatmul.f32.gmra.mxu0 %v452
      %v737 = vpop.f32.mrf.mxu0
      %v738 = vadd.f32 %v625, %v737
      %739 = vmatmul.f32.gmra.mxu0 %v453
      %v740 = vpop.f32.mrf.mxu0
      %v741 = vadd.f32 %v628, %v740
      %742 = vmatmul.f32.gmra.mxu0 %v454
      %v743 = vpop.f32.mrf.mxu0
      %v744 = vadd.f32 %v631, %v743
      %745 = vdwg.mxu0
      %v746 = vld [vmem:[#allocation2 + $0x2] sm:$0xff]
      %v747 = vld [vmem:[#allocation2 + $0xa] sm:$0xff]
      %v748 = vld [vmem:[#allocation2 + $0x1a] sm:$0xff]
      %v749 = vld [vmem:[#allocation2 + $0x22] sm:$0xff]
      %v750 = vld [vmem:[#allocation2 + $0x32] sm:$0xff]
      %v751 = vld [vmem:[#allocation2 + $0x3a] sm:$0xff]
      %v752 = vld [vmem:[#allocation2 + $0x4a] sm:$0xff]
      %v753 = vld [vmem:[#allocation2 + $0x52] sm:$0xff]
      %v754 = vld [vmem:[#allocation2 + $0x62] sm:$0xff]
      %v755 = vld [vmem:[#allocation2 + $0x6a] sm:$0xff]
      %v756 = vld [vmem:[#allocation2 + $0x7a] sm:$0xff]
      %v757 = vld [vmem:[#allocation2 + $0x82] sm:$0xff]
      %v758 = vld [vmem:[#allocation2 + $0x92] sm:$0xff]
      %v759 = vld [vmem:[#allocation2 + $0x9a] sm:$0xff]
      %v760 = vld [vmem:[#allocation2 + $0xaa] sm:$0xff]
      %v761 = vld [vmem:[#allocation2 + $0xb2] sm:$0xff]
      %v762 = vld [vmem:[#allocation2 + $0xc2] sm:$0xff]
      %v763 = vld [vmem:[#allocation2 + $0xca] sm:$0xff]
      %v764 = vld [vmem:[#allocation2 + $0xda] sm:$0xff]
      %v765 = vld [vmem:[#allocation2 + $0xe2] sm:$0xff]
      %v766 = vld [vmem:[#allocation2 + $0xf2] sm:$0xff]
      %v767 = vld [vmem:[#allocation2 + $0xfa] sm:$0xff]
      %v768 = vld [vmem:[#allocation2 + $0x10a] sm:$0xff]
      %v769 = vld [vmem:[#allocation2 + $0x112] sm:$0xff]
      %v770 = vld [vmem:[#allocation2 + $0x122] sm:$0xff]
      %v771 = vld [vmem:[#allocation2 + $0x12a] sm:$0xff]
      %v772 = vld [vmem:[#allocation2 + $0x13a] sm:$0xff]
      %v773 = vld [vmem:[#allocation2 + $0x142] sm:$0xff]
      %v774 = vld [vmem:[#allocation2 + $0x152] sm:$0xff]
      %v775 = vld [vmem:[#allocation2 + $0x15a] sm:$0xff]
      %v776 = vld [vmem:[#allocation2 + $0x16a] sm:$0xff]
      %v777 = vld [vmem:[#allocation2 + $0x172] sm:$0xff]
      %s778 = scalar_lea.vmem %s1, 256
      %v779 = vld [vmem:[%s778] sm:$0xff]
      %v780 = vld [vmem:[%s778 + $0x8] sm:$0xff]
      %v781 = vld [vmem:[%s778 + $0x10] sm:$0xff]
      %v782 = vld [vmem:[%s778 + $0x18] sm:$0xff]
      %v783 = vld [vmem:[%s778 + $0x20] sm:$0xff]
      %v784 = vld [vmem:[%s778 + $0x28] sm:$0xff]
      %v785 = vld [vmem:[%s778 + $0x30] sm:$0xff]
      %v786 = vld [vmem:[%s778 + $0x38] sm:$0xff]
      %v787 = vld [vmem:[%s778 + $0x40] sm:$0xff]
      %v788 = vld [vmem:[%s778 + $0x48] sm:$0xff]
      %v789 = vld [vmem:[%s778 + $0x50] sm:$0xff]
      %v790 = vld [vmem:[%s778 + $0x58] sm:$0xff]
      %v791 = vld [vmem:[%s778 + $0x60] sm:$0xff]
      %v792 = vld [vmem:[%s778 + $0x68] sm:$0xff]
      %v793 = vld [vmem:[%s778 + $0x70] sm:$0xff]
      %v794 = vld [vmem:[%s778 + $0x78] sm:$0xff]
      %795 = vmatpush.msra.mxu0 %v794
      %796 = vmatpush.msra.mxu0 %v793
      %797 = vmatpush.msra.mxu0 %v792
      %798 = vmatpush.msra.mxu0 %v791
      %799 = vmatpush.msra.mxu0 %v790
      %800 = vmatpush.msra.mxu0 %v789
      %801 = vmatpush.msra.mxu0 %v788
      %802 = vmatpush.msra.mxu0 %v787
      %803 = vmatpush.msra.mxu0 %v786
      %804 = vmatpush.msra.mxu0 %v785
      %805 = vmatpush.msra.mxu0 %v784
      %806 = vmatpush.msra.mxu0 %v783
      %807 = vmatpush.msra.mxu0 %v782
      %808 = vmatpush.msra.mxu0 %v781
      %809 = vmatpush.msra.mxu0 %v780
      %810 = vmatpush.msra.mxu0 %v779
      %811 = vmatmul.f32.gmra.mxu0 %v746
      %v812 = vpop.f32.mrf.mxu0
      %v813 = vadd.f32 0.0, %v812
      %814 = vmatmul.f32.gmra.mxu0 %v747
      %v815 = vpop.f32.mrf.mxu0
      %v816 = vadd.f32 0.0, %v815
      %817 = vmatmul.f32.gmra.mxu0 %v748
      %v818 = vpop.f32.mrf.mxu0
      %v819 = vadd.f32 0.0, %v818
      %820 = vmatmul.f32.gmra.mxu0 %v749
      %v821 = vpop.f32.mrf.mxu0
      %v822 = vadd.f32 0.0, %v821
      %823 = vmatmul.f32.gmra.mxu0 %v750
      %v824 = vpop.f32.mrf.mxu0
      %v825 = vadd.f32 0.0, %v824
      %826 = vmatmul.f32.gmra.mxu0 %v751
      %v827 = vpop.f32.mrf.mxu0
      %v828 = vadd.f32 0.0, %v827
      %829 = vmatmul.f32.gmra.mxu0 %v752
      %v830 = vpop.f32.mrf.mxu0
      %v831 = vadd.f32 0.0, %v830
      %832 = vmatmul.f32.gmra.mxu0 %v753
      %v833 = vpop.f32.mrf.mxu0
      %v834 = vadd.f32 0.0, %v833
      %835 = vmatmul.f32.gmra.mxu0 %v754
      %v836 = vpop.f32.mrf.mxu0
      %v837 = vadd.f32 0.0, %v836
      %838 = vmatmul.f32.gmra.mxu0 %v755
      %v839 = vpop.f32.mrf.mxu0
      %v840 = vadd.f32 0.0, %v839
      %841 = vmatmul.f32.gmra.mxu0 %v756
      %v842 = vpop.f32.mrf.mxu0
      %v843 = vadd.f32 0.0, %v842
      %844 = vmatmul.f32.gmra.mxu0 %v757
      %v845 = vpop.f32.mrf.mxu0
      %v846 = vadd.f32 0.0, %v845
      %847 = vmatmul.f32.gmra.mxu0 %v758
      %v848 = vpop.f32.mrf.mxu0
      %v849 = vadd.f32 0.0, %v848
      %850 = vmatmul.f32.gmra.mxu0 %v759
      %v851 = vpop.f32.mrf.mxu0
      %v852 = vadd.f32 0.0, %v851
      %853 = vmatmul.f32.gmra.mxu0 %v760
      %v854 = vpop.f32.mrf.mxu0
      %v855 = vadd.f32 0.0, %v854
      %856 = vmatmul.f32.gmra.mxu0 %v761
      %v857 = vpop.f32.mrf.mxu0
      %v858 = vadd.f32 0.0, %v857
      %859 = vmatmul.f32.gmra.mxu0 %v762
      %v860 = vpop.f32.mrf.mxu0
      %v861 = vadd.f32 0.0, %v860
      %862 = vmatmul.f32.gmra.mxu0 %v763
      %v863 = vpop.f32.mrf.mxu0
      %v864 = vadd.f32 0.0, %v863
      %865 = vmatmul.f32.gmra.mxu0 %v764
      %v866 = vpop.f32.mrf.mxu0
      %v867 = vadd.f32 0.0, %v866
      %868 = vmatmul.f32.gmra.mxu0 %v765
      %v869 = vpop.f32.mrf.mxu0
      %v870 = vadd.f32 0.0, %v869
      %871 = vmatmul.f32.gmra.mxu0 %v766
      %v872 = vpop.f32.mrf.mxu0
      %v873 = vadd.f32 0.0, %v872
      %874 = vmatmul.f32.gmra.mxu0 %v767
      %v875 = vpop.f32.mrf.mxu0
      %v876 = vadd.f32 0.0, %v875
      %877 = vmatmul.f32.gmra.mxu0 %v768
      %v878 = vpop.f32.mrf.mxu0
      %v879 = vadd.f32 0.0, %v878
      %880 = vmatmul.f32.gmra.mxu0 %v769
      %v881 = vpop.f32.mrf.mxu0
      %v882 = vadd.f32 0.0, %v881
      %883 = vmatmul.f32.gmra.mxu0 %v770
      %v884 = vpop.f32.mrf.mxu0
      %v885 = vadd.f32 0.0, %v884
      %886 = vmatmul.f32.gmra.mxu0 %v771
      %v887 = vpop.f32.mrf.mxu0
      %v888 = vadd.f32 0.0, %v887
      %889 = vmatmul.f32.gmra.mxu0 %v772
      %v890 = vpop.f32.mrf.mxu0
      %v891 = vadd.f32 0.0, %v890
      %892 = vmatmul.f32.gmra.mxu0 %v773
      %v893 = vpop.f32.mrf.mxu0
      %v894 = vadd.f32 0.0, %v893
      %895 = vmatmul.f32.gmra.mxu0 %v774
      %v896 = vpop.f32.mrf.mxu0
      %v897 = vadd.f32 0.0, %v896
      %898 = vmatmul.f32.gmra.mxu0 %v775
      %v899 = vpop.f32.mrf.mxu0
      %v900 = vadd.f32 0.0, %v899
      %901 = vmatmul.f32.gmra.mxu0 %v776
      %v902 = vpop.f32.mrf.mxu0
      %v903 = vadd.f32 0.0, %v902
      %904 = vmatmul.f32.gmra.mxu0 %v777
      %v905 = vpop.f32.mrf.mxu0
      %v906 = vadd.f32 0.0, %v905
      %907 = vdwg.mxu0
      %v908 = vadd.f32 %v651, %v813
      %v909 = vadd.f32 %v654, %v816
      %v910 = vadd.f32 %v657, %v819
      %v911 = vadd.f32 %v660, %v822
      %v912 = vadd.f32 %v663, %v825
      %v913 = vadd.f32 %v666, %v828
      %v914 = vadd.f32 %v669, %v831
      %v915 = vadd.f32 %v672, %v834
      %v916 = vadd.f32 %v675, %v837
      %v917 = vadd.f32 %v678, %v840
      %v918 = vadd.f32 %v681, %v843
      %v919 = vadd.f32 %v684, %v846
      %v920 = vadd.f32 %v687, %v849
      %v921 = vadd.f32 %v690, %v852
      %v922 = vadd.f32 %v693, %v855
      %v923 = vadd.f32 %v696, %v858
      %v924 = vadd.f32 %v699, %v861
      %v925 = vadd.f32 %v702, %v864
      %v926 = vadd.f32 %v705, %v867
      %v927 = vadd.f32 %v708, %v870
      %v928 = vadd.f32 %v711, %v873
      %v929 = vadd.f32 %v714, %v876
      %v930 = vadd.f32 %v717, %v879
      %v931 = vadd.f32 %v720, %v882
      %v932 = vadd.f32 %v723, %v885
      %v933 = vadd.f32 %v726, %v888
      %v934 = vadd.f32 %v729, %v891
      %v935 = vadd.f32 %v732, %v894
      %v936 = vadd.f32 %v735, %v897
      %v937 = vadd.f32 %v738, %v900
      %v938 = vadd.f32 %v741, %v903
      %v939 = vadd.f32 %v744, %v906
      %v940 = vld [vmem:[%s286] sm:$0xff]
      %v941 = vld [vmem:[%s286 + $0x8] sm:$0xff]
      %v942 = vld [vmem:[%s286 + $0x18] sm:$0xff]
      %v943 = vld [vmem:[%s286 + $0x20] sm:$0xff]
      %v944 = vld [vmem:[%s286 + $0x30] sm:$0xff]
      %v945 = vld [vmem:[%s286 + $0x38] sm:$0xff]
      %v946 = vld [vmem:[%s286 + $0x48] sm:$0xff]
      %v947 = vld [vmem:[%s286 + $0x50] sm:$0xff]
      %v948 = vld [vmem:[%s286 + $0x60] sm:$0xff]
      %v949 = vld [vmem:[%s286 + $0x68] sm:$0xff]
      %v950 = vld [vmem:[%s286 + $0x78] sm:$0xff]
      %v951 = vld [vmem:[%s286 + $0x80] sm:$0xff]
      %v952 = vld [vmem:[%s286 + $0x90] sm:$0xff]
      %v953 = vld [vmem:[%s286 + $0x98] sm:$0xff]
      %v954 = vld [vmem:[%s286 + $0xa8] sm:$0xff]
      %v955 = vld [vmem:[%s286 + $0xb0] sm:$0xff]
      %v956 = vld [vmem:[%s286 + $0xc0] sm:$0xff]
      %v957 = vld [vmem:[%s286 + $0xc8] sm:$0xff]
      %v958 = vld [vmem:[%s286 + $0xd8] sm:$0xff]
      %v959 = vld [vmem:[%s286 + $0xe0] sm:$0xff]
      %v960 = vld [vmem:[%s286 + $0xf0] sm:$0xff]
      %v961 = vld [vmem:[%s286 + $0xf8] sm:$0xff]
      %v962 = vld [vmem:[%s286 + $0x108] sm:$0xff]
      %v963 = vld [vmem:[%s286 + $0x110] sm:$0xff]
      %v964 = vld [vmem:[%s286 + $0x120] sm:$0xff]
      %v965 = vld [vmem:[%s286 + $0x128] sm:$0xff]
      %v966 = vld [vmem:[%s286 + $0x138] sm:$0xff]
      %v967 = vld [vmem:[%s286 + $0x140] sm:$0xff]
      %v968 = vld [vmem:[%s286 + $0x150] sm:$0xff]
      %v969 = vld [vmem:[%s286 + $0x158] sm:$0xff]
      %v970 = vld [vmem:[%s286 + $0x168] sm:$0xff]
      %v971 = vld [vmem:[%s286 + $0x170] sm:$0xff]
      %s972 = scalar_lea.vmem %s1, 384
      %v973 = vld [vmem:[%s972] sm:$0xff]
      %v974 = vld [vmem:[%s972 + $0x8] sm:$0xff]
      %v975 = vld [vmem:[%s972 + $0x10] sm:$0xff]
      %v976 = vld [vmem:[%s972 + $0x18] sm:$0xff]
      %v977 = vld [vmem:[%s972 + $0x20] sm:$0xff]
      %v978 = vld [vmem:[%s972 + $0x28] sm:$0xff]
      %v979 = vld [vmem:[%s972 + $0x30] sm:$0xff]
      %v980 = vld [vmem:[%s972 + $0x38] sm:$0xff]
      %v981 = vld [vmem:[%s972 + $0x40] sm:$0xff]
      %v982 = vld [vmem:[%s972 + $0x48] sm:$0xff]
      %v983 = vld [vmem:[%s972 + $0x50] sm:$0xff]
      %v984 = vld [vmem:[%s972 + $0x58] sm:$0xff]
      %v985 = vld [vmem:[%s972 + $0x60] sm:$0xff]
      %v986 = vld [vmem:[%s972 + $0x68] sm:$0xff]
      %v987 = vld [vmem:[%s972 + $0x70] sm:$0xff]
      %v988 = vld [vmem:[%s972 + $0x78] sm:$0xff]
      %989 = vmatpush.msra.mxu0 %v988
      %990 = vmatpush.msra.mxu0 %v987
      %991 = vmatpush.msra.mxu0 %v986
      %992 = vmatpush.msra.mxu0 %v985
      %993 = vmatpush.msra.mxu0 %v984
      %994 = vmatpush.msra.mxu0 %v983
      %995 = vmatpush.msra.mxu0 %v982
      %996 = vmatpush.msra.mxu0 %v981
      %997 = vmatpush.msra.mxu0 %v980
      %998 = vmatpush.msra.mxu0 %v979
      %999 = vmatpush.msra.mxu0 %v978
      %1000 = vmatpush.msra.mxu0 %v977
      %1001 = vmatpush.msra.mxu0 %v976
      %1002 = vmatpush.msra.mxu0 %v975
      %1003 = vmatpush.msra.mxu0 %v974
      %1004 = vmatpush.msra.mxu0 %v973
      %1005 = vmatmul.f32.gmra.mxu0 %v940
      %v1006 = vpop.f32.mrf.mxu0
      %v1007 = vadd.f32 0.0, %v1006
      %1008 = vmatmul.f32.gmra.mxu0 %v941
      %v1009 = vpop.f32.mrf.mxu0
      %v1010 = vadd.f32 0.0, %v1009
      %1011 = vmatmul.f32.gmra.mxu0 %v942
      %v1012 = vpop.f32.mrf.mxu0
      %v1013 = vadd.f32 0.0, %v1012
      %1014 = vmatmul.f32.gmra.mxu0 %v943
      %v1015 = vpop.f32.mrf.mxu0
      %v1016 = vadd.f32 0.0, %v1015
      %1017 = vmatmul.f32.gmra.mxu0 %v944
      %v1018 = vpop.f32.mrf.mxu0
      %v1019 = vadd.f32 0.0, %v1018
      %1020 = vmatmul.f32.gmra.mxu0 %v945
      %v1021 = vpop.f32.mrf.mxu0
      %v1022 = vadd.f32 0.0, %v1021
      %1023 = vmatmul.f32.gmra.mxu0 %v946
      %v1024 = vpop.f32.mrf.mxu0
      %v1025 = vadd.f32 0.0, %v1024
      %1026 = vmatmul.f32.gmra.mxu0 %v947
      %v1027 = vpop.f32.mrf.mxu0
      %v1028 = vadd.f32 0.0, %v1027
      %1029 = vmatmul.f32.gmra.mxu0 %v948
      %v1030 = vpop.f32.mrf.mxu0
      %v1031 = vadd.f32 0.0, %v1030
      %1032 = vmatmul.f32.gmra.mxu0 %v949
      %v1033 = vpop.f32.mrf.mxu0
      %v1034 = vadd.f32 0.0, %v1033
      %1035 = vmatmul.f32.gmra.mxu0 %v950
      %v1036 = vpop.f32.mrf.mxu0
      %v1037 = vadd.f32 0.0, %v1036
      %1038 = vmatmul.f32.gmra.mxu0 %v951
      %v1039 = vpop.f32.mrf.mxu0
      %v1040 = vadd.f32 0.0, %v1039
      %1041 = vmatmul.f32.gmra.mxu0 %v952
      %v1042 = vpop.f32.mrf.mxu0
      %v1043 = vadd.f32 0.0, %v1042
      %1044 = vmatmul.f32.gmra.mxu0 %v953
      %v1045 = vpop.f32.mrf.mxu0
      %v1046 = vadd.f32 0.0, %v1045
      %1047 = vmatmul.f32.gmra.mxu0 %v954
      %v1048 = vpop.f32.mrf.mxu0
      %v1049 = vadd.f32 0.0, %v1048
      %1050 = vmatmul.f32.gmra.mxu0 %v955
      %v1051 = vpop.f32.mrf.mxu0
      %v1052 = vadd.f32 0.0, %v1051
      %1053 = vmatmul.f32.gmra.mxu0 %v956
      %v1054 = vpop.f32.mrf.mxu0
      %v1055 = vadd.f32 0.0, %v1054
      %1056 = vmatmul.f32.gmra.mxu0 %v957
      %v1057 = vpop.f32.mrf.mxu0
      %v1058 = vadd.f32 0.0, %v1057
      %1059 = vmatmul.f32.gmra.mxu0 %v958
      %v1060 = vpop.f32.mrf.mxu0
      %v1061 = vadd.f32 0.0, %v1060
      %1062 = vmatmul.f32.gmra.mxu0 %v959
      %v1063 = vpop.f32.mrf.mxu0
      %v1064 = vadd.f32 0.0, %v1063
      %1065 = vmatmul.f32.gmra.mxu0 %v960
      %v1066 = vpop.f32.mrf.mxu0
      %v1067 = vadd.f32 0.0, %v1066
      %1068 = vmatmul.f32.gmra.mxu0 %v961
      %v1069 = vpop.f32.mrf.mxu0
      %v1070 = vadd.f32 0.0, %v1069
      %1071 = vmatmul.f32.gmra.mxu0 %v962
      %v1072 = vpop.f32.mrf.mxu0
      %v1073 = vadd.f32 0.0, %v1072
      %1074 = vmatmul.f32.gmra.mxu0 %v963
      %v1075 = vpop.f32.mrf.mxu0
      %v1076 = vadd.f32 0.0, %v1075
      %1077 = vmatmul.f32.gmra.mxu0 %v964
      %v1078 = vpop.f32.mrf.mxu0
      %v1079 = vadd.f32 0.0, %v1078
      %1080 = vmatmul.f32.gmra.mxu0 %v965
      %v1081 = vpop.f32.mrf.mxu0
      %v1082 = vadd.f32 0.0, %v1081
      %1083 = vmatmul.f32.gmra.mxu0 %v966
      %v1084 = vpop.f32.mrf.mxu0
      %v1085 = vadd.f32 0.0, %v1084
      %1086 = vmatmul.f32.gmra.mxu0 %v967
      %v1087 = vpop.f32.mrf.mxu0
      %v1088 = vadd.f32 0.0, %v1087
      %1089 = vmatmul.f32.gmra.mxu0 %v968
      %v1090 = vpop.f32.mrf.mxu0
      %v1091 = vadd.f32 0.0, %v1090
      %1092 = vmatmul.f32.gmra.mxu0 %v969
      %v1093 = vpop.f32.mrf.mxu0
      %v1094 = vadd.f32 0.0, %v1093
      %1095 = vmatmul.f32.gmra.mxu0 %v970
      %v1096 = vpop.f32.mrf.mxu0
      %v1097 = vadd.f32 0.0, %v1096
      %1098 = vmatmul.f32.gmra.mxu0 %v971
      %v1099 = vpop.f32.mrf.mxu0
      %v1100 = vadd.f32 0.0, %v1099
      %1101 = vdwg.mxu0
      %v1102 = vadd.f32 %v908, %v1007
      %v1103 = vadd.f32 %v909, %v1010
      %v1104 = vadd.f32 %v910, %v1013
      %v1105 = vadd.f32 %v911, %v1016
      %v1106 = vadd.f32 %v912, %v1019
      %v1107 = vadd.f32 %v913, %v1022
      %v1108 = vadd.f32 %v914, %v1025
      %v1109 = vadd.f32 %v915, %v1028
      %v1110 = vadd.f32 %v916, %v1031
      %v1111 = vadd.f32 %v917, %v1034
      %v1112 = vadd.f32 %v918, %v1037
      %v1113 = vadd.f32 %v919, %v1040
      %v1114 = vadd.f32 %v920, %v1043
      %v1115 = vadd.f32 %v921, %v1046
      %v1116 = vadd.f32 %v922, %v1049
      %v1117 = vadd.f32 %v923, %v1052
      %v1118 = vadd.f32 %v924, %v1055
      %v1119 = vadd.f32 %v925, %v1058
      %v1120 = vadd.f32 %v926, %v1061
      %v1121 = vadd.f32 %v927, %v1064
      %v1122 = vadd.f32 %v928, %v1067
      %v1123 = vadd.f32 %v929, %v1070
      %v1124 = vadd.f32 %v930, %v1073
      %v1125 = vadd.f32 %v931, %v1076
      %v1126 = vadd.f32 %v932, %v1079
      %v1127 = vadd.f32 %v933, %v1082
      %v1128 = vadd.f32 %v934, %v1085
      %v1129 = vadd.f32 %v935, %v1088
      %v1130 = vadd.f32 %v936, %v1091
      %v1131 = vadd.f32 %v937, %v1094
      %v1132 = vadd.f32 %v938, %v1097
      %v1133 = vadd.f32 %v939, %v1100
      %v1134 = vld [vmem:[%s286 + $0x1] sm:$0xff]
      %v1135 = vld [vmem:[%s286 + $0x9] sm:$0xff]
      %v1136 = vld [vmem:[%s286 + $0x19] sm:$0xff]
      %v1137 = vld [vmem:[%s286 + $0x21] sm:$0xff]
      %v1138 = vld [vmem:[%s286 + $0x31] sm:$0xff]
      %v1139 = vld [vmem:[%s286 + $0x39] sm:$0xff]
      %v1140 = vld [vmem:[%s286 + $0x49] sm:$0xff]
      %v1141 = vld [vmem:[%s286 + $0x51] sm:$0xff]
      %v1142 = vld [vmem:[%s286 + $0x61] sm:$0xff]
      %v1143 = vld [vmem:[%s286 + $0x69] sm:$0xff]
      %v1144 = vld [vmem:[%s286 + $0x79] sm:$0xff]
      %v1145 = vld [vmem:[%s286 + $0x81] sm:$0xff]
      %v1146 = vld [vmem:[%s286 + $0x91] sm:$0xff]
      %v1147 = vld [vmem:[%s286 + $0x99] sm:$0xff]
      %v1148 = vld [vmem:[%s286 + $0xa9] sm:$0xff]
      %v1149 = vld [vmem:[%s286 + $0xb1] sm:$0xff]
      %v1150 = vld [vmem:[%s286 + $0xc1] sm:$0xff]
      %v1151 = vld [vmem:[%s286 + $0xc9] sm:$0xff]
      %v1152 = vld [vmem:[%s286 + $0xd9] sm:$0xff]
      %v1153 = vld [vmem:[%s286 + $0xe1] sm:$0xff]
      %v1154 = vld [vmem:[%s286 + $0xf1] sm:$0xff]
      %v1155 = vld [vmem:[%s286 + $0xf9] sm:$0xff]
      %v1156 = vld [vmem:[%s286 + $0x109] sm:$0xff]
      %v1157 = vld [vmem:[%s286 + $0x111] sm:$0xff]
      %v1158 = vld [vmem:[%s286 + $0x121] sm:$0xff]
      %v1159 = vld [vmem:[%s286 + $0x129] sm:$0xff]
      %v1160 = vld [vmem:[%s286 + $0x139] sm:$0xff]
      %v1161 = vld [vmem:[%s286 + $0x141] sm:$0xff]
      %v1162 = vld [vmem:[%s286 + $0x151] sm:$0xff]
      %v1163 = vld [vmem:[%s286 + $0x159] sm:$0xff]
      %v1164 = vld [vmem:[%s286 + $0x169] sm:$0xff]
      %v1165 = vld [vmem:[%s286 + $0x171] sm:$0xff]
      %s1166 = scalar_lea.vmem %s1, 512
      %v1167 = vld [vmem:[%s1166] sm:$0xff]
      %v1168 = vld [vmem:[%s1166 + $0x8] sm:$0xff]
      %v1169 = vld [vmem:[%s1166 + $0x10] sm:$0xff]
      %v1170 = vld [vmem:[%s1166 + $0x18] sm:$0xff]
      %v1171 = vld [vmem:[%s1166 + $0x20] sm:$0xff]
      %v1172 = vld [vmem:[%s1166 + $0x28] sm:$0xff]
      %v1173 = vld [vmem:[%s1166 + $0x30] sm:$0xff]
      %v1174 = vld [vmem:[%s1166 + $0x38] sm:$0xff]
      %v1175 = vld [vmem:[%s1166 + $0x40] sm:$0xff]
      %v1176 = vld [vmem:[%s1166 + $0x48] sm:$0xff]
      %v1177 = vld [vmem:[%s1166 + $0x50] sm:$0xff]
      %v1178 = vld [vmem:[%s1166 + $0x58] sm:$0xff]
      %v1179 = vld [vmem:[%s1166 + $0x60] sm:$0xff]
      %v1180 = vld [vmem:[%s1166 + $0x68] sm:$0xff]
      %v1181 = vld [vmem:[%s1166 + $0x70] sm:$0xff]
      %v1182 = vld [vmem:[%s1166 + $0x78] sm:$0xff]
      %1183 = vmatpush.msra.mxu0 %v1182
      %1184 = vmatpush.msra.mxu0 %v1181
      %1185 = vmatpush.msra.mxu0 %v1180
      %1186 = vmatpush.msra.mxu0 %v1179
      %1187 = vmatpush.msra.mxu0 %v1178
      %1188 = vmatpush.msra.mxu0 %v1177
      %1189 = vmatpush.msra.mxu0 %v1176
      %1190 = vmatpush.msra.mxu0 %v1175
      %1191 = vmatpush.msra.mxu0 %v1174
      %1192 = vmatpush.msra.mxu0 %v1173
      %1193 = vmatpush.msra.mxu0 %v1172
      %1194 = vmatpush.msra.mxu0 %v1171
      %1195 = vmatpush.msra.mxu0 %v1170
      %1196 = vmatpush.msra.mxu0 %v1169
      %1197 = vmatpush.msra.mxu0 %v1168
      %1198 = vmatpush.msra.mxu0 %v1167
      %1199 = vmatmul.f32.gmra.mxu0 %v1134
      %v1200 = vpop.f32.mrf.mxu0
      %v1201 = vadd.f32 0.0, %v1200
      %1202 = vmatmul.f32.gmra.mxu0 %v1135
      %v1203 = vpop.f32.mrf.mxu0
      %v1204 = vadd.f32 0.0, %v1203
      %1205 = vmatmul.f32.gmra.mxu0 %v1136
      %v1206 = vpop.f32.mrf.mxu0
      %v1207 = vadd.f32 0.0, %v1206
      %1208 = vmatmul.f32.gmra.mxu0 %v1137
      %v1209 = vpop.f32.mrf.mxu0
      %v1210 = vadd.f32 0.0, %v1209
      %1211 = vmatmul.f32.gmra.mxu0 %v1138
      %v1212 = vpop.f32.mrf.mxu0
      %v1213 = vadd.f32 0.0, %v1212
      %1214 = vmatmul.f32.gmra.mxu0 %v1139
      %v1215 = vpop.f32.mrf.mxu0
      %v1216 = vadd.f32 0.0, %v1215
      %1217 = vmatmul.f32.gmra.mxu0 %v1140
      %v1218 = vpop.f32.mrf.mxu0
      %v1219 = vadd.f32 0.0, %v1218
      %1220 = vmatmul.f32.gmra.mxu0 %v1141
      %v1221 = vpop.f32.mrf.mxu0
      %v1222 = vadd.f32 0.0, %v1221
      %1223 = vmatmul.f32.gmra.mxu0 %v1142
      %v1224 = vpop.f32.mrf.mxu0
      %v1225 = vadd.f32 0.0, %v1224
      %1226 = vmatmul.f32.gmra.mxu0 %v1143
      %v1227 = vpop.f32.mrf.mxu0
      %v1228 = vadd.f32 0.0, %v1227
      %1229 = vmatmul.f32.gmra.mxu0 %v1144
      %v1230 = vpop.f32.mrf.mxu0
      %v1231 = vadd.f32 0.0, %v1230
      %1232 = vmatmul.f32.gmra.mxu0 %v1145
      %v1233 = vpop.f32.mrf.mxu0
      %v1234 = vadd.f32 0.0, %v1233
      %1235 = vmatmul.f32.gmra.mxu0 %v1146
      %v1236 = vpop.f32.mrf.mxu0
      %v1237 = vadd.f32 0.0, %v1236
      %1238 = vmatmul.f32.gmra.mxu0 %v1147
      %v1239 = vpop.f32.mrf.mxu0
      %v1240 = vadd.f32 0.0, %v1239
      %1241 = vmatmul.f32.gmra.mxu0 %v1148
      %v1242 = vpop.f32.mrf.mxu0
      %v1243 = vadd.f32 0.0, %v1242
      %1244 = vmatmul.f32.gmra.mxu0 %v1149
      %v1245 = vpop.f32.mrf.mxu0
      %v1246 = vadd.f32 0.0, %v1245
      %1247 = vmatmul.f32.gmra.mxu0 %v1150
      %v1248 = vpop.f32.mrf.mxu0
      %v1249 = vadd.f32 0.0, %v1248
      %1250 = vmatmul.f32.gmra.mxu0 %v1151
      %v1251 = vpop.f32.mrf.mxu0
      %v1252 = vadd.f32 0.0, %v1251
      %1253 = vmatmul.f32.gmra.mxu0 %v1152
      %v1254 = vpop.f32.mrf.mxu0
      %v1255 = vadd.f32 0.0, %v1254
      %1256 = vmatmul.f32.gmra.mxu0 %v1153
      %v1257 = vpop.f32.mrf.mxu0
      %v1258 = vadd.f32 0.0, %v1257
      %1259 = vmatmul.f32.gmra.mxu0 %v1154
      %v1260 = vpop.f32.mrf.mxu0
      %v1261 = vadd.f32 0.0, %v1260
      %1262 = vmatmul.f32.gmra.mxu0 %v1155
      %v1263 = vpop.f32.mrf.mxu0
      %v1264 = vadd.f32 0.0, %v1263
      %1265 = vmatmul.f32.gmra.mxu0 %v1156
      %v1266 = vpop.f32.mrf.mxu0
      %v1267 = vadd.f32 0.0, %v1266
      %1268 = vmatmul.f32.gmra.mxu0 %v1157
      %v1269 = vpop.f32.mrf.mxu0
      %v1270 = vadd.f32 0.0, %v1269
      %1271 = vmatmul.f32.gmra.mxu0 %v1158
      %v1272 = vpop.f32.mrf.mxu0
      %v1273 = vadd.f32 0.0, %v1272
      %1274 = vmatmul.f32.gmra.mxu0 %v1159
      %v1275 = vpop.f32.mrf.mxu0
      %v1276 = vadd.f32 0.0, %v1275
      %1277 = vmatmul.f32.gmra.mxu0 %v1160
      %v1278 = vpop.f32.mrf.mxu0
      %v1279 = vadd.f32 0.0, %v1278
      %1280 = vmatmul.f32.gmra.mxu0 %v1161
      %v1281 = vpop.f32.mrf.mxu0
      %v1282 = vadd.f32 0.0, %v1281
      %1283 = vmatmul.f32.gmra.mxu0 %v1162
      %v1284 = vpop.f32.mrf.mxu0
      %v1285 = vadd.f32 0.0, %v1284
      %1286 = vmatmul.f32.gmra.mxu0 %v1163
      %v1287 = vpop.f32.mrf.mxu0
      %v1288 = vadd.f32 0.0, %v1287
      %1289 = vmatmul.f32.gmra.mxu0 %v1164
      %v1290 = vpop.f32.mrf.mxu0
      %v1291 = vadd.f32 0.0, %v1290
      %1292 = vmatmul.f32.gmra.mxu0 %v1165
      %v1293 = vpop.f32.mrf.mxu0
      %v1294 = vadd.f32 0.0, %v1293
      %1295 = vdwg.mxu0
      %v1296 = vadd.f32 %v1102, %v1201
      %v1297 = vadd.f32 %v1103, %v1204
      %v1298 = vadd.f32 %v1104, %v1207
      %v1299 = vadd.f32 %v1105, %v1210
      %v1300 = vadd.f32 %v1106, %v1213
      %v1301 = vadd.f32 %v1107, %v1216
      %v1302 = vadd.f32 %v1108, %v1219
      %v1303 = vadd.f32 %v1109, %v1222
      %v1304 = vadd.f32 %v1110, %v1225
      %v1305 = vadd.f32 %v1111, %v1228
      %v1306 = vadd.f32 %v1112, %v1231
      %v1307 = vadd.f32 %v1113, %v1234
      %v1308 = vadd.f32 %v1114, %v1237
      %v1309 = vadd.f32 %v1115, %v1240
      %v1310 = vadd.f32 %v1116, %v1243
      %v1311 = vadd.f32 %v1117, %v1246
      %v1312 = vadd.f32 %v1118, %v1249
      %v1313 = vadd.f32 %v1119, %v1252
      %v1314 = vadd.f32 %v1120, %v1255
      %v1315 = vadd.f32 %v1121, %v1258
      %v1316 = vadd.f32 %v1122, %v1261
      %v1317 = vadd.f32 %v1123, %v1264
      %v1318 = vadd.f32 %v1124, %v1267
      %v1319 = vadd.f32 %v1125, %v1270
      %v1320 = vadd.f32 %v1126, %v1273
      %v1321 = vadd.f32 %v1127, %v1276
      %v1322 = vadd.f32 %v1128, %v1279
      %v1323 = vadd.f32 %v1129, %v1282
      %v1324 = vadd.f32 %v1130, %v1285
      %v1325 = vadd.f32 %v1131, %v1288
      %v1326 = vadd.f32 %v1132, %v1291
      %v1327 = vadd.f32 %v1133, %v1294
      %v1328 = vld [vmem:[%s286 + $0x2] sm:$0xff]
      %v1329 = vld [vmem:[%s286 + $0xa] sm:$0xff]
      %v1330 = vld [vmem:[%s286 + $0x1a] sm:$0xff]
      %v1331 = vld [vmem:[%s286 + $0x22] sm:$0xff]
      %v1332 = vld [vmem:[%s286 + $0x32] sm:$0xff]
      %v1333 = vld [vmem:[%s286 + $0x3a] sm:$0xff]
      %v1334 = vld [vmem:[%s286 + $0x4a] sm:$0xff]
      %v1335 = vld [vmem:[%s286 + $0x52] sm:$0xff]
      %v1336 = vld [vmem:[%s286 + $0x62] sm:$0xff]
      %v1337 = vld [vmem:[%s286 + $0x6a] sm:$0xff]
      %v1338 = vld [vmem:[%s286 + $0x7a] sm:$0xff]
      %v1339 = vld [vmem:[%s286 + $0x82] sm:$0xff]
      %v1340 = vld [vmem:[%s286 + $0x92] sm:$0xff]
      %v1341 = vld [vmem:[%s286 + $0x9a] sm:$0xff]
      %v1342 = vld [vmem:[%s286 + $0xaa] sm:$0xff]
      %v1343 = vld [vmem:[%s286 + $0xb2] sm:$0xff]
      %v1344 = vld [vmem:[%s286 + $0xc2] sm:$0xff]
      %v1345 = vld [vmem:[%s286 + $0xca] sm:$0xff]
      %v1346 = vld [vmem:[%s286 + $0xda] sm:$0xff]
      %v1347 = vld [vmem:[%s286 + $0xe2] sm:$0xff]
      %v1348 = vld [vmem:[%s286 + $0xf2] sm:$0xff]
      %v1349 = vld [vmem:[%s286 + $0xfa] sm:$0xff]
      %v1350 = vld [vmem:[%s286 + $0x10a] sm:$0xff]
      %v1351 = vld [vmem:[%s286 + $0x112] sm:$0xff]
      %v1352 = vld [vmem:[%s286 + $0x122] sm:$0xff]
      %v1353 = vld [vmem:[%s286 + $0x12a] sm:$0xff]
      %v1354 = vld [vmem:[%s286 + $0x13a] sm:$0xff]
      %v1355 = vld [vmem:[%s286 + $0x142] sm:$0xff]
      %v1356 = vld [vmem:[%s286 + $0x152] sm:$0xff]
      %v1357 = vld [vmem:[%s286 + $0x15a] sm:$0xff]
      %v1358 = vld [vmem:[%s286 + $0x16a] sm:$0xff]
      %v1359 = vld [vmem:[%s286 + $0x172] sm:$0xff]
      %s1360 = scalar_lea.vmem %s1, 640
      %v1361 = vld [vmem:[%s1360] sm:$0xff]
      %v1362 = vld [vmem:[%s1360 + $0x8] sm:$0xff]
      %v1363 = vld [vmem:[%s1360 + $0x10] sm:$0xff]
      %v1364 = vld [vmem:[%s1360 + $0x18] sm:$0xff]
      %v1365 = vld [vmem:[%s1360 + $0x20] sm:$0xff]
      %v1366 = vld [vmem:[%s1360 + $0x28] sm:$0xff]
      %v1367 = vld [vmem:[%s1360 + $0x30] sm:$0xff]
      %v1368 = vld [vmem:[%s1360 + $0x38] sm:$0xff]
      %v1369 = vld [vmem:[%s1360 + $0x40] sm:$0xff]
      %v1370 = vld [vmem:[%s1360 + $0x48] sm:$0xff]
      %v1371 = vld [vmem:[%s1360 + $0x50] sm:$0xff]
      %v1372 = vld [vmem:[%s1360 + $0x58] sm:$0xff]
      %v1373 = vld [vmem:[%s1360 + $0x60] sm:$0xff]
      %v1374 = vld [vmem:[%s1360 + $0x68] sm:$0xff]
      %v1375 = vld [vmem:[%s1360 + $0x70] sm:$0xff]
      %v1376 = vld [vmem:[%s1360 + $0x78] sm:$0xff]
      %1377 = vmatpush.msra.mxu0 %v1376
      %1378 = vmatpush.msra.mxu0 %v1375
      %1379 = vmatpush.msra.mxu0 %v1374
      %1380 = vmatpush.msra.mxu0 %v1373
      %1381 = vmatpush.msra.mxu0 %v1372
      %1382 = vmatpush.msra.mxu0 %v1371
      %1383 = vmatpush.msra.mxu0 %v1370
      %1384 = vmatpush.msra.mxu0 %v1369
      %1385 = vmatpush.msra.mxu0 %v1368
      %1386 = vmatpush.msra.mxu0 %v1367
      %1387 = vmatpush.msra.mxu0 %v1366
      %1388 = vmatpush.msra.mxu0 %v1365
      %1389 = vmatpush.msra.mxu0 %v1364
      %1390 = vmatpush.msra.mxu0 %v1363
      %1391 = vmatpush.msra.mxu0 %v1362
      %1392 = vmatpush.msra.mxu0 %v1361
      %1393 = vmatmul.f32.gmra.mxu0 %v1328
      %v1394 = vpop.f32.mrf.mxu0
      %v1395 = vadd.f32 0.0, %v1394
      %1396 = vmatmul.f32.gmra.mxu0 %v1329
      %v1397 = vpop.f32.mrf.mxu0
      %v1398 = vadd.f32 0.0, %v1397
      %1399 = vmatmul.f32.gmra.mxu0 %v1330
      %v1400 = vpop.f32.mrf.mxu0
      %v1401 = vadd.f32 0.0, %v1400
      %1402 = vmatmul.f32.gmra.mxu0 %v1331
      %v1403 = vpop.f32.mrf.mxu0
      %v1404 = vadd.f32 0.0, %v1403
      %1405 = vmatmul.f32.gmra.mxu0 %v1332
      %v1406 = vpop.f32.mrf.mxu0
      %v1407 = vadd.f32 0.0, %v1406
      %1408 = vmatmul.f32.gmra.mxu0 %v1333
      %v1409 = vpop.f32.mrf.mxu0
      %v1410 = vadd.f32 0.0, %v1409
      %1411 = vmatmul.f32.gmra.mxu0 %v1334
      %v1412 = vpop.f32.mrf.mxu0
      %v1413 = vadd.f32 0.0, %v1412
      %1414 = vmatmul.f32.gmra.mxu0 %v1335
      %v1415 = vpop.f32.mrf.mxu0
      %v1416 = vadd.f32 0.0, %v1415
      %1417 = vmatmul.f32.gmra.mxu0 %v1336
      %v1418 = vpop.f32.mrf.mxu0
      %v1419 = vadd.f32 0.0, %v1418
      %1420 = vmatmul.f32.gmra.mxu0 %v1337
      %v1421 = vpop.f32.mrf.mxu0
      %v1422 = vadd.f32 0.0, %v1421
      %1423 = vmatmul.f32.gmra.mxu0 %v1338
      %v1424 = vpop.f32.mrf.mxu0
      %v1425 = vadd.f32 0.0, %v1424
      %1426 = vmatmul.f32.gmra.mxu0 %v1339
      %v1427 = vpop.f32.mrf.mxu0
      %v1428 = vadd.f32 0.0, %v1427
      %1429 = vmatmul.f32.gmra.mxu0 %v1340
      %v1430 = vpop.f32.mrf.mxu0
      %v1431 = vadd.f32 0.0, %v1430
      %1432 = vmatmul.f32.gmra.mxu0 %v1341
      %v1433 = vpop.f32.mrf.mxu0
      %v1434 = vadd.f32 0.0, %v1433
      %1435 = vmatmul.f32.gmra.mxu0 %v1342
      %v1436 = vpop.f32.mrf.mxu0
      %v1437 = vadd.f32 0.0, %v1436
      %1438 = vmatmul.f32.gmra.mxu0 %v1343
      %v1439 = vpop.f32.mrf.mxu0
      %v1440 = vadd.f32 0.0, %v1439
      %1441 = vmatmul.f32.gmra.mxu0 %v1344
      %v1442 = vpop.f32.mrf.mxu0
      %v1443 = vadd.f32 0.0, %v1442
      %1444 = vmatmul.f32.gmra.mxu0 %v1345
      %v1445 = vpop.f32.mrf.mxu0
      %v1446 = vadd.f32 0.0, %v1445
      %1447 = vmatmul.f32.gmra.mxu0 %v1346
      %v1448 = vpop.f32.mrf.mxu0
      %v1449 = vadd.f32 0.0, %v1448
      %1450 = vmatmul.f32.gmra.mxu0 %v1347
      %v1451 = vpop.f32.mrf.mxu0
      %v1452 = vadd.f32 0.0, %v1451
      %1453 = vmatmul.f32.gmra.mxu0 %v1348
      %v1454 = vpop.f32.mrf.mxu0
      %v1455 = vadd.f32 0.0, %v1454
      %1456 = vmatmul.f32.gmra.mxu0 %v1349
      %v1457 = vpop.f32.mrf.mxu0
      %v1458 = vadd.f32 0.0, %v1457
      %1459 = vmatmul.f32.gmra.mxu0 %v1350
      %v1460 = vpop.f32.mrf.mxu0
      %v1461 = vadd.f32 0.0, %v1460
      %1462 = vmatmul.f32.gmra.mxu0 %v1351
      %v1463 = vpop.f32.mrf.mxu0
      %v1464 = vadd.f32 0.0, %v1463
      %1465 = vmatmul.f32.gmra.mxu0 %v1352
      %v1466 = vpop.f32.mrf.mxu0
      %v1467 = vadd.f32 0.0, %v1466
      %1468 = vmatmul.f32.gmra.mxu0 %v1353
      %v1469 = vpop.f32.mrf.mxu0
      %v1470 = vadd.f32 0.0, %v1469
      %1471 = vmatmul.f32.gmra.mxu0 %v1354
      %v1472 = vpop.f32.mrf.mxu0
      %v1473 = vadd.f32 0.0, %v1472
      %1474 = vmatmul.f32.gmra.mxu0 %v1355
      %v1475 = vpop.f32.mrf.mxu0
      %v1476 = vadd.f32 0.0, %v1475
      %1477 = vmatmul.f32.gmra.mxu0 %v1356
      %v1478 = vpop.f32.mrf.mxu0
      %v1479 = vadd.f32 0.0, %v1478
      %1480 = vmatmul.f32.gmra.mxu0 %v1357
      %v1481 = vpop.f32.mrf.mxu0
      %v1482 = vadd.f32 0.0, %v1481
      %1483 = vmatmul.f32.gmra.mxu0 %v1358
      %v1484 = vpop.f32.mrf.mxu0
      %v1485 = vadd.f32 0.0, %v1484
      %1486 = vmatmul.f32.gmra.mxu0 %v1359
      %v1487 = vpop.f32.mrf.mxu0
      %v1488 = vadd.f32 0.0, %v1487
      %1489 = vdwg.mxu0
      %v1490 = vadd.f32 %v1296, %v1395
      %v1491 = vadd.f32 %v1297, %v1398
      %v1492 = vadd.f32 %v1298, %v1401
      %v1493 = vadd.f32 %v1299, %v1404
      %v1494 = vadd.f32 %v1300, %v1407
      %v1495 = vadd.f32 %v1301, %v1410
      %v1496 = vadd.f32 %v1302, %v1413
      %v1497 = vadd.f32 %v1303, %v1416
      %v1498 = vadd.f32 %v1304, %v1419
      %v1499 = vadd.f32 %v1305, %v1422
      %v1500 = vadd.f32 %v1306, %v1425
      %v1501 = vadd.f32 %v1307, %v1428
      %v1502 = vadd.f32 %v1308, %v1431
      %v1503 = vadd.f32 %v1309, %v1434
      %v1504 = vadd.f32 %v1310, %v1437
      %v1505 = vadd.f32 %v1311, %v1440
      %v1506 = vadd.f32 %v1312, %v1443
      %v1507 = vadd.f32 %v1313, %v1446
      %v1508 = vadd.f32 %v1314, %v1449
      %v1509 = vadd.f32 %v1315, %v1452
      %v1510 = vadd.f32 %v1316, %v1455
      %v1511 = vadd.f32 %v1317, %v1458
      %v1512 = vadd.f32 %v1318, %v1461
      %v1513 = vadd.f32 %v1319, %v1464
      %v1514 = vadd.f32 %v1320, %v1467
      %v1515 = vadd.f32 %v1321, %v1470
      %v1516 = vadd.f32 %v1322, %v1473
      %v1517 = vadd.f32 %v1323, %v1476
      %v1518 = vadd.f32 %v1324, %v1479
      %v1519 = vadd.f32 %v1325, %v1482
      %v1520 = vadd.f32 %v1326, %v1485
      %v1521 = vadd.f32 %v1327, %v1488
      %s1522 = scalar_lea.vmem [#allocation2], 48
      %v1523 = vld [vmem:[%s1522] sm:$0xff]
      %v1524 = vld [vmem:[%s1522 + $0x8] sm:$0xff]
      %v1525 = vld [vmem:[%s1522 + $0x18] sm:$0xff]
      %v1526 = vld [vmem:[%s1522 + $0x20] sm:$0xff]
      %v1527 = vld [vmem:[%s1522 + $0x30] sm:$0xff]
      %v1528 = vld [vmem:[%s1522 + $0x38] sm:$0xff]
      %v1529 = vld [vmem:[%s1522 + $0x48] sm:$0xff]
      %v1530 = vld [vmem:[%s1522 + $0x50] sm:$0xff]
      %v1531 = vld [vmem:[%s1522 + $0x60] sm:$0xff]
      %v1532 = vld [vmem:[%s1522 + $0x68] sm:$0xff]
      %v1533 = vld [vmem:[%s1522 + $0x78] sm:$0xff]
      %v1534 = vld [vmem:[%s1522 + $0x80] sm:$0xff]
      %v1535 = vld [vmem:[%s1522 + $0x90] sm:$0xff]
      %v1536 = vld [vmem:[%s1522 + $0x98] sm:$0xff]
      %v1537 = vld [vmem:[%s1522 + $0xa8] sm:$0xff]
      %v1538 = vld [vmem:[%s1522 + $0xb0] sm:$0xff]
      %v1539 = vld [vmem:[%s1522 + $0xc0] sm:$0xff]
      %v1540 = vld [vmem:[%s1522 + $0xc8] sm:$0xff]
      %v1541 = vld [vmem:[%s1522 + $0xd8] sm:$0xff]
      %v1542 = vld [vmem:[%s1522 + $0xe0] sm:$0xff]
      %v1543 = vld [vmem:[%s1522 + $0xf0] sm:$0xff]
      %v1544 = vld [vmem:[%s1522 + $0xf8] sm:$0xff]
      %v1545 = vld [vmem:[%s1522 + $0x108] sm:$0xff]
      %v1546 = vld [vmem:[%s1522 + $0x110] sm:$0xff]
      %v1547 = vld [vmem:[%s1522 + $0x120] sm:$0xff]
      %v1548 = vld [vmem:[%s1522 + $0x128] sm:$0xff]
      %v1549 = vld [vmem:[%s1522 + $0x138] sm:$0xff]
      %v1550 = vld [vmem:[%s1522 + $0x140] sm:$0xff]
      %v1551 = vld [vmem:[%s1522 + $0x150] sm:$0xff]
      %v1552 = vld [vmem:[%s1522 + $0x158] sm:$0xff]
      %v1553 = vld [vmem:[%s1522 + $0x168] sm:$0xff]
      %v1554 = vld [vmem:[%s1522 + $0x170] sm:$0xff]
      %s1555 = scalar_lea.vmem %s1, 768
      %v1556 = vld [vmem:[%s1555] sm:$0xff]
      %v1557 = vld [vmem:[%s1555 + $0x8] sm:$0xff]
      %v1558 = vld [vmem:[%s1555 + $0x10] sm:$0xff]
      %v1559 = vld [vmem:[%s1555 + $0x18] sm:$0xff]
      %v1560 = vld [vmem:[%s1555 + $0x20] sm:$0xff]
      %v1561 = vld [vmem:[%s1555 + $0x28] sm:$0xff]
      %v1562 = vld [vmem:[%s1555 + $0x30] sm:$0xff]
      %v1563 = vld [vmem:[%s1555 + $0x38] sm:$0xff]
      %v1564 = vld [vmem:[%s1555 + $0x40] sm:$0xff]
      %v1565 = vld [vmem:[%s1555 + $0x48] sm:$0xff]
      %v1566 = vld [vmem:[%s1555 + $0x50] sm:$0xff]
      %v1567 = vld [vmem:[%s1555 + $0x58] sm:$0xff]
      %v1568 = vld [vmem:[%s1555 + $0x60] sm:$0xff]
      %v1569 = vld [vmem:[%s1555 + $0x68] sm:$0xff]
      %v1570 = vld [vmem:[%s1555 + $0x70] sm:$0xff]
      %v1571 = vld [vmem:[%s1555 + $0x78] sm:$0xff]
      %1572 = vmatpush.msra.mxu0 %v1571
      %1573 = vmatpush.msra.mxu0 %v1570
      %1574 = vmatpush.msra.mxu0 %v1569
      %1575 = vmatpush.msra.mxu0 %v1568
      %1576 = vmatpush.msra.mxu0 %v1567
      %1577 = vmatpush.msra.mxu0 %v1566
      %1578 = vmatpush.msra.mxu0 %v1565
      %1579 = vmatpush.msra.mxu0 %v1564
      %1580 = vmatpush.msra.mxu0 %v1563
      %1581 = vmatpush.msra.mxu0 %v1562
      %1582 = vmatpush.msra.mxu0 %v1561
      %1583 = vmatpush.msra.mxu0 %v1560
      %1584 = vmatpush.msra.mxu0 %v1559
      %1585 = vmatpush.msra.mxu0 %v1558
      %1586 = vmatpush.msra.mxu0 %v1557
      %1587 = vmatpush.msra.mxu0 %v1556
      %1588 = vmatmul.f32.gmra.mxu0 %v1523
      %v1589 = vpop.f32.mrf.mxu0
      %v1590 = vadd.f32 0.0, %v1589
      %1591 = vmatmul.f32.gmra.mxu0 %v1524
      %v1592 = vpop.f32.mrf.mxu0
      %v1593 = vadd.f32 0.0, %v1592
      %1594 = vmatmul.f32.gmra.mxu0 %v1525
      %v1595 = vpop.f32.mrf.mxu0
      %v1596 = vadd.f32 0.0, %v1595
      %1597 = vmatmul.f32.gmra.mxu0 %v1526
      %v1598 = vpop.f32.mrf.mxu0
      %v1599 = vadd.f32 0.0, %v1598
      %1600 = vmatmul.f32.gmra.mxu0 %v1527
      %v1601 = vpop.f32.mrf.mxu0
      %v1602 = vadd.f32 0.0, %v1601
      %1603 = vmatmul.f32.gmra.mxu0 %v1528
      %v1604 = vpop.f32.mrf.mxu0
      %v1605 = vadd.f32 0.0, %v1604
      %1606 = vmatmul.f32.gmra.mxu0 %v1529
      %v1607 = vpop.f32.mrf.mxu0
      %v1608 = vadd.f32 0.0, %v1607
      %1609 = vmatmul.f32.gmra.mxu0 %v1530
      %v1610 = vpop.f32.mrf.mxu0
      %v1611 = vadd.f32 0.0, %v1610
      %1612 = vmatmul.f32.gmra.mxu0 %v1531
      %v1613 = vpop.f32.mrf.mxu0
      %v1614 = vadd.f32 0.0, %v1613
      %1615 = vmatmul.f32.gmra.mxu0 %v1532
      %v1616 = vpop.f32.mrf.mxu0
      %v1617 = vadd.f32 0.0, %v1616
      %1618 = vmatmul.f32.gmra.mxu0 %v1533
      %v1619 = vpop.f32.mrf.mxu0
      %v1620 = vadd.f32 0.0, %v1619
      %1621 = vmatmul.f32.gmra.mxu0 %v1534
      %v1622 = vpop.f32.mrf.mxu0
      %v1623 = vadd.f32 0.0, %v1622
      %1624 = vmatmul.f32.gmra.mxu0 %v1535
      %v1625 = vpop.f32.mrf.mxu0
      %v1626 = vadd.f32 0.0, %v1625
      %1627 = vmatmul.f32.gmra.mxu0 %v1536
      %v1628 = vpop.f32.mrf.mxu0
      %v1629 = vadd.f32 0.0, %v1628
      %1630 = vmatmul.f32.gmra.mxu0 %v1537
      %v1631 = vpop.f32.mrf.mxu0
      %v1632 = vadd.f32 0.0, %v1631
      %1633 = vmatmul.f32.gmra.mxu0 %v1538
      %v1634 = vpop.f32.mrf.mxu0
      %v1635 = vadd.f32 0.0, %v1634
      %1636 = vmatmul.f32.gmra.mxu0 %v1539
      %v1637 = vpop.f32.mrf.mxu0
      %v1638 = vadd.f32 0.0, %v1637
      %1639 = vmatmul.f32.gmra.mxu0 %v1540
      %v1640 = vpop.f32.mrf.mxu0
      %v1641 = vadd.f32 0.0, %v1640
      %1642 = vmatmul.f32.gmra.mxu0 %v1541
      %v1643 = vpop.f32.mrf.mxu0
      %v1644 = vadd.f32 0.0, %v1643
      %1645 = vmatmul.f32.gmra.mxu0 %v1542
      %v1646 = vpop.f32.mrf.mxu0
      %v1647 = vadd.f32 0.0, %v1646
      %1648 = vmatmul.f32.gmra.mxu0 %v1543
      %v1649 = vpop.f32.mrf.mxu0
      %v1650 = vadd.f32 0.0, %v1649
      %1651 = vmatmul.f32.gmra.mxu0 %v1544
      %v1652 = vpop.f32.mrf.mxu0
      %v1653 = vadd.f32 0.0, %v1652
      %1654 = vmatmul.f32.gmra.mxu0 %v1545
      %v1655 = vpop.f32.mrf.mxu0
      %v1656 = vadd.f32 0.0, %v1655
      %1657 = vmatmul.f32.gmra.mxu0 %v1546
      %v1658 = vpop.f32.mrf.mxu0
      %v1659 = vadd.f32 0.0, %v1658
      %1660 = vmatmul.f32.gmra.mxu0 %v1547
      %v1661 = vpop.f32.mrf.mxu0
      %v1662 = vadd.f32 0.0, %v1661
      %1663 = vmatmul.f32.gmra.mxu0 %v1548
      %v1664 = vpop.f32.mrf.mxu0
      %v1665 = vadd.f32 0.0, %v1664
      %1666 = vmatmul.f32.gmra.mxu0 %v1549
      %v1667 = vpop.f32.mrf.mxu0
      %v1668 = vadd.f32 0.0, %v1667
      %1669 = vmatmul.f32.gmra.mxu0 %v1550
      %v1670 = vpop.f32.mrf.mxu0
      %v1671 = vadd.f32 0.0, %v1670
      %1672 = vmatmul.f32.gmra.mxu0 %v1551
      %v1673 = vpop.f32.mrf.mxu0
      %v1674 = vadd.f32 0.0, %v1673
      %1675 = vmatmul.f32.gmra.mxu0 %v1552
      %v1676 = vpop.f32.mrf.mxu0
      %v1677 = vadd.f32 0.0, %v1676
      %1678 = vmatmul.f32.gmra.mxu0 %v1553
      %v1679 = vpop.f32.mrf.mxu0
      %v1680 = vadd.f32 0.0, %v1679
      %1681 = vmatmul.f32.gmra.mxu0 %v1554
      %v1682 = vpop.f32.mrf.mxu0
      %v1683 = vadd.f32 0.0, %v1682
      %1684 = vdwg.mxu0
      %v1685 = vadd.f32 %v1490, %v1590
      %v1686 = vadd.f32 %v1491, %v1593
      %v1687 = vadd.f32 %v1492, %v1596
      %v1688 = vadd.f32 %v1493, %v1599
      %v1689 = vadd.f32 %v1494, %v1602
      %v1690 = vadd.f32 %v1495, %v1605
      %v1691 = vadd.f32 %v1496, %v1608
      %v1692 = vadd.f32 %v1497, %v1611
      %v1693 = vadd.f32 %v1498, %v1614
      %v1694 = vadd.f32 %v1499, %v1617
      %v1695 = vadd.f32 %v1500, %v1620
      %v1696 = vadd.f32 %v1501, %v1623
      %v1697 = vadd.f32 %v1502, %v1626
      %v1698 = vadd.f32 %v1503, %v1629
      %v1699 = vadd.f32 %v1504, %v1632
      %v1700 = vadd.f32 %v1505, %v1635
      %v1701 = vadd.f32 %v1506, %v1638
      %v1702 = vadd.f32 %v1507, %v1641
      %v1703 = vadd.f32 %v1508, %v1644
      %v1704 = vadd.f32 %v1509, %v1647
      %v1705 = vadd.f32 %v1510, %v1650
      %v1706 = vadd.f32 %v1511, %v1653
      %v1707 = vadd.f32 %v1512, %v1656
      %v1708 = vadd.f32 %v1513, %v1659
      %v1709 = vadd.f32 %v1514, %v1662
      %v1710 = vadd.f32 %v1515, %v1665
      %v1711 = vadd.f32 %v1516, %v1668
      %v1712 = vadd.f32 %v1517, %v1671
      %v1713 = vadd.f32 %v1518, %v1674
      %v1714 = vadd.f32 %v1519, %v1677
      %v1715 = vadd.f32 %v1520, %v1680
      %v1716 = vadd.f32 %v1521, %v1683
      %v1717 = vld [vmem:[%s1522 + $0x1] sm:$0xff]
      %v1718 = vld [vmem:[%s1522 + $0x9] sm:$0xff]
      %v1719 = vld [vmem:[%s1522 + $0x19] sm:$0xff]
      %v1720 = vld [vmem:[%s1522 + $0x21] sm:$0xff]
      %v1721 = vld [vmem:[%s1522 + $0x31] sm:$0xff]
      %v1722 = vld [vmem:[%s1522 + $0x39] sm:$0xff]
      %v1723 = vld [vmem:[%s1522 + $0x49] sm:$0xff]
      %v1724 = vld [vmem:[%s1522 + $0x51] sm:$0xff]
      %v1725 = vld [vmem:[%s1522 + $0x61] sm:$0xff]
      %v1726 = vld [vmem:[%s1522 + $0x69] sm:$0xff]
      %v1727 = vld [vmem:[%s1522 + $0x79] sm:$0xff]
      %v1728 = vld [vmem:[%s1522 + $0x81] sm:$0xff]
      %v1729 = vld [vmem:[%s1522 + $0x91] sm:$0xff]
      %v1730 = vld [vmem:[%s1522 + $0x99] sm:$0xff]
      %v1731 = vld [vmem:[%s1522 + $0xa9] sm:$0xff]
      %v1732 = vld [vmem:[%s1522 + $0xb1] sm:$0xff]
      %v1733 = vld [vmem:[%s1522 + $0xc1] sm:$0xff]
      %v1734 = vld [vmem:[%s1522 + $0xc9] sm:$0xff]
      %v1735 = vld [vmem:[%s1522 + $0xd9] sm:$0xff]
      %v1736 = vld [vmem:[%s1522 + $0xe1] sm:$0xff]
      %v1737 = vld [vmem:[%s1522 + $0xf1] sm:$0xff]
      %v1738 = vld [vmem:[%s1522 + $0xf9] sm:$0xff]
      %v1739 = vld [vmem:[%s1522 + $0x109] sm:$0xff]
      %v1740 = vld [vmem:[%s1522 + $0x111] sm:$0xff]
      %v1741 = vld [vmem:[%s1522 + $0x121] sm:$0xff]
      %v1742 = vld [vmem:[%s1522 + $0x129] sm:$0xff]
      %v1743 = vld [vmem:[%s1522 + $0x139] sm:$0xff]
      %v1744 = vld [vmem:[%s1522 + $0x141] sm:$0xff]
      %v1745 = vld [vmem:[%s1522 + $0x151] sm:$0xff]
      %v1746 = vld [vmem:[%s1522 + $0x159] sm:$0xff]
      %v1747 = vld [vmem:[%s1522 + $0x169] sm:$0xff]
      %v1748 = vld [vmem:[%s1522 + $0x171] sm:$0xff]
      %s1749 = scalar_lea.vmem %s1, 896
      %v1750 = vld [vmem:[%s1749] sm:$0xff]
      %v1751 = vld [vmem:[%s1749 + $0x8] sm:$0xff]
      %v1752 = vld [vmem:[%s1749 + $0x10] sm:$0xff]
      %v1753 = vld [vmem:[%s1749 + $0x18] sm:$0xff]
      %v1754 = vld [vmem:[%s1749 + $0x20] sm:$0xff]
      %v1755 = vld [vmem:[%s1749 + $0x28] sm:$0xff]
      %v1756 = vld [vmem:[%s1749 + $0x30] sm:$0xff]
      %v1757 = vld [vmem:[%s1749 + $0x38] sm:$0xff]
      %v1758 = vld [vmem:[%s1749 + $0x40] sm:$0xff]
      %v1759 = vld [vmem:[%s1749 + $0x48] sm:$0xff]
      %v1760 = vld [vmem:[%s1749 + $0x50] sm:$0xff]
      %v1761 = vld [vmem:[%s1749 + $0x58] sm:$0xff]
      %v1762 = vld [vmem:[%s1749 + $0x60] sm:$0xff]
      %v1763 = vld [vmem:[%s1749 + $0x68] sm:$0xff]
      %v1764 = vld [vmem:[%s1749 + $0x70] sm:$0xff]
      %v1765 = vld [vmem:[%s1749 + $0x78] sm:$0xff]
      %1766 = vmatpush.msra.mxu0 %v1765
      %1767 = vmatpush.msra.mxu0 %v1764
      %1768 = vmatpush.msra.mxu0 %v1763
      %1769 = vmatpush.msra.mxu0 %v1762
      %1770 = vmatpush.msra.mxu0 %v1761
      %1771 = vmatpush.msra.mxu0 %v1760
      %1772 = vmatpush.msra.mxu0 %v1759
      %1773 = vmatpush.msra.mxu0 %v1758
      %1774 = vmatpush.msra.mxu0 %v1757
      %1775 = vmatpush.msra.mxu0 %v1756
      %1776 = vmatpush.msra.mxu0 %v1755
      %1777 = vmatpush.msra.mxu0 %v1754
      %1778 = vmatpush.msra.mxu0 %v1753
      %1779 = vmatpush.msra.mxu0 %v1752
      %1780 = vmatpush.msra.mxu0 %v1751
      %1781 = vmatpush.msra.mxu0 %v1750
      %1782 = vmatmul.f32.gmra.mxu0 %v1717
      %v1783 = vpop.f32.mrf.mxu0
      %v1784 = vadd.f32 0.0, %v1783
      %1785 = vmatmul.f32.gmra.mxu0 %v1718
      %v1786 = vpop.f32.mrf.mxu0
      %v1787 = vadd.f32 0.0, %v1786
      %1788 = vmatmul.f32.gmra.mxu0 %v1719
      %v1789 = vpop.f32.mrf.mxu0
      %v1790 = vadd.f32 0.0, %v1789
      %1791 = vmatmul.f32.gmra.mxu0 %v1720
      %v1792 = vpop.f32.mrf.mxu0
      %v1793 = vadd.f32 0.0, %v1792
      %1794 = vmatmul.f32.gmra.mxu0 %v1721
      %v1795 = vpop.f32.mrf.mxu0
      %v1796 = vadd.f32 0.0, %v1795
      %1797 = vmatmul.f32.gmra.mxu0 %v1722
      %v1798 = vpop.f32.mrf.mxu0
      %v1799 = vadd.f32 0.0, %v1798
      %1800 = vmatmul.f32.gmra.mxu0 %v1723
      %v1801 = vpop.f32.mrf.mxu0
      %v1802 = vadd.f32 0.0, %v1801
      %1803 = vmatmul.f32.gmra.mxu0 %v1724
      %v1804 = vpop.f32.mrf.mxu0
      %v1805 = vadd.f32 0.0, %v1804
      %1806 = vmatmul.f32.gmra.mxu0 %v1725
      %v1807 = vpop.f32.mrf.mxu0
      %v1808 = vadd.f32 0.0, %v1807
      %1809 = vmatmul.f32.gmra.mxu0 %v1726
      %v1810 = vpop.f32.mrf.mxu0
      %v1811 = vadd.f32 0.0, %v1810
      %1812 = vmatmul.f32.gmra.mxu0 %v1727
      %v1813 = vpop.f32.mrf.mxu0
      %v1814 = vadd.f32 0.0, %v1813
      %1815 = vmatmul.f32.gmra.mxu0 %v1728
      %v1816 = vpop.f32.mrf.mxu0
      %v1817 = vadd.f32 0.0, %v1816
      %1818 = vmatmul.f32.gmra.mxu0 %v1729
      %v1819 = vpop.f32.mrf.mxu0
      %v1820 = vadd.f32 0.0, %v1819
      %1821 = vmatmul.f32.gmra.mxu0 %v1730
      %v1822 = vpop.f32.mrf.mxu0
      %v1823 = vadd.f32 0.0, %v1822
      %1824 = vmatmul.f32.gmra.mxu0 %v1731
      %v1825 = vpop.f32.mrf.mxu0
      %v1826 = vadd.f32 0.0, %v1825
      %1827 = vmatmul.f32.gmra.mxu0 %v1732
      %v1828 = vpop.f32.mrf.mxu0
      %v1829 = vadd.f32 0.0, %v1828
      %1830 = vmatmul.f32.gmra.mxu0 %v1733
      %v1831 = vpop.f32.mrf.mxu0
      %v1832 = vadd.f32 0.0, %v1831
      %1833 = vmatmul.f32.gmra.mxu0 %v1734
      %v1834 = vpop.f32.mrf.mxu0
      %v1835 = vadd.f32 0.0, %v1834
      %1836 = vmatmul.f32.gmra.mxu0 %v1735
      %v1837 = vpop.f32.mrf.mxu0
      %v1838 = vadd.f32 0.0, %v1837
      %1839 = vmatmul.f32.gmra.mxu0 %v1736
      %v1840 = vpop.f32.mrf.mxu0
      %v1841 = vadd.f32 0.0, %v1840
      %1842 = vmatmul.f32.gmra.mxu0 %v1737
      %v1843 = vpop.f32.mrf.mxu0
      %v1844 = vadd.f32 0.0, %v1843
      %1845 = vmatmul.f32.gmra.mxu0 %v1738
      %v1846 = vpop.f32.mrf.mxu0
      %v1847 = vadd.f32 0.0, %v1846
      %1848 = vmatmul.f32.gmra.mxu0 %v1739
      %v1849 = vpop.f32.mrf.mxu0
      %v1850 = vadd.f32 0.0, %v1849
      %1851 = vmatmul.f32.gmra.mxu0 %v1740
      %v1852 = vpop.f32.mrf.mxu0
      %v1853 = vadd.f32 0.0, %v1852
      %1854 = vmatmul.f32.gmra.mxu0 %v1741
      %v1855 = vpop.f32.mrf.mxu0
      %v1856 = vadd.f32 0.0, %v1855
      %1857 = vmatmul.f32.gmra.mxu0 %v1742
      %v1858 = vpop.f32.mrf.mxu0
      %v1859 = vadd.f32 0.0, %v1858
      %1860 = vmatmul.f32.gmra.mxu0 %v1743
      %v1861 = vpop.f32.mrf.mxu0
      %v1862 = vadd.f32 0.0, %v1861
      %1863 = vmatmul.f32.gmra.mxu0 %v1744
      %v1864 = vpop.f32.mrf.mxu0
      %v1865 = vadd.f32 0.0, %v1864
      %1866 = vmatmul.f32.gmra.mxu0 %v1745
      %v1867 = vpop.f32.mrf.mxu0
      %v1868 = vadd.f32 0.0, %v1867
      %1869 = vmatmul.f32.gmra.mxu0 %v1746
      %v1870 = vpop.f32.mrf.mxu0
      %v1871 = vadd.f32 0.0, %v1870
      %1872 = vmatmul.f32.gmra.mxu0 %v1747
      %v1873 = vpop.f32.mrf.mxu0
      %v1874 = vadd.f32 0.0, %v1873
      %1875 = vmatmul.f32.gmra.mxu0 %v1748
      %v1876 = vpop.f32.mrf.mxu0
      %v1877 = vadd.f32 0.0, %v1876
      %1878 = vdwg.mxu0
      %v1879 = vadd.f32 %v1685, %v1784
      %v1880 = vadd.f32 %v1686, %v1787
      %v1881 = vadd.f32 %v1687, %v1790
      %v1882 = vadd.f32 %v1688, %v1793
      %v1883 = vadd.f32 %v1689, %v1796
      %v1884 = vadd.f32 %v1690, %v1799
      %v1885 = vadd.f32 %v1691, %v1802
      %v1886 = vadd.f32 %v1692, %v1805
      %v1887 = vadd.f32 %v1693, %v1808
      %v1888 = vadd.f32 %v1694, %v1811
      %v1889 = vadd.f32 %v1695, %v1814
      %v1890 = vadd.f32 %v1696, %v1817
      %v1891 = vadd.f32 %v1697, %v1820
      %v1892 = vadd.f32 %v1698, %v1823
      %v1893 = vadd.f32 %v1699, %v1826
      %v1894 = vadd.f32 %v1700, %v1829
      %v1895 = vadd.f32 %v1701, %v1832
      %v1896 = vadd.f32 %v1702, %v1835
      %v1897 = vadd.f32 %v1703, %v1838
      %v1898 = vadd.f32 %v1704, %v1841
      %v1899 = vadd.f32 %v1705, %v1844
      %v1900 = vadd.f32 %v1706, %v1847
      %v1901 = vadd.f32 %v1707, %v1850
      %v1902 = vadd.f32 %v1708, %v1853
      %v1903 = vadd.f32 %v1709, %v1856
      %v1904 = vadd.f32 %v1710, %v1859
      %v1905 = vadd.f32 %v1711, %v1862
      %v1906 = vadd.f32 %v1712, %v1865
      %v1907 = vadd.f32 %v1713, %v1868
      %v1908 = vadd.f32 %v1714, %v1871
      %v1909 = vadd.f32 %v1715, %v1874
      %v1910 = vadd.f32 %v1716, %v1877
      %v1911 = vld [vmem:[%s1522 + $0x2] sm:$0xff]
      %v1912 = vld [vmem:[%s1522 + $0xa] sm:$0xff]
      %v1913 = vld [vmem:[%s1522 + $0x1a] sm:$0xff]
      %v1914 = vld [vmem:[%s1522 + $0x22] sm:$0xff]
      %v1915 = vld [vmem:[%s1522 + $0x32] sm:$0xff]
      %v1916 = vld [vmem:[%s1522 + $0x3a] sm:$0xff]
      %v1917 = vld [vmem:[%s1522 + $0x4a] sm:$0xff]
      %v1918 = vld [vmem:[%s1522 + $0x52] sm:$0xff]
      %v1919 = vld [vmem:[%s1522 + $0x62] sm:$0xff]
      %v1920 = vld [vmem:[%s1522 + $0x6a] sm:$0xff]
      %v1921 = vld [vmem:[%s1522 + $0x7a] sm:$0xff]
      %v1922 = vld [vmem:[%s1522 + $0x82] sm:$0xff]
      %v1923 = vld [vmem:[%s1522 + $0x92] sm:$0xff]
      %v1924 = vld [vmem:[%s1522 + $0x9a] sm:$0xff]
      %v1925 = vld [vmem:[%s1522 + $0xaa] sm:$0xff]
      %v1926 = vld [vmem:[%s1522 + $0xb2] sm:$0xff]
      %v1927 = vld [vmem:[%s1522 + $0xc2] sm:$0xff]
      %v1928 = vld [vmem:[%s1522 + $0xca] sm:$0xff]
      %v1929 = vld [vmem:[%s1522 + $0xda] sm:$0xff]
      %v1930 = vld [vmem:[%s1522 + $0xe2] sm:$0xff]
      %v1931 = vld [vmem:[%s1522 + $0xf2] sm:$0xff]
      %v1932 = vld [vmem:[%s1522 + $0xfa] sm:$0xff]
      %v1933 = vld [vmem:[%s1522 + $0x10a] sm:$0xff]
      %v1934 = vld [vmem:[%s1522 + $0x112] sm:$0xff]
      %v1935 = vld [vmem:[%s1522 + $0x122] sm:$0xff]
      %v1936 = vld [vmem:[%s1522 + $0x12a] sm:$0xff]
      %v1937 = vld [vmem:[%s1522 + $0x13a] sm:$0xff]
      %v1938 = vld [vmem:[%s1522 + $0x142] sm:$0xff]
      %v1939 = vld [vmem:[%s1522 + $0x152] sm:$0xff]
      %v1940 = vld [vmem:[%s1522 + $0x15a] sm:$0xff]
      %v1941 = vld [vmem:[%s1522 + $0x16a] sm:$0xff]
      %v1942 = vld [vmem:[%s1522 + $0x172] sm:$0xff]
      %s1943 = scalar_lea.vmem %s1, 1024
      %v1944 = vld [vmem:[%s1943] sm:$0xff]
      %v1945 = vld [vmem:[%s1943 + $0x8] sm:$0xff]
      %v1946 = vld [vmem:[%s1943 + $0x10] sm:$0xff]
      %v1947 = vld [vmem:[%s1943 + $0x18] sm:$0xff]
      %v1948 = vld [vmem:[%s1943 + $0x20] sm:$0xff]
      %v1949 = vld [vmem:[%s1943 + $0x28] sm:$0xff]
      %v1950 = vld [vmem:[%s1943 + $0x30] sm:$0xff]
      %v1951 = vld [vmem:[%s1943 + $0x38] sm:$0xff]
      %v1952 = vld [vmem:[%s1943 + $0x40] sm:$0xff]
      %v1953 = vld [vmem:[%s1943 + $0x48] sm:$0xff]
      %v1954 = vld [vmem:[%s1943 + $0x50] sm:$0xff]
      %v1955 = vld [vmem:[%s1943 + $0x58] sm:$0xff]
      %v1956 = vld [vmem:[%s1943 + $0x60] sm:$0xff]
      %v1957 = vld [vmem:[%s1943 + $0x68] sm:$0xff]
      %v1958 = vld [vmem:[%s1943 + $0x70] sm:$0xff]
      %v1959 = vld [vmem:[%s1943 + $0x78] sm:$0xff]
      %1960 = vmatpush.msra.mxu0 %v1959
      %1961 = vmatpush.msra.mxu0 %v1958
      %1962 = vmatpush.msra.mxu0 %v1957
      %1963 = vmatpush.msra.mxu0 %v1956
      %1964 = vmatpush.msra.mxu0 %v1955
      %1965 = vmatpush.msra.mxu0 %v1954
      %1966 = vmatpush.msra.mxu0 %v1953
      %1967 = vmatpush.msra.mxu0 %v1952
      %1968 = vmatpush.msra.mxu0 %v1951
      %1969 = vmatpush.msra.mxu0 %v1950
      %1970 = vmatpush.msra.mxu0 %v1949
      %1971 = vmatpush.msra.mxu0 %v1948
      %1972 = vmatpush.msra.mxu0 %v1947
      %1973 = vmatpush.msra.mxu0 %v1946
      %1974 = vmatpush.msra.mxu0 %v1945
      %1975 = vmatpush.msra.mxu0 %v1944
      %1976 = vmatmul.f32.gmra.mxu0 %v1911
      %v1977 = vpop.f32.mrf.mxu0
      %v1978 = vadd.f32 0.0, %v1977
      %1979 = vmatmul.f32.gmra.mxu0 %v1912
      %v1980 = vpop.f32.mrf.mxu0
      %v1981 = vadd.f32 0.0, %v1980
      %1982 = vmatmul.f32.gmra.mxu0 %v1913
      %v1983 = vpop.f32.mrf.mxu0
      %v1984 = vadd.f32 0.0, %v1983
      %1985 = vmatmul.f32.gmra.mxu0 %v1914
      %v1986 = vpop.f32.mrf.mxu0
      %v1987 = vadd.f32 0.0, %v1986
      %1988 = vmatmul.f32.gmra.mxu0 %v1915
      %v1989 = vpop.f32.mrf.mxu0
      %v1990 = vadd.f32 0.0, %v1989
      %1991 = vmatmul.f32.gmra.mxu0 %v1916
      %v1992 = vpop.f32.mrf.mxu0
      %v1993 = vadd.f32 0.0, %v1992
      %1994 = vmatmul.f32.gmra.mxu0 %v1917
      %v1995 = vpop.f32.mrf.mxu0
      %v1996 = vadd.f32 0.0, %v1995
      %1997 = vmatmul.f32.gmra.mxu0 %v1918
      %v1998 = vpop.f32.mrf.mxu0
      %v1999 = vadd.f32 0.0, %v1998
      %2000 = vmatmul.f32.gmra.mxu0 %v1919
      %v2001 = vpop.f32.mrf.mxu0
      %v2002 = vadd.f32 0.0, %v2001
      %2003 = vmatmul.f32.gmra.mxu0 %v1920
      %v2004 = vpop.f32.mrf.mxu0
      %v2005 = vadd.f32 0.0, %v2004
      %2006 = vmatmul.f32.gmra.mxu0 %v1921
      %v2007 = vpop.f32.mrf.mxu0
      %v2008 = vadd.f32 0.0, %v2007
      %2009 = vmatmul.f32.gmra.mxu0 %v1922
      %v2010 = vpop.f32.mrf.mxu0
      %v2011 = vadd.f32 0.0, %v2010
      %2012 = vmatmul.f32.gmra.mxu0 %v1923
      %v2013 = vpop.f32.mrf.mxu0
      %v2014 = vadd.f32 0.0, %v2013
      %2015 = vmatmul.f32.gmra.mxu0 %v1924
      %v2016 = vpop.f32.mrf.mxu0
      %v2017 = vadd.f32 0.0, %v2016
      %2018 = vmatmul.f32.gmra.mxu0 %v1925
      %v2019 = vpop.f32.mrf.mxu0
      %v2020 = vadd.f32 0.0, %v2019
      %2021 = vmatmul.f32.gmra.mxu0 %v1926
      %v2022 = vpop.f32.mrf.mxu0
      %v2023 = vadd.f32 0.0, %v2022
      %2024 = vmatmul.f32.gmra.mxu0 %v1927
      %v2025 = vpop.f32.mrf.mxu0
      %v2026 = vadd.f32 0.0, %v2025
      %2027 = vmatmul.f32.gmra.mxu0 %v1928
      %v2028 = vpop.f32.mrf.mxu0
      %v2029 = vadd.f32 0.0, %v2028
      %2030 = vmatmul.f32.gmra.mxu0 %v1929
      %v2031 = vpop.f32.mrf.mxu0
      %v2032 = vadd.f32 0.0, %v2031
      %2033 = vmatmul.f32.gmra.mxu0 %v1930
      %v2034 = vpop.f32.mrf.mxu0
      %v2035 = vadd.f32 0.0, %v2034
      %2036 = vmatmul.f32.gmra.mxu0 %v1931
      %v2037 = vpop.f32.mrf.mxu0
      %v2038 = vadd.f32 0.0, %v2037
      %2039 = vmatmul.f32.gmra.mxu0 %v1932
      %v2040 = vpop.f32.mrf.mxu0
      %v2041 = vadd.f32 0.0, %v2040
      %2042 = vmatmul.f32.gmra.mxu0 %v1933
      %v2043 = vpop.f32.mrf.mxu0
      %v2044 = vadd.f32 0.0, %v2043
      %2045 = vmatmul.f32.gmra.mxu0 %v1934
      %v2046 = vpop.f32.mrf.mxu0
      %v2047 = vadd.f32 0.0, %v2046
      %2048 = vmatmul.f32.gmra.mxu0 %v1935
      %v2049 = vpop.f32.mrf.mxu0
      %v2050 = vadd.f32 0.0, %v2049
      %2051 = vmatmul.f32.gmra.mxu0 %v1936
      %v2052 = vpop.f32.mrf.mxu0
      %v2053 = vadd.f32 0.0, %v2052
      %2054 = vmatmul.f32.gmra.mxu0 %v1937
      %v2055 = vpop.f32.mrf.mxu0
      %v2056 = vadd.f32 0.0, %v2055
      %2057 = vmatmul.f32.gmra.mxu0 %v1938
      %v2058 = vpop.f32.mrf.mxu0
      %v2059 = vadd.f32 0.0, %v2058
      %2060 = vmatmul.f32.gmra.mxu0 %v1939
      %v2061 = vpop.f32.mrf.mxu0
      %v2062 = vadd.f32 0.0, %v2061
      %2063 = vmatmul.f32.gmra.mxu0 %v1940
      %v2064 = vpop.f32.mrf.mxu0
      %v2065 = vadd.f32 0.0, %v2064
      %2066 = vmatmul.f32.gmra.mxu0 %v1941
      %v2067 = vpop.f32.mrf.mxu0
      %v2068 = vadd.f32 0.0, %v2067
      %2069 = vmatmul.f32.gmra.mxu0 %v1942
      %v2070 = vpop.f32.mrf.mxu0
      %v2071 = vadd.f32 0.0, %v2070
      %2072 = vdwg.mxu0
      %v2073 = vadd.f32 %v1879, %v1978
      %v2074 = vadd.f32 %v1880, %v1981
      %v2075 = vadd.f32 %v1881, %v1984
      %v2076 = vadd.f32 %v1882, %v1987
      %v2077 = vadd.f32 %v1883, %v1990
      %v2078 = vadd.f32 %v1884, %v1993
      %v2079 = vadd.f32 %v1885, %v1996
      %v2080 = vadd.f32 %v1886, %v1999
      %v2081 = vadd.f32 %v1887, %v2002
      %v2082 = vadd.f32 %v1888, %v2005
      %v2083 = vadd.f32 %v1889, %v2008
      %v2084 = vadd.f32 %v1890, %v2011
      %v2085 = vadd.f32 %v1891, %v2014
      %v2086 = vadd.f32 %v1892, %v2017
      %v2087 = vadd.f32 %v1893, %v2020
      %v2088 = vadd.f32 %v1894, %v2023
      %v2089 = vadd.f32 %v1895, %v2026
      %v2090 = vadd.f32 %v1896, %v2029
      %v2091 = vadd.f32 %v1897, %v2032
      %v2092 = vadd.f32 %v1898, %v2035
      %v2093 = vadd.f32 %v1899, %v2038
      %v2094 = vadd.f32 %v1900, %v2041
      %v2095 = vadd.f32 %v1901, %v2044
      %v2096 = vadd.f32 %v1902, %v2047
      %v2097 = vadd.f32 %v1903, %v2050
      %v2098 = vadd.f32 %v1904, %v2053
      %v2099 = vadd.f32 %v1905, %v2056
      %v2100 = vadd.f32 %v1906, %v2059
      %v2101 = vadd.f32 %v1907, %v2062
      %v2102 = vadd.f32 %v1908, %v2065
      %v2103 = vadd.f32 %v1909, %v2068
      %v2104 = vadd.f32 %v1910, %v2071
      %v2105 = vld [vmem:[%s2] sm:$0x1]
      %v2107 = vperm.slane %v2105, 0
      %v2109 = vmul.f32 %v2073, %v2107
      %v2110 = vmul.f32 %v2074, %v2107
      %v2111 = vmul.f32 %v2075, %v2107
      %v2112 = vmul.f32 %v2076, %v2107
      %v2113 = vmul.f32 %v2077, %v2107
      %v2114 = vmul.f32 %v2078, %v2107
      %v2115 = vmul.f32 %v2079, %v2107
      %v2116 = vmul.f32 %v2080, %v2107
      %v2117 = vmul.f32 %v2081, %v2107
      %v2118 = vmul.f32 %v2082, %v2107
      %v2119 = vmul.f32 %v2083, %v2107
      %v2120 = vmul.f32 %v2084, %v2107
      %v2121 = vmul.f32 %v2085, %v2107
      %v2122 = vmul.f32 %v2086, %v2107
      %v2123 = vmul.f32 %v2087, %v2107
      %v2124 = vmul.f32 %v2088, %v2107
      %v2125 = vmul.f32 %v2089, %v2107
      %v2126 = vmul.f32 %v2090, %v2107
      %v2127 = vmul.f32 %v2091, %v2107
      %v2128 = vmul.f32 %v2092, %v2107
      %v2129 = vmul.f32 %v2093, %v2107
      %v2130 = vmul.f32 %v2094, %v2107
      %v2131 = vmul.f32 %v2095, %v2107
      %v2132 = vmul.f32 %v2096, %v2107
      %v2133 = vmul.f32 %v2097, %v2107
      %v2134 = vmul.f32 %v2098, %v2107
      %v2135 = vmul.f32 %v2099, %v2107
      %v2136 = vmul.f32 %v2100, %v2107
      %v2137 = vmul.f32 %v2101, %v2107
      %v2138 = vmul.f32 %v2102, %v2107
      %v2139 = vmul.f32 %v2103, %v2107
      %v2140 = vmul.f32 %v2104, %v2107
      %v2141 = vld [vmem:[%s3] sm:$0x1]
      %v2143 = vperm.slane %v2141, 0
      %v2145 = vadd.f32 %v2109, %v2143
      %v2146 = vadd.f32 %v2110, %v2143
      %v2147 = vadd.f32 %v2111, %v2143
      %v2148 = vadd.f32 %v2112, %v2143
      %v2149 = vadd.f32 %v2113, %v2143
      %v2150 = vadd.f32 %v2114, %v2143
      %v2151 = vadd.f32 %v2115, %v2143
      %v2152 = vadd.f32 %v2116, %v2143
      %v2153 = vadd.f32 %v2117, %v2143
      %v2154 = vadd.f32 %v2118, %v2143
      %v2155 = vadd.f32 %v2119, %v2143
      %v2156 = vadd.f32 %v2120, %v2143
      %v2157 = vadd.f32 %v2121, %v2143
      %v2158 = vadd.f32 %v2122, %v2143
      %v2159 = vadd.f32 %v2123, %v2143
      %v2160 = vadd.f32 %v2124, %v2143
      %v2161 = vadd.f32 %v2125, %v2143
      %v2162 = vadd.f32 %v2126, %v2143
      %v2163 = vadd.f32 %v2127, %v2143
      %v2164 = vadd.f32 %v2128, %v2143
      %v2165 = vadd.f32 %v2129, %v2143
      %v2166 = vadd.f32 %v2130, %v2143
      %v2167 = vadd.f32 %v2131, %v2143
      %v2168 = vadd.f32 %v2132, %v2143
      %v2169 = vadd.f32 %v2133, %v2143
      %v2170 = vadd.f32 %v2134, %v2143
      %v2171 = vadd.f32 %v2135, %v2143
      %v2172 = vadd.f32 %v2136, %v2143
      %v2173 = vadd.f32 %v2137, %v2143
      %v2174 = vadd.f32 %v2138, %v2143
      %v2175 = vadd.f32 %v2139, %v2143
      %v2176 = vadd.f32 %v2140, %v2143
      %v2177 = vmax.f32 %v2145, 0.0
      %v2178 = vmax.f32 %v2146, 0.0
      %v2179 = vmax.f32 %v2147, 0.0
      %v2180 = vmax.f32 %v2148, 0.0
      %v2181 = vmax.f32 %v2149, 0.0
      %v2182 = vmax.f32 %v2150, 0.0
      %v2183 = vmax.f32 %v2151, 0.0
      %v2184 = vmax.f32 %v2152, 0.0
      %v2185 = vmax.f32 %v2153, 0.0
      %v2186 = vmax.f32 %v2154, 0.0
      %v2187 = vmax.f32 %v2155, 0.0
      %v2188 = vmax.f32 %v2156, 0.0
      %v2189 = vmax.f32 %v2157, 0.0
      %v2190 = vmax.f32 %v2158, 0.0
      %v2191 = vmax.f32 %v2159, 0.0
      %v2192 = vmax.f32 %v2160, 0.0
      %v2193 = vmax.f32 %v2161, 0.0
      %v2194 = vmax.f32 %v2162, 0.0
      %v2195 = vmax.f32 %v2163, 0.0
      %v2196 = vmax.f32 %v2164, 0.0
      %v2197 = vmax.f32 %v2165, 0.0
      %v2198 = vmax.f32 %v2166, 0.0
      %v2199 = vmax.f32 %v2167, 0.0
      %v2200 = vmax.f32 %v2168, 0.0
      %v2201 = vmax.f32 %v2169, 0.0
      %v2202 = vmax.f32 %v2170, 0.0
      %v2203 = vmax.f32 %v2171, 0.0
      %v2204 = vmax.f32 %v2172, 0.0
      %v2205 = vmax.f32 %v2173, 0.0
      %v2206 = vmax.f32 %v2174, 0.0
      %v2207 = vmax.f32 %v2175, 0.0
      %v2208 = vmax.f32 %v2176, 0.0
      %2209 = vst [vmem:[%s326 + $0x1] sm:$0xff] %v2177
      %2210 = vst [vmem:[%s326 + $0x9] sm:$0xff] %v2178
      %2211 = vst [vmem:[%s326 + $0x19] sm:$0xff] %v2179
      %2212 = vst [vmem:[%s326 + $0x21] sm:$0xff] %v2180
      %2213 = vst [vmem:[%s326 + $0x31] sm:$0xff] %v2181
      %2214 = vst [vmem:[%s326 + $0x39] sm:$0xff] %v2182
      %2215 = vst [vmem:[%s326 + $0x49] sm:$0xff] %v2183
      %2216 = vst [vmem:[%s326 + $0x51] sm:$0xff] %v2184
      %2217 = vst [vmem:[%s326 + $0x61] sm:$0xff] %v2185
      %2218 = vst [vmem:[%s326 + $0x69] sm:$0xff] %v2186
      %2219 = vst [vmem:[%s326 + $0x79] sm:$0xff] %v2187
      %2220 = vst [vmem:[%s326 + $0x81] sm:$0xff] %v2188
      %2221 = vst [vmem:[%s326 + $0x91] sm:$0xff] %v2189
      %2222 = vst [vmem:[%s326 + $0x99] sm:$0xff] %v2190
      %2223 = vst [vmem:[%s326 + $0xa9] sm:$0xff] %v2191
      %2224 = vst [vmem:[%s326 + $0xb1] sm:$0xff] %v2192
      %2225 = vst [vmem:[%s326 + $0xc1] sm:$0xff] %v2193
      %2226 = vst [vmem:[%s326 + $0xc9] sm:$0xff] %v2194
      %2227 = vst [vmem:[%s326 + $0xd9] sm:$0xff] %v2195
      %2228 = vst [vmem:[%s326 + $0xe1] sm:$0xff] %v2196
      %2229 = vst [vmem:[%s326 + $0xf1] sm:$0xff] %v2197
      %2230 = vst [vmem:[%s326 + $0xf9] sm:$0xff] %v2198
      %2231 = vst [vmem:[%s326 + $0x109] sm:$0xff] %v2199
      %2232 = vst [vmem:[%s326 + $0x111] sm:$0xff] %v2200
      %2233 = vst [vmem:[%s326 + $0x121] sm:$0xff] %v2201
      %2234 = vst [vmem:[%s326 + $0x129] sm:$0xff] %v2202
      %2235 = vst [vmem:[%s326 + $0x139] sm:$0xff] %v2203
      %2236 = vst [vmem:[%s326 + $0x141] sm:$0xff] %v2204
      %2237 = vst [vmem:[%s326 + $0x151] sm:$0xff] %v2205
      %2238 = vst [vmem:[%s326 + $0x159] sm:$0xff] %v2206
      %2239 = vst [vmem:[%s326 + $0x169] sm:$0xff] %v2207
      %2240 = vst [vmem:[%s326 + $0x171] sm:$0xff] %v2208
      %v2241 = vld [vmem:[#allocation3] sm:$0xff]
      %v2242 = vld [vmem:[#allocation3 + $0x8] sm:$0xff]
      %v2243 = vld [vmem:[#allocation3 + $0x18] sm:$0xff]
      %v2244 = vld [vmem:[#allocation3 + $0x20] sm:$0xff]
      %v2245 = vld [vmem:[#allocation3 + $0x30] sm:$0xff]
      %v2246 = vld [vmem:[#allocation3 + $0x38] sm:$0xff]
      %v2247 = vld [vmem:[#allocation3 + $0x48] sm:$0xff]
      %v2248 = vld [vmem:[#allocation3 + $0x50] sm:$0xff]
      %v2249 = vld [vmem:[#allocation3 + $0x60] sm:$0xff]
      %v2250 = vld [vmem:[#allocation3 + $0x68] sm:$0xff]
      %v2251 = vld [vmem:[#allocation3 + $0x78] sm:$0xff]
      %v2252 = vld [vmem:[#allocation3 + $0x80] sm:$0xff]
      %v2253 = vld [vmem:[#allocation3 + $0x90] sm:$0xff]
      %v2254 = vld [vmem:[#allocation3 + $0x98] sm:$0xff]
      %v2255 = vld [vmem:[#allocation3 + $0xa8] sm:$0xff]
      %v2256 = vld [vmem:[#allocation3 + $0xb0] sm:$0xff]
      %v2257 = vld [vmem:[#allocation3 + $0xc0] sm:$0xff]
      %v2258 = vld [vmem:[#allocation3 + $0xc8] sm:$0xff]
      %v2259 = vld [vmem:[#allocation3 + $0xd8] sm:$0xff]
      %v2260 = vld [vmem:[#allocation3 + $0xe0] sm:$0xff]
      %v2261 = vld [vmem:[#allocation3 + $0xf0] sm:$0xff]
      %v2262 = vld [vmem:[#allocation3 + $0xf8] sm:$0xff]
      %v2263 = vld [vmem:[#allocation3 + $0x108] sm:$0xff]
      %v2264 = vld [vmem:[#allocation3 + $0x110] sm:$0xff]
      %v2265 = vld [vmem:[#allocation3 + $0x120] sm:$0xff]
      %v2266 = vld [vmem:[#allocation3 + $0x128] sm:$0xff]
      %v2267 = vld [vmem:[#allocation3 + $0x138] sm:$0xff]
      %v2268 = vld [vmem:[#allocation3 + $0x140] sm:$0xff]
      %v2269 = vld [vmem:[#allocation3 + $0x150] sm:$0xff]
      %v2270 = vld [vmem:[#allocation3 + $0x158] sm:$0xff]
      %v2271 = vld [vmem:[#allocation3 + $0x168] sm:$0xff]
      %v2272 = vld [vmem:[#allocation3 + $0x170] sm:$0xff]
      %v2273 = vld [vmem:[%s4] sm:$0xff]
      %v2274 = vld [vmem:[%s4 + $0x8] sm:$0xff]
      %v2275 = vld [vmem:[%s4 + $0x10] sm:$0xff]
      %v2276 = vld [vmem:[%s4 + $0x18] sm:$0xff]
      %v2277 = vld [vmem:[%s4 + $0x20] sm:$0xff]
      %v2278 = vld [vmem:[%s4 + $0x28] sm:$0xff]
      %v2279 = vld [vmem:[%s4 + $0x30] sm:$0xff]
      %v2280 = vld [vmem:[%s4 + $0x38] sm:$0xff]
      %v2281 = vld [vmem:[%s4 + $0x40] sm:$0xff]
      %v2282 = vld [vmem:[%s4 + $0x48] sm:$0xff]
      %v2283 = vld [vmem:[%s4 + $0x50] sm:$0xff]
      %v2284 = vld [vmem:[%s4 + $0x58] sm:$0xff]
      %v2285 = vld [vmem:[%s4 + $0x60] sm:$0xff]
      %v2286 = vld [vmem:[%s4 + $0x68] sm:$0xff]
      %v2287 = vld [vmem:[%s4 + $0x70] sm:$0xff]
      %v2288 = vld [vmem:[%s4 + $0x78] sm:$0xff]
      %v2289 = vld [vmem:[#allocation3 + $0x1] sm:$0xff]
      %v2290 = vld [vmem:[#allocation3 + $0x9] sm:$0xff]
      %v2291 = vld [vmem:[#allocation3 + $0x19] sm:$0xff]
      %v2292 = vld [vmem:[#allocation3 + $0x21] sm:$0xff]
      %v2293 = vld [vmem:[#allocation3 + $0x31] sm:$0xff]
      %v2294 = vld [vmem:[#allocation3 + $0x39] sm:$0xff]
      %v2295 = vld [vmem:[#allocation3 + $0x49] sm:$0xff]
      %v2296 = vld [vmem:[#allocation3 + $0x51] sm:$0xff]
      %v2297 = vld [vmem:[#allocation3 + $0x61] sm:$0xff]
      %v2298 = vld [vmem:[#allocation3 + $0x69] sm:$0xff]
      %v2299 = vld [vmem:[#allocation3 + $0x79] sm:$0xff]
      %v2300 = vld [vmem:[#allocation3 + $0x81] sm:$0xff]
      %v2301 = vld [vmem:[#allocation3 + $0x91] sm:$0xff]
      %v2302 = vld [vmem:[#allocation3 + $0x99] sm:$0xff]
      %v2303 = vld [vmem:[#allocation3 + $0xa9] sm:$0xff]
      %v2304 = vld [vmem:[#allocation3 + $0xb1] sm:$0xff]
      %v2305 = vld [vmem:[#allocation3 + $0xc1] sm:$0xff]
      %v2306 = vld [vmem:[#allocation3 + $0xc9] sm:$0xff]
      %v2307 = vld [vmem:[#allocation3 + $0xd9] sm:$0xff]
      %v2308 = vld [vmem:[#allocation3 + $0xe1] sm:$0xff]
      %v2309 = vld [vmem:[#allocation3 + $0xf1] sm:$0xff]
      %v2310 = vld [vmem:[#allocation3 + $0xf9] sm:$0xff]
      %v2311 = vld [vmem:[#allocation3 + $0x109] sm:$0xff]
      %v2312 = vld [vmem:[#allocation3 + $0x111] sm:$0xff]
      %v2313 = vld [vmem:[#allocation3 + $0x121] sm:$0xff]
      %v2314 = vld [vmem:[#allocation3 + $0x129] sm:$0xff]
      %v2315 = vld [vmem:[#allocation3 + $0x139] sm:$0xff]
      %v2316 = vld [vmem:[#allocation3 + $0x141] sm:$0xff]
      %v2317 = vld [vmem:[#allocation3 + $0x151] sm:$0xff]
      %v2318 = vld [vmem:[#allocation3 + $0x159] sm:$0xff]
      %v2319 = vld [vmem:[#allocation3 + $0x169] sm:$0xff]
      %v2320 = vld [vmem:[#allocation3 + $0x171] sm:$0xff]
      %s2321 = scalar_lea.vmem %s4, 128
      %v2322 = vld [vmem:[%s2321] sm:$0xff]
      %v2323 = vld [vmem:[%s2321 + $0x8] sm:$0xff]
      %v2324 = vld [vmem:[%s2321 + $0x10] sm:$0xff]
      %v2325 = vld [vmem:[%s2321 + $0x18] sm:$0xff]
      %v2326 = vld [vmem:[%s2321 + $0x20] sm:$0xff]
      %v2327 = vld [vmem:[%s2321 + $0x28] sm:$0xff]
      %v2328 = vld [vmem:[%s2321 + $0x30] sm:$0xff]
      %v2329 = vld [vmem:[%s2321 + $0x38] sm:$0xff]
      %v2330 = vld [vmem:[%s2321 + $0x40] sm:$0xff]
      %v2331 = vld [vmem:[%s2321 + $0x48] sm:$0xff]
      %v2332 = vld [vmem:[%s2321 + $0x50] sm:$0xff]
      %v2333 = vld [vmem:[%s2321 + $0x58] sm:$0xff]
      %v2334 = vld [vmem:[%s2321 + $0x60] sm:$0xff]
      %v2335 = vld [vmem:[%s2321 + $0x68] sm:$0xff]
      %v2336 = vld [vmem:[%s2321 + $0x70] sm:$0xff]
      %v2337 = vld [vmem:[%s2321 + $0x78] sm:$0xff]
      %2338 = vmatpush.msra.mxu0 %v2337
      %2339 = vmatpush.msra.mxu0 %v2336
      %2340 = vmatpush.msra.mxu0 %v2335
      %2341 = vmatpush.msra.mxu0 %v2334
      %2342 = vmatpush.msra.mxu0 %v2333
      %2343 = vmatpush.msra.mxu0 %v2332
      %2344 = vmatpush.msra.mxu0 %v2331
      %2345 = vmatpush.msra.mxu0 %v2330
      %2346 = vmatpush.msra.mxu0 %v2329
      %2347 = vmatpush.msra.mxu0 %v2328
      %2348 = vmatpush.msra.mxu0 %v2327
      %2349 = vmatpush.msra.mxu0 %v2326
      %2350 = vmatpush.msra.mxu0 %v2325
      %2351 = vmatpush.msra.mxu0 %v2324
      %2352 = vmatpush.msra.mxu0 %v2323
      %2353 = vmatpush.msra.mxu0 %v2322
      %2354 = vmatmul.f32.gmra.mxu0 %v2289
      %v2355 = vpop.f32.mrf.mxu0
      %v2356 = vadd.f32 0.0, %v2355
      %2357 = vmatmul.f32.gmra.mxu0 %v2290
      %v2358 = vpop.f32.mrf.mxu0
      %v2359 = vadd.f32 0.0, %v2358
      %2360 = vmatmul.f32.gmra.mxu0 %v2291
      %v2361 = vpop.f32.mrf.mxu0
      %v2362 = vadd.f32 0.0, %v2361
      %2363 = vmatmul.f32.gmra.mxu0 %v2292
      %v2364 = vpop.f32.mrf.mxu0
      %v2365 = vadd.f32 0.0, %v2364
      %2366 = vmatmul.f32.gmra.mxu0 %v2293
      %v2367 = vpop.f32.mrf.mxu0
      %v2368 = vadd.f32 0.0, %v2367
      %2369 = vmatmul.f32.gmra.mxu0 %v2294
      %v2370 = vpop.f32.mrf.mxu0
      %v2371 = vadd.f32 0.0, %v2370
      %2372 = vmatmul.f32.gmra.mxu0 %v2295
      %v2373 = vpop.f32.mrf.mxu0
      %v2374 = vadd.f32 0.0, %v2373
      %2375 = vmatmul.f32.gmra.mxu0 %v2296
      %v2376 = vpop.f32.mrf.mxu0
      %v2377 = vadd.f32 0.0, %v2376
      %2378 = vmatmul.f32.gmra.mxu0 %v2297
      %v2379 = vpop.f32.mrf.mxu0
      %v2380 = vadd.f32 0.0, %v2379
      %2381 = vmatmul.f32.gmra.mxu0 %v2298
      %v2382 = vpop.f32.mrf.mxu0
      %v2383 = vadd.f32 0.0, %v2382
      %2384 = vmatmul.f32.gmra.mxu0 %v2299
      %v2385 = vpop.f32.mrf.mxu0
      %v2386 = vadd.f32 0.0, %v2385
      %2387 = vmatmul.f32.gmra.mxu0 %v2300
      %v2388 = vpop.f32.mrf.mxu0
      %v2389 = vadd.f32 0.0, %v2388
      %2390 = vmatmul.f32.gmra.mxu0 %v2301
      %v2391 = vpop.f32.mrf.mxu0
      %v2392 = vadd.f32 0.0, %v2391
      %2393 = vmatmul.f32.gmra.mxu0 %v2302
      %v2394 = vpop.f32.mrf.mxu0
      %v2395 = vadd.f32 0.0, %v2394
      %2396 = vmatmul.f32.gmra.mxu0 %v2303
      %v2397 = vpop.f32.mrf.mxu0
      %v2398 = vadd.f32 0.0, %v2397
      %2399 = vmatmul.f32.gmra.mxu0 %v2304
      %v2400 = vpop.f32.mrf.mxu0
      %v2401 = vadd.f32 0.0, %v2400
      %2402 = vmatmul.f32.gmra.mxu0 %v2305
      %v2403 = vpop.f32.mrf.mxu0
      %v2404 = vadd.f32 0.0, %v2403
      %2405 = vmatmul.f32.gmra.mxu0 %v2306
      %v2406 = vpop.f32.mrf.mxu0
      %v2407 = vadd.f32 0.0, %v2406
      %2408 = vmatmul.f32.gmra.mxu0 %v2307
      %v2409 = vpop.f32.mrf.mxu0
      %v2410 = vadd.f32 0.0, %v2409
      %2411 = vmatmul.f32.gmra.mxu0 %v2308
      %v2412 = vpop.f32.mrf.mxu0
      %v2413 = vadd.f32 0.0, %v2412
      %2414 = vmatmul.f32.gmra.mxu0 %v2309
      %v2415 = vpop.f32.mrf.mxu0
      %v2416 = vadd.f32 0.0, %v2415
      %2417 = vmatmul.f32.gmra.mxu0 %v2310
      %v2418 = vpop.f32.mrf.mxu0
      %v2419 = vadd.f32 0.0, %v2418
      %2420 = vmatmul.f32.gmra.mxu0 %v2311
      %v2421 = vpop.f32.mrf.mxu0
      %v2422 = vadd.f32 0.0, %v2421
      %2423 = vmatmul.f32.gmra.mxu0 %v2312
      %v2424 = vpop.f32.mrf.mxu0
      %v2425 = vadd.f32 0.0, %v2424
      %2426 = vmatmul.f32.gmra.mxu0 %v2313
      %v2427 = vpop.f32.mrf.mxu0
      %v2428 = vadd.f32 0.0, %v2427
      %2429 = vmatmul.f32.gmra.mxu0 %v2314
      %v2430 = vpop.f32.mrf.mxu0
      %v2431 = vadd.f32 0.0, %v2430
      %2432 = vmatmul.f32.gmra.mxu0 %v2315
      %v2433 = vpop.f32.mrf.mxu0
      %v2434 = vadd.f32 0.0, %v2433
      %2435 = vmatmul.f32.gmra.mxu0 %v2316
      %v2436 = vpop.f32.mrf.mxu0
      %v2437 = vadd.f32 0.0, %v2436
      %2438 = vmatmul.f32.gmra.mxu0 %v2317
      %v2439 = vpop.f32.mrf.mxu0
      %v2440 = vadd.f32 0.0, %v2439
      %2441 = vmatmul.f32.gmra.mxu0 %v2318
      %v2442 = vpop.f32.mrf.mxu0
      %v2443 = vadd.f32 0.0, %v2442
      %2444 = vmatmul.f32.gmra.mxu0 %v2319
      %v2445 = vpop.f32.mrf.mxu0
      %v2446 = vadd.f32 0.0, %v2445
      %2447 = vmatmul.f32.gmra.mxu0 %v2320
      %v2448 = vpop.f32.mrf.mxu0
      %v2449 = vadd.f32 0.0, %v2448
      %2450 = vdwg.mxu0
      %2451 = vmatpush.msra.mxu0 %v2288
      %2452 = vmatpush.msra.mxu0 %v2287
      %2453 = vmatpush.msra.mxu0 %v2286
      %2454 = vmatpush.msra.mxu0 %v2285
      %2455 = vmatpush.msra.mxu0 %v2284
      %2456 = vmatpush.msra.mxu0 %v2283
      %2457 = vmatpush.msra.mxu0 %v2282
      %2458 = vmatpush.msra.mxu0 %v2281
      %2459 = vmatpush.msra.mxu0 %v2280
      %2460 = vmatpush.msra.mxu0 %v2279
      %2461 = vmatpush.msra.mxu0 %v2278
      %2462 = vmatpush.msra.mxu0 %v2277
      %2463 = vmatpush.msra.mxu0 %v2276
      %2464 = vmatpush.msra.mxu0 %v2275
      %2465 = vmatpush.msra.mxu0 %v2274
      %2466 = vmatpush.msra.mxu0 %v2273
      %2467 = vmatmul.f32.gmra.mxu0 %v2241
      %v2468 = vpop.f32.mrf.mxu0
      %v2469 = vadd.f32 %v2356, %v2468
      %2470 = vmatmul.f32.gmra.mxu0 %v2242
      %v2471 = vpop.f32.mrf.mxu0
      %v2472 = vadd.f32 %v2359, %v2471
      %2473 = vmatmul.f32.gmra.mxu0 %v2243
      %v2474 = vpop.f32.mrf.mxu0
      %v2475 = vadd.f32 %v2362, %v2474
      %2476 = vmatmul.f32.gmra.mxu0 %v2244
      %v2477 = vpop.f32.mrf.mxu0
      %v2478 = vadd.f32 %v2365, %v2477
      %2479 = vmatmul.f32.gmra.mxu0 %v2245
      %v2480 = vpop.f32.mrf.mxu0
      %v2481 = vadd.f32 %v2368, %v2480
      %2482 = vmatmul.f32.gmra.mxu0 %v2246
      %v2483 = vpop.f32.mrf.mxu0
      %v2484 = vadd.f32 %v2371, %v2483
      %2485 = vmatmul.f32.gmra.mxu0 %v2247
      %v2486 = vpop.f32.mrf.mxu0
      %v2487 = vadd.f32 %v2374, %v2486
      %2488 = vmatmul.f32.gmra.mxu0 %v2248
      %v2489 = vpop.f32.mrf.mxu0
      %v2490 = vadd.f32 %v2377, %v2489
      %2491 = vmatmul.f32.gmra.mxu0 %v2249
      %v2492 = vpop.f32.mrf.mxu0
      %v2493 = vadd.f32 %v2380, %v2492
      %2494 = vmatmul.f32.gmra.mxu0 %v2250
      %v2495 = vpop.f32.mrf.mxu0
      %v2496 = vadd.f32 %v2383, %v2495
      %2497 = vmatmul.f32.gmra.mxu0 %v2251
      %v2498 = vpop.f32.mrf.mxu0
      %v2499 = vadd.f32 %v2386, %v2498
      %2500 = vmatmul.f32.gmra.mxu0 %v2252
      %v2501 = vpop.f32.mrf.mxu0
      %v2502 = vadd.f32 %v2389, %v2501
      %2503 = vmatmul.f32.gmra.mxu0 %v2253
      %v2504 = vpop.f32.mrf.mxu0
      %v2505 = vadd.f32 %v2392, %v2504
      %2506 = vmatmul.f32.gmra.mxu0 %v2254
      %v2507 = vpop.f32.mrf.mxu0
      %v2508 = vadd.f32 %v2395, %v2507
      %2509 = vmatmul.f32.gmra.mxu0 %v2255
      %v2510 = vpop.f32.mrf.mxu0
      %v2511 = vadd.f32 %v2398, %v2510
      %2512 = vmatmul.f32.gmra.mxu0 %v2256
      %v2513 = vpop.f32.mrf.mxu0
      %v2514 = vadd.f32 %v2401, %v2513
      %2515 = vmatmul.f32.gmra.mxu0 %v2257
      %v2516 = vpop.f32.mrf.mxu0
      %v2517 = vadd.f32 %v2404, %v2516
      %2518 = vmatmul.f32.gmra.mxu0 %v2258
      %v2519 = vpop.f32.mrf.mxu0
      %v2520 = vadd.f32 %v2407, %v2519
      %2521 = vmatmul.f32.gmra.mxu0 %v2259
      %v2522 = vpop.f32.mrf.mxu0
      %v2523 = vadd.f32 %v2410, %v2522
      %2524 = vmatmul.f32.gmra.mxu0 %v2260
      %v2525 = vpop.f32.mrf.mxu0
      %v2526 = vadd.f32 %v2413, %v2525
      %2527 = vmatmul.f32.gmra.mxu0 %v2261
      %v2528 = vpop.f32.mrf.mxu0
      %v2529 = vadd.f32 %v2416, %v2528
      %2530 = vmatmul.f32.gmra.mxu0 %v2262
      %v2531 = vpop.f32.mrf.mxu0
      %v2532 = vadd.f32 %v2419, %v2531
      %2533 = vmatmul.f32.gmra.mxu0 %v2263
      %v2534 = vpop.f32.mrf.mxu0
      %v2535 = vadd.f32 %v2422, %v2534
      %2536 = vmatmul.f32.gmra.mxu0 %v2264
      %v2537 = vpop.f32.mrf.mxu0
      %v2538 = vadd.f32 %v2425, %v2537
      %2539 = vmatmul.f32.gmra.mxu0 %v2265
      %v2540 = vpop.f32.mrf.mxu0
      %v2541 = vadd.f32 %v2428, %v2540
      %2542 = vmatmul.f32.gmra.mxu0 %v2266
      %v2543 = vpop.f32.mrf.mxu0
      %v2544 = vadd.f32 %v2431, %v2543
      %2545 = vmatmul.f32.gmra.mxu0 %v2267
      %v2546 = vpop.f32.mrf.mxu0
      %v2547 = vadd.f32 %v2434, %v2546
      %2548 = vmatmul.f32.gmra.mxu0 %v2268
      %v2549 = vpop.f32.mrf.mxu0
      %v2550 = vadd.f32 %v2437, %v2549
      %2551 = vmatmul.f32.gmra.mxu0 %v2269
      %v2552 = vpop.f32.mrf.mxu0
      %v2553 = vadd.f32 %v2440, %v2552
      %2554 = vmatmul.f32.gmra.mxu0 %v2270
      %v2555 = vpop.f32.mrf.mxu0
      %v2556 = vadd.f32 %v2443, %v2555
      %2557 = vmatmul.f32.gmra.mxu0 %v2271
      %v2558 = vpop.f32.mrf.mxu0
      %v2559 = vadd.f32 %v2446, %v2558
      %2560 = vmatmul.f32.gmra.mxu0 %v2272
      %v2561 = vpop.f32.mrf.mxu0
      %v2562 = vadd.f32 %v2449, %v2561
      %2563 = vdwg.mxu0
      %v2564 = vld [vmem:[#allocation3 + $0x2] sm:$0xff]
      %v2565 = vld [vmem:[#allocation3 + $0xa] sm:$0xff]
      %v2566 = vld [vmem:[#allocation3 + $0x1a] sm:$0xff]
      %v2567 = vld [vmem:[#allocation3 + $0x22] sm:$0xff]
      %v2568 = vld [vmem:[#allocation3 + $0x32] sm:$0xff]
      %v2569 = vld [vmem:[#allocation3 + $0x3a] sm:$0xff]
      %v2570 = vld [vmem:[#allocation3 + $0x4a] sm:$0xff]
      %v2571 = vld [vmem:[#allocation3 + $0x52] sm:$0xff]
      %v2572 = vld [vmem:[#allocation3 + $0x62] sm:$0xff]
      %v2573 = vld [vmem:[#allocation3 + $0x6a] sm:$0xff]
      %v2574 = vld [vmem:[#allocation3 + $0x7a] sm:$0xff]
      %v2575 = vld [vmem:[#allocation3 + $0x82] sm:$0xff]
      %v2576 = vld [vmem:[#allocation3 + $0x92] sm:$0xff]
      %v2577 = vld [vmem:[#allocation3 + $0x9a] sm:$0xff]
      %v2578 = vld [vmem:[#allocation3 + $0xaa] sm:$0xff]
      %v2579 = vld [vmem:[#allocation3 + $0xb2] sm:$0xff]
      %v2580 = vld [vmem:[#allocation3 + $0xc2] sm:$0xff]
      %v2581 = vld [vmem:[#allocation3 + $0xca] sm:$0xff]
      %v2582 = vld [vmem:[#allocation3 + $0xda] sm:$0xff]
      %v2583 = vld [vmem:[#allocation3 + $0xe2] sm:$0xff]
      %v2584 = vld [vmem:[#allocation3 + $0xf2] sm:$0xff]
      %v2585 = vld [vmem:[#allocation3 + $0xfa] sm:$0xff]
      %v2586 = vld [vmem:[#allocation3 + $0x10a] sm:$0xff]
      %v2587 = vld [vmem:[#allocation3 + $0x112] sm:$0xff]
      %v2588 = vld [vmem:[#allocation3 + $0x122] sm:$0xff]
      %v2589 = vld [vmem:[#allocation3 + $0x12a] sm:$0xff]
      %v2590 = vld [vmem:[#allocation3 + $0x13a] sm:$0xff]
      %v2591 = vld [vmem:[#allocation3 + $0x142] sm:$0xff]
      %v2592 = vld [vmem:[#allocation3 + $0x152] sm:$0xff]
      %v2593 = vld [vmem:[#allocation3 + $0x15a] sm:$0xff]
      %v2594 = vld [vmem:[#allocation3 + $0x16a] sm:$0xff]
      %v2595 = vld [vmem:[#allocation3 + $0x172] sm:$0xff]
      %s2596 = scalar_lea.vmem %s4, 256
      %v2597 = vld [vmem:[%s2596] sm:$0xff]
      %v2598 = vld [vmem:[%s2596 + $0x8] sm:$0xff]
      %v2599 = vld [vmem:[%s2596 + $0x10] sm:$0xff]
      %v2600 = vld [vmem:[%s2596 + $0x18] sm:$0xff]
      %v2601 = vld [vmem:[%s2596 + $0x20] sm:$0xff]
      %v2602 = vld [vmem:[%s2596 + $0x28] sm:$0xff]
      %v2603 = vld [vmem:[%s2596 + $0x30] sm:$0xff]
      %v2604 = vld [vmem:[%s2596 + $0x38] sm:$0xff]
      %v2605 = vld [vmem:[%s2596 + $0x40] sm:$0xff]
      %v2606 = vld [vmem:[%s2596 + $0x48] sm:$0xff]
      %v2607 = vld [vmem:[%s2596 + $0x50] sm:$0xff]
      %v2608 = vld [vmem:[%s2596 + $0x58] sm:$0xff]
      %v2609 = vld [vmem:[%s2596 + $0x60] sm:$0xff]
      %v2610 = vld [vmem:[%s2596 + $0x68] sm:$0xff]
      %v2611 = vld [vmem:[%s2596 + $0x70] sm:$0xff]
      %v2612 = vld [vmem:[%s2596 + $0x78] sm:$0xff]
      %2613 = vmatpush.msra.mxu0 %v2612
      %2614 = vmatpush.msra.mxu0 %v2611
      %2615 = vmatpush.msra.mxu0 %v2610
      %2616 = vmatpush.msra.mxu0 %v2609
      %2617 = vmatpush.msra.mxu0 %v2608
      %2618 = vmatpush.msra.mxu0 %v2607
      %2619 = vmatpush.msra.mxu0 %v2606
      %2620 = vmatpush.msra.mxu0 %v2605
      %2621 = vmatpush.msra.mxu0 %v2604
      %2622 = vmatpush.msra.mxu0 %v2603
      %2623 = vmatpush.msra.mxu0 %v2602
      %2624 = vmatpush.msra.mxu0 %v2601
      %2625 = vmatpush.msra.mxu0 %v2600
      %2626 = vmatpush.msra.mxu0 %v2599
      %2627 = vmatpush.msra.mxu0 %v2598
      %2628 = vmatpush.msra.mxu0 %v2597
      %2629 = vmatmul.f32.gmra.mxu0 %v2564
      %v2630 = vpop.f32.mrf.mxu0
      %v2631 = vadd.f32 0.0, %v2630
      %2632 = vmatmul.f32.gmra.mxu0 %v2565
      %v2633 = vpop.f32.mrf.mxu0
      %v2634 = vadd.f32 0.0, %v2633
      %2635 = vmatmul.f32.gmra.mxu0 %v2566
      %v2636 = vpop.f32.mrf.mxu0
      %v2637 = vadd.f32 0.0, %v2636
      %2638 = vmatmul.f32.gmra.mxu0 %v2567
      %v2639 = vpop.f32.mrf.mxu0
      %v2640 = vadd.f32 0.0, %v2639
      %2641 = vmatmul.f32.gmra.mxu0 %v2568
      %v2642 = vpop.f32.mrf.mxu0
      %v2643 = vadd.f32 0.0, %v2642
      %2644 = vmatmul.f32.gmra.mxu0 %v2569
      %v2645 = vpop.f32.mrf.mxu0
      %v2646 = vadd.f32 0.0, %v2645
      %2647 = vmatmul.f32.gmra.mxu0 %v2570
      %v2648 = vpop.f32.mrf.mxu0
      %v2649 = vadd.f32 0.0, %v2648
      %2650 = vmatmul.f32.gmra.mxu0 %v2571
      %v2651 = vpop.f32.mrf.mxu0
      %v2652 = vadd.f32 0.0, %v2651
      %2653 = vmatmul.f32.gmra.mxu0 %v2572
      %v2654 = vpop.f32.mrf.mxu0
      %v2655 = vadd.f32 0.0, %v2654
      %2656 = vmatmul.f32.gmra.mxu0 %v2573
      %v2657 = vpop.f32.mrf.mxu0
      %v2658 = vadd.f32 0.0, %v2657
      %2659 = vmatmul.f32.gmra.mxu0 %v2574
      %v2660 = vpop.f32.mrf.mxu0
      %v2661 = vadd.f32 0.0, %v2660
      %2662 = vmatmul.f32.gmra.mxu0 %v2575
      %v2663 = vpop.f32.mrf.mxu0
      %v2664 = vadd.f32 0.0, %v2663
      %2665 = vmatmul.f32.gmra.mxu0 %v2576
      %v2666 = vpop.f32.mrf.mxu0
      %v2667 = vadd.f32 0.0, %v2666
      %2668 = vmatmul.f32.gmra.mxu0 %v2577
      %v2669 = vpop.f32.mrf.mxu0
      %v2670 = vadd.f32 0.0, %v2669
      %2671 = vmatmul.f32.gmra.mxu0 %v2578
      %v2672 = vpop.f32.mrf.mxu0
      %v2673 = vadd.f32 0.0, %v2672
      %2674 = vmatmul.f32.gmra.mxu0 %v2579
      %v2675 = vpop.f32.mrf.mxu0
      %v2676 = vadd.f32 0.0, %v2675
      %2677 = vmatmul.f32.gmra.mxu0 %v2580
      %v2678 = vpop.f32.mrf.mxu0
      %v2679 = vadd.f32 0.0, %v2678
      %2680 = vmatmul.f32.gmra.mxu0 %v2581
      %v2681 = vpop.f32.mrf.mxu0
      %v2682 = vadd.f32 0.0, %v2681
      %2683 = vmatmul.f32.gmra.mxu0 %v2582
      %v2684 = vpop.f32.mrf.mxu0
      %v2685 = vadd.f32 0.0, %v2684
      %2686 = vmatmul.f32.gmra.mxu0 %v2583
      %v2687 = vpop.f32.mrf.mxu0
      %v2688 = vadd.f32 0.0, %v2687
      %2689 = vmatmul.f32.gmra.mxu0 %v2584
      %v2690 = vpop.f32.mrf.mxu0
      %v2691 = vadd.f32 0.0, %v2690
      %2692 = vmatmul.f32.gmra.mxu0 %v2585
      %v2693 = vpop.f32.mrf.mxu0
      %v2694 = vadd.f32 0.0, %v2693
      %2695 = vmatmul.f32.gmra.mxu0 %v2586
      %v2696 = vpop.f32.mrf.mxu0
      %v2697 = vadd.f32 0.0, %v2696
      %2698 = vmatmul.f32.gmra.mxu0 %v2587
      %v2699 = vpop.f32.mrf.mxu0
      %v2700 = vadd.f32 0.0, %v2699
      %2701 = vmatmul.f32.gmra.mxu0 %v2588
      %v2702 = vpop.f32.mrf.mxu0
      %v2703 = vadd.f32 0.0, %v2702
      %2704 = vmatmul.f32.gmra.mxu0 %v2589
      %v2705 = vpop.f32.mrf.mxu0
      %v2706 = vadd.f32 0.0, %v2705
      %2707 = vmatmul.f32.gmra.mxu0 %v2590
      %v2708 = vpop.f32.mrf.mxu0
      %v2709 = vadd.f32 0.0, %v2708
      %2710 = vmatmul.f32.gmra.mxu0 %v2591
      %v2711 = vpop.f32.mrf.mxu0
      %v2712 = vadd.f32 0.0, %v2711
      %2713 = vmatmul.f32.gmra.mxu0 %v2592
      %v2714 = vpop.f32.mrf.mxu0
      %v2715 = vadd.f32 0.0, %v2714
      %2716 = vmatmul.f32.gmra.mxu0 %v2593
      %v2717 = vpop.f32.mrf.mxu0
      %v2718 = vadd.f32 0.0, %v2717
      %2719 = vmatmul.f32.gmra.mxu0 %v2594
      %v2720 = vpop.f32.mrf.mxu0
      %v2721 = vadd.f32 0.0, %v2720
      %2722 = vmatmul.f32.gmra.mxu0 %v2595
      %v2723 = vpop.f32.mrf.mxu0
      %v2724 = vadd.f32 0.0, %v2723
      %2725 = vdwg.mxu0
      %v2726 = vadd.f32 %v2469, %v2631
      %v2727 = vadd.f32 %v2472, %v2634
      %v2728 = vadd.f32 %v2475, %v2637
      %v2729 = vadd.f32 %v2478, %v2640
      %v2730 = vadd.f32 %v2481, %v2643
      %v2731 = vadd.f32 %v2484, %v2646
      %v2732 = vadd.f32 %v2487, %v2649
      %v2733 = vadd.f32 %v2490, %v2652
      %v2734 = vadd.f32 %v2493, %v2655
      %v2735 = vadd.f32 %v2496, %v2658
      %v2736 = vadd.f32 %v2499, %v2661
      %v2737 = vadd.f32 %v2502, %v2664
      %v2738 = vadd.f32 %v2505, %v2667
      %v2739 = vadd.f32 %v2508, %v2670
      %v2740 = vadd.f32 %v2511, %v2673
      %v2741 = vadd.f32 %v2514, %v2676
      %v2742 = vadd.f32 %v2517, %v2679
      %v2743 = vadd.f32 %v2520, %v2682
      %v2744 = vadd.f32 %v2523, %v2685
      %v2745 = vadd.f32 %v2526, %v2688
      %v2746 = vadd.f32 %v2529, %v2691
      %v2747 = vadd.f32 %v2532, %v2694
      %v2748 = vadd.f32 %v2535, %v2697
      %v2749 = vadd.f32 %v2538, %v2700
      %v2750 = vadd.f32 %v2541, %v2703
      %v2751 = vadd.f32 %v2544, %v2706
      %v2752 = vadd.f32 %v2547, %v2709
      %v2753 = vadd.f32 %v2550, %v2712
      %v2754 = vadd.f32 %v2553, %v2715
      %v2755 = vadd.f32 %v2556, %v2718
      %v2756 = vadd.f32 %v2559, %v2721
      %v2757 = vadd.f32 %v2562, %v2724
      %v2758 = vld [vmem:[%s326] sm:$0xff]
      %v2759 = vld [vmem:[%s326 + $0x8] sm:$0xff]
      %v2760 = vld [vmem:[%s326 + $0x18] sm:$0xff]
      %v2761 = vld [vmem:[%s326 + $0x20] sm:$0xff]
      %v2762 = vld [vmem:[%s326 + $0x30] sm:$0xff]
      %v2763 = vld [vmem:[%s326 + $0x38] sm:$0xff]
      %v2764 = vld [vmem:[%s326 + $0x48] sm:$0xff]
      %v2765 = vld [vmem:[%s326 + $0x50] sm:$0xff]
      %v2766 = vld [vmem:[%s326 + $0x60] sm:$0xff]
      %v2767 = vld [vmem:[%s326 + $0x68] sm:$0xff]
      %v2768 = vld [vmem:[%s326 + $0x78] sm:$0xff]
      %v2769 = vld [vmem:[%s326 + $0x80] sm:$0xff]
      %v2770 = vld [vmem:[%s326 + $0x90] sm:$0xff]
      %v2771 = vld [vmem:[%s326 + $0x98] sm:$0xff]
      %v2772 = vld [vmem:[%s326 + $0xa8] sm:$0xff]
      %v2773 = vld [vmem:[%s326 + $0xb0] sm:$0xff]
      %v2774 = vld [vmem:[%s326 + $0xc0] sm:$0xff]
      %v2775 = vld [vmem:[%s326 + $0xc8] sm:$0xff]
      %v2776 = vld [vmem:[%s326 + $0xd8] sm:$0xff]
      %v2777 = vld [vmem:[%s326 + $0xe0] sm:$0xff]
      %v2778 = vld [vmem:[%s326 + $0xf0] sm:$0xff]
      %v2779 = vld [vmem:[%s326 + $0xf8] sm:$0xff]
      %v2780 = vld [vmem:[%s326 + $0x108] sm:$0xff]
      %v2781 = vld [vmem:[%s326 + $0x110] sm:$0xff]
      %v2782 = vld [vmem:[%s326 + $0x120] sm:$0xff]
      %v2783 = vld [vmem:[%s326 + $0x128] sm:$0xff]
      %v2784 = vld [vmem:[%s326 + $0x138] sm:$0xff]
      %v2785 = vld [vmem:[%s326 + $0x140] sm:$0xff]
      %v2786 = vld [vmem:[%s326 + $0x150] sm:$0xff]
      %v2787 = vld [vmem:[%s326 + $0x158] sm:$0xff]
      %v2788 = vld [vmem:[%s326 + $0x168] sm:$0xff]
      %v2789 = vld [vmem:[%s326 + $0x170] sm:$0xff]
      %s2790 = scalar_lea.vmem %s4, 384
      %v2791 = vld [vmem:[%s2790] sm:$0xff]
      %v2792 = vld [vmem:[%s2790 + $0x8] sm:$0xff]
      %v2793 = vld [vmem:[%s2790 + $0x10] sm:$0xff]
      %v2794 = vld [vmem:[%s2790 + $0x18] sm:$0xff]
      %v2795 = vld [vmem:[%s2790 + $0x20] sm:$0xff]
      %v2796 = vld [vmem:[%s2790 + $0x28] sm:$0xff]
      %v2797 = vld [vmem:[%s2790 + $0x30] sm:$0xff]
      %v2798 = vld [vmem:[%s2790 + $0x38] sm:$0xff]
      %v2799 = vld [vmem:[%s2790 + $0x40] sm:$0xff]
      %v2800 = vld [vmem:[%s2790 + $0x48] sm:$0xff]
      %v2801 = vld [vmem:[%s2790 + $0x50] sm:$0xff]
      %v2802 = vld [vmem:[%s2790 + $0x58] sm:$0xff]
      %v2803 = vld [vmem:[%s2790 + $0x60] sm:$0xff]
      %v2804 = vld [vmem:[%s2790 + $0x68] sm:$0xff]
      %v2805 = vld [vmem:[%s2790 + $0x70] sm:$0xff]
      %v2806 = vld [vmem:[%s2790 + $0x78] sm:$0xff]
      %2807 = vmatpush.msra.mxu0 %v2806
      %2808 = vmatpush.msra.mxu0 %v2805
      %2809 = vmatpush.msra.mxu0 %v2804
      %2810 = vmatpush.msra.mxu0 %v2803
      %2811 = vmatpush.msra.mxu0 %v2802
      %2812 = vmatpush.msra.mxu0 %v2801
      %2813 = vmatpush.msra.mxu0 %v2800
      %2814 = vmatpush.msra.mxu0 %v2799
      %2815 = vmatpush.msra.mxu0 %v2798
      %2816 = vmatpush.msra.mxu0 %v2797
      %2817 = vmatpush.msra.mxu0 %v2796
      %2818 = vmatpush.msra.mxu0 %v2795
      %2819 = vmatpush.msra.mxu0 %v2794
      %2820 = vmatpush.msra.mxu0 %v2793
      %2821 = vmatpush.msra.mxu0 %v2792
      %2822 = vmatpush.msra.mxu0 %v2791
      %2823 = vmatmul.f32.gmra.mxu0 %v2758
      %v2824 = vpop.f32.mrf.mxu0
      %v2825 = vadd.f32 0.0, %v2824
      %2826 = vmatmul.f32.gmra.mxu0 %v2759
      %v2827 = vpop.f32.mrf.mxu0
      %v2828 = vadd.f32 0.0, %v2827
      %2829 = vmatmul.f32.gmra.mxu0 %v2760
      %v2830 = vpop.f32.mrf.mxu0
      %v2831 = vadd.f32 0.0, %v2830
      %2832 = vmatmul.f32.gmra.mxu0 %v2761
      %v2833 = vpop.f32.mrf.mxu0
      %v2834 = vadd.f32 0.0, %v2833
      %2835 = vmatmul.f32.gmra.mxu0 %v2762
      %v2836 = vpop.f32.mrf.mxu0
      %v2837 = vadd.f32 0.0, %v2836
      %2838 = vmatmul.f32.gmra.mxu0 %v2763
      %v2839 = vpop.f32.mrf.mxu0
      %v2840 = vadd.f32 0.0, %v2839
      %2841 = vmatmul.f32.gmra.mxu0 %v2764
      %v2842 = vpop.f32.mrf.mxu0
      %v2843 = vadd.f32 0.0, %v2842
      %2844 = vmatmul.f32.gmra.mxu0 %v2765
      %v2845 = vpop.f32.mrf.mxu0
      %v2846 = vadd.f32 0.0, %v2845
      %2847 = vmatmul.f32.gmra.mxu0 %v2766
      %v2848 = vpop.f32.mrf.mxu0
      %v2849 = vadd.f32 0.0, %v2848
      %2850 = vmatmul.f32.gmra.mxu0 %v2767
      %v2851 = vpop.f32.mrf.mxu0
      %v2852 = vadd.f32 0.0, %v2851
      %2853 = vmatmul.f32.gmra.mxu0 %v2768
      %v2854 = vpop.f32.mrf.mxu0
      %v2855 = vadd.f32 0.0, %v2854
      %2856 = vmatmul.f32.gmra.mxu0 %v2769
      %v2857 = vpop.f32.mrf.mxu0
      %v2858 = vadd.f32 0.0, %v2857
      %2859 = vmatmul.f32.gmra.mxu0 %v2770
      %v2860 = vpop.f32.mrf.mxu0
      %v2861 = vadd.f32 0.0, %v2860
      %2862 = vmatmul.f32.gmra.mxu0 %v2771
      %v2863 = vpop.f32.mrf.mxu0
      %v2864 = vadd.f32 0.0, %v2863
      %2865 = vmatmul.f32.gmra.mxu0 %v2772
      %v2866 = vpop.f32.mrf.mxu0
      %v2867 = vadd.f32 0.0, %v2866
      %2868 = vmatmul.f32.gmra.mxu0 %v2773
      %v2869 = vpop.f32.mrf.mxu0
      %v2870 = vadd.f32 0.0, %v2869
      %2871 = vmatmul.f32.gmra.mxu0 %v2774
      %v2872 = vpop.f32.mrf.mxu0
      %v2873 = vadd.f32 0.0, %v2872
      %2874 = vmatmul.f32.gmra.mxu0 %v2775
      %v2875 = vpop.f32.mrf.mxu0
      %v2876 = vadd.f32 0.0, %v2875
      %2877 = vmatmul.f32.gmra.mxu0 %v2776
      %v2878 = vpop.f32.mrf.mxu0
      %v2879 = vadd.f32 0.0, %v2878
      %2880 = vmatmul.f32.gmra.mxu0 %v2777
      %v2881 = vpop.f32.mrf.mxu0
      %v2882 = vadd.f32 0.0, %v2881
      %2883 = vmatmul.f32.gmra.mxu0 %v2778
      %v2884 = vpop.f32.mrf.mxu0
      %v2885 = vadd.f32 0.0, %v2884
      %2886 = vmatmul.f32.gmra.mxu0 %v2779
      %v2887 = vpop.f32.mrf.mxu0
      %v2888 = vadd.f32 0.0, %v2887
      %2889 = vmatmul.f32.gmra.mxu0 %v2780
      %v2890 = vpop.f32.mrf.mxu0
      %v2891 = vadd.f32 0.0, %v2890
      %2892 = vmatmul.f32.gmra.mxu0 %v2781
      %v2893 = vpop.f32.mrf.mxu0
      %v2894 = vadd.f32 0.0, %v2893
      %2895 = vmatmul.f32.gmra.mxu0 %v2782
      %v2896 = vpop.f32.mrf.mxu0
      %v2897 = vadd.f32 0.0, %v2896
      %2898 = vmatmul.f32.gmra.mxu0 %v2783
      %v2899 = vpop.f32.mrf.mxu0
      %v2900 = vadd.f32 0.0, %v2899
      %2901 = vmatmul.f32.gmra.mxu0 %v2784
      %v2902 = vpop.f32.mrf.mxu0
      %v2903 = vadd.f32 0.0, %v2902
      %2904 = vmatmul.f32.gmra.mxu0 %v2785
      %v2905 = vpop.f32.mrf.mxu0
      %v2906 = vadd.f32 0.0, %v2905
      %2907 = vmatmul.f32.gmra.mxu0 %v2786
      %v2908 = vpop.f32.mrf.mxu0
      %v2909 = vadd.f32 0.0, %v2908
      %2910 = vmatmul.f32.gmra.mxu0 %v2787
      %v2911 = vpop.f32.mrf.mxu0
      %v2912 = vadd.f32 0.0, %v2911
      %2913 = vmatmul.f32.gmra.mxu0 %v2788
      %v2914 = vpop.f32.mrf.mxu0
      %v2915 = vadd.f32 0.0, %v2914
      %2916 = vmatmul.f32.gmra.mxu0 %v2789
      %v2917 = vpop.f32.mrf.mxu0
      %v2918 = vadd.f32 0.0, %v2917
      %2919 = vdwg.mxu0
      %v2920 = vadd.f32 %v2726, %v2825
      %v2921 = vadd.f32 %v2727, %v2828
      %v2922 = vadd.f32 %v2728, %v2831
      %v2923 = vadd.f32 %v2729, %v2834
      %v2924 = vadd.f32 %v2730, %v2837
      %v2925 = vadd.f32 %v2731, %v2840
      %v2926 = vadd.f32 %v2732, %v2843
      %v2927 = vadd.f32 %v2733, %v2846
      %v2928 = vadd.f32 %v2734, %v2849
      %v2929 = vadd.f32 %v2735, %v2852
      %v2930 = vadd.f32 %v2736, %v2855
      %v2931 = vadd.f32 %v2737, %v2858
      %v2932 = vadd.f32 %v2738, %v2861
      %v2933 = vadd.f32 %v2739, %v2864
      %v2934 = vadd.f32 %v2740, %v2867
      %v2935 = vadd.f32 %v2741, %v2870
      %v2936 = vadd.f32 %v2742, %v2873
      %v2937 = vadd.f32 %v2743, %v2876
      %v2938 = vadd.f32 %v2744, %v2879
      %v2939 = vadd.f32 %v2745, %v2882
      %v2940 = vadd.f32 %v2746, %v2885
      %v2941 = vadd.f32 %v2747, %v2888
      %v2942 = vadd.f32 %v2748, %v2891
      %v2943 = vadd.f32 %v2749, %v2894
      %v2944 = vadd.f32 %v2750, %v2897
      %v2945 = vadd.f32 %v2751, %v2900
      %v2946 = vadd.f32 %v2752, %v2903
      %v2947 = vadd.f32 %v2753, %v2906
      %v2948 = vadd.f32 %v2754, %v2909
      %v2949 = vadd.f32 %v2755, %v2912
      %v2950 = vadd.f32 %v2756, %v2915
      %v2951 = vadd.f32 %v2757, %v2918
      %v2952 = vld [vmem:[%s326 + $0x1] sm:$0xff]
      %v2953 = vld [vmem:[%s326 + $0x9] sm:$0xff]
      %v2954 = vld [vmem:[%s326 + $0x19] sm:$0xff]
      %v2955 = vld [vmem:[%s326 + $0x21] sm:$0xff]
      %v2956 = vld [vmem:[%s326 + $0x31] sm:$0xff]
      %v2957 = vld [vmem:[%s326 + $0x39] sm:$0xff]
      %v2958 = vld [vmem:[%s326 + $0x49] sm:$0xff]
      %v2959 = vld [vmem:[%s326 + $0x51] sm:$0xff]
      %v2960 = vld [vmem:[%s326 + $0x61] sm:$0xff]
      %v2961 = vld [vmem:[%s326 + $0x69] sm:$0xff]
      %v2962 = vld [vmem:[%s326 + $0x79] sm:$0xff]
      %v2963 = vld [vmem:[%s326 + $0x81] sm:$0xff]
      %v2964 = vld [vmem:[%s326 + $0x91] sm:$0xff]
      %v2965 = vld [vmem:[%s326 + $0x99] sm:$0xff]
      %v2966 = vld [vmem:[%s326 + $0xa9] sm:$0xff]
      %v2967 = vld [vmem:[%s326 + $0xb1] sm:$0xff]
      %v2968 = vld [vmem:[%s326 + $0xc1] sm:$0xff]
      %v2969 = vld [vmem:[%s326 + $0xc9] sm:$0xff]
      %v2970 = vld [vmem:[%s326 + $0xd9] sm:$0xff]
      %v2971 = vld [vmem:[%s326 + $0xe1] sm:$0xff]
      %v2972 = vld [vmem:[%s326 + $0xf1] sm:$0xff]
      %v2973 = vld [vmem:[%s326 + $0xf9] sm:$0xff]
      %v2974 = vld [vmem:[%s326 + $0x109] sm:$0xff]
      %v2975 = vld [vmem:[%s326 + $0x111] sm:$0xff]
      %v2976 = vld [vmem:[%s326 + $0x121] sm:$0xff]
      %v2977 = vld [vmem:[%s326 + $0x129] sm:$0xff]
      %v2978 = vld [vmem:[%s326 + $0x139] sm:$0xff]
      %v2979 = vld [vmem:[%s326 + $0x141] sm:$0xff]
      %v2980 = vld [vmem:[%s326 + $0x151] sm:$0xff]
      %v2981 = vld [vmem:[%s326 + $0x159] sm:$0xff]
      %v2982 = vld [vmem:[%s326 + $0x169] sm:$0xff]
      %v2983 = vld [vmem:[%s326 + $0x171] sm:$0xff]
      %s2984 = scalar_lea.vmem %s4, 512
      %v2985 = vld [vmem:[%s2984] sm:$0xff]
      %v2986 = vld [vmem:[%s2984 + $0x8] sm:$0xff]
      %v2987 = vld [vmem:[%s2984 + $0x10] sm:$0xff]
      %v2988 = vld [vmem:[%s2984 + $0x18] sm:$0xff]
      %v2989 = vld [vmem:[%s2984 + $0x20] sm:$0xff]
      %v2990 = vld [vmem:[%s2984 + $0x28] sm:$0xff]
      %v2991 = vld [vmem:[%s2984 + $0x30] sm:$0xff]
      %v2992 = vld [vmem:[%s2984 + $0x38] sm:$0xff]
      %v2993 = vld [vmem:[%s2984 + $0x40] sm:$0xff]
      %v2994 = vld [vmem:[%s2984 + $0x48] sm:$0xff]
      %v2995 = vld [vmem:[%s2984 + $0x50] sm:$0xff]
      %v2996 = vld [vmem:[%s2984 + $0x58] sm:$0xff]
      %v2997 = vld [vmem:[%s2984 + $0x60] sm:$0xff]
      %v2998 = vld [vmem:[%s2984 + $0x68] sm:$0xff]
      %v2999 = vld [vmem:[%s2984 + $0x70] sm:$0xff]
      %v3000 = vld [vmem:[%s2984 + $0x78] sm:$0xff]
      %3001 = vmatpush.msra.mxu0 %v3000
      %3002 = vmatpush.msra.mxu0 %v2999
      %3003 = vmatpush.msra.mxu0 %v2998
      %3004 = vmatpush.msra.mxu0 %v2997
      %3005 = vmatpush.msra.mxu0 %v2996
      %3006 = vmatpush.msra.mxu0 %v2995
      %3007 = vmatpush.msra.mxu0 %v2994
      %3008 = vmatpush.msra.mxu0 %v2993
      %3009 = vmatpush.msra.mxu0 %v2992
      %3010 = vmatpush.msra.mxu0 %v2991
      %3011 = vmatpush.msra.mxu0 %v2990
      %3012 = vmatpush.msra.mxu0 %v2989
      %3013 = vmatpush.msra.mxu0 %v2988
      %3014 = vmatpush.msra.mxu0 %v2987
      %3015 = vmatpush.msra.mxu0 %v2986
      %3016 = vmatpush.msra.mxu0 %v2985
      %3017 = vmatmul.f32.gmra.mxu0 %v2952
      %v3018 = vpop.f32.mrf.mxu0
      %v3019 = vadd.f32 0.0, %v3018
      %3020 = vmatmul.f32.gmra.mxu0 %v2953
      %v3021 = vpop.f32.mrf.mxu0
      %v3022 = vadd.f32 0.0, %v3021
      %3023 = vmatmul.f32.gmra.mxu0 %v2954
      %v3024 = vpop.f32.mrf.mxu0
      %v3025 = vadd.f32 0.0, %v3024
      %3026 = vmatmul.f32.gmra.mxu0 %v2955
      %v3027 = vpop.f32.mrf.mxu0
      %v3028 = vadd.f32 0.0, %v3027
      %3029 = vmatmul.f32.gmra.mxu0 %v2956
      %v3030 = vpop.f32.mrf.mxu0
      %v3031 = vadd.f32 0.0, %v3030
      %3032 = vmatmul.f32.gmra.mxu0 %v2957
      %v3033 = vpop.f32.mrf.mxu0
      %v3034 = vadd.f32 0.0, %v3033
      %3035 = vmatmul.f32.gmra.mxu0 %v2958
      %v3036 = vpop.f32.mrf.mxu0
      %v3037 = vadd.f32 0.0, %v3036
      %3038 = vmatmul.f32.gmra.mxu0 %v2959
      %v3039 = vpop.f32.mrf.mxu0
      %v3040 = vadd.f32 0.0, %v3039
      %3041 = vmatmul.f32.gmra.mxu0 %v2960
      %v3042 = vpop.f32.mrf.mxu0
      %v3043 = vadd.f32 0.0, %v3042
      %3044 = vmatmul.f32.gmra.mxu0 %v2961
      %v3045 = vpop.f32.mrf.mxu0
      %v3046 = vadd.f32 0.0, %v3045
      %3047 = vmatmul.f32.gmra.mxu0 %v2962
      %v3048 = vpop.f32.mrf.mxu0
      %v3049 = vadd.f32 0.0, %v3048
      %3050 = vmatmul.f32.gmra.mxu0 %v2963
      %v3051 = vpop.f32.mrf.mxu0
      %v3052 = vadd.f32 0.0, %v3051
      %3053 = vmatmul.f32.gmra.mxu0 %v2964
      %v3054 = vpop.f32.mrf.mxu0
      %v3055 = vadd.f32 0.0, %v3054
      %3056 = vmatmul.f32.gmra.mxu0 %v2965
      %v3057 = vpop.f32.mrf.mxu0
      %v3058 = vadd.f32 0.0, %v3057
      %3059 = vmatmul.f32.gmra.mxu0 %v2966
      %v3060 = vpop.f32.mrf.mxu0
      %v3061 = vadd.f32 0.0, %v3060
      %3062 = vmatmul.f32.gmra.mxu0 %v2967
      %v3063 = vpop.f32.mrf.mxu0
      %v3064 = vadd.f32 0.0, %v3063
      %3065 = vmatmul.f32.gmra.mxu0 %v2968
      %v3066 = vpop.f32.mrf.mxu0
      %v3067 = vadd.f32 0.0, %v3066
      %3068 = vmatmul.f32.gmra.mxu0 %v2969
      %v3069 = vpop.f32.mrf.mxu0
      %v3070 = vadd.f32 0.0, %v3069
      %3071 = vmatmul.f32.gmra.mxu0 %v2970
      %v3072 = vpop.f32.mrf.mxu0
      %v3073 = vadd.f32 0.0, %v3072
      %3074 = vmatmul.f32.gmra.mxu0 %v2971
      %v3075 = vpop.f32.mrf.mxu0
      %v3076 = vadd.f32 0.0, %v3075
      %3077 = vmatmul.f32.gmra.mxu0 %v2972
      %v3078 = vpop.f32.mrf.mxu0
      %v3079 = vadd.f32 0.0, %v3078
      %3080 = vmatmul.f32.gmra.mxu0 %v2973
      %v3081 = vpop.f32.mrf.mxu0
      %v3082 = vadd.f32 0.0, %v3081
      %3083 = vmatmul.f32.gmra.mxu0 %v2974
      %v3084 = vpop.f32.mrf.mxu0
      %v3085 = vadd.f32 0.0, %v3084
      %3086 = vmatmul.f32.gmra.mxu0 %v2975
      %v3087 = vpop.f32.mrf.mxu0
      %v3088 = vadd.f32 0.0, %v3087
      %3089 = vmatmul.f32.gmra.mxu0 %v2976
      %v3090 = vpop.f32.mrf.mxu0
      %v3091 = vadd.f32 0.0, %v3090
      %3092 = vmatmul.f32.gmra.mxu0 %v2977
      %v3093 = vpop.f32.mrf.mxu0
      %v3094 = vadd.f32 0.0, %v3093
      %3095 = vmatmul.f32.gmra.mxu0 %v2978
      %v3096 = vpop.f32.mrf.mxu0
      %v3097 = vadd.f32 0.0, %v3096
      %3098 = vmatmul.f32.gmra.mxu0 %v2979
      %v3099 = vpop.f32.mrf.mxu0
      %v3100 = vadd.f32 0.0, %v3099
      %3101 = vmatmul.f32.gmra.mxu0 %v2980
      %v3102 = vpop.f32.mrf.mxu0
      %v3103 = vadd.f32 0.0, %v3102
      %3104 = vmatmul.f32.gmra.mxu0 %v2981
      %v3105 = vpop.f32.mrf.mxu0
      %v3106 = vadd.f32 0.0, %v3105
      %3107 = vmatmul.f32.gmra.mxu0 %v2982
      %v3108 = vpop.f32.mrf.mxu0
      %v3109 = vadd.f32 0.0, %v3108
      %3110 = vmatmul.f32.gmra.mxu0 %v2983
      %v3111 = vpop.f32.mrf.mxu0
      %v3112 = vadd.f32 0.0, %v3111
      %3113 = vdwg.mxu0
      %v3114 = vadd.f32 %v2920, %v3019
      %v3115 = vadd.f32 %v2921, %v3022
      %v3116 = vadd.f32 %v2922, %v3025
      %v3117 = vadd.f32 %v2923, %v3028
      %v3118 = vadd.f32 %v2924, %v3031
      %v3119 = vadd.f32 %v2925, %v3034
      %v3120 = vadd.f32 %v2926, %v3037
      %v3121 = vadd.f32 %v2927, %v3040
      %v3122 = vadd.f32 %v2928, %v3043
      %v3123 = vadd.f32 %v2929, %v3046
      %v3124 = vadd.f32 %v2930, %v3049
      %v3125 = vadd.f32 %v2931, %v3052
      %v3126 = vadd.f32 %v2932, %v3055
      %v3127 = vadd.f32 %v2933, %v3058
      %v3128 = vadd.f32 %v2934, %v3061
      %v3129 = vadd.f32 %v2935, %v3064
      %v3130 = vadd.f32 %v2936, %v3067
      %v3131 = vadd.f32 %v2937, %v3070
      %v3132 = vadd.f32 %v2938, %v3073
      %v3133 = vadd.f32 %v2939, %v3076
      %v3134 = vadd.f32 %v2940, %v3079
      %v3135 = vadd.f32 %v2941, %v3082
      %v3136 = vadd.f32 %v2942, %v3085
      %v3137 = vadd.f32 %v2943, %v3088
      %v3138 = vadd.f32 %v2944, %v3091
      %v3139 = vadd.f32 %v2945, %v3094
      %v3140 = vadd.f32 %v2946, %v3097
      %v3141 = vadd.f32 %v2947, %v3100
      %v3142 = vadd.f32 %v2948, %v3103
      %v3143 = vadd.f32 %v2949, %v3106
      %v3144 = vadd.f32 %v2950, %v3109
      %v3145 = vadd.f32 %v2951, %v3112
      %v3146 = vld [vmem:[%s326 + $0x2] sm:$0xff]
      %v3147 = vld [vmem:[%s326 + $0xa] sm:$0xff]
      %v3148 = vld [vmem:[%s326 + $0x1a] sm:$0xff]
      %v3149 = vld [vmem:[%s326 + $0x22] sm:$0xff]
      %v3150 = vld [vmem:[%s326 + $0x32] sm:$0xff]
      %v3151 = vld [vmem:[%s326 + $0x3a] sm:$0xff]
      %v3152 = vld [vmem:[%s326 + $0x4a] sm:$0xff]
      %v3153 = vld [vmem:[%s326 + $0x52] sm:$0xff]
      %v3154 = vld [vmem:[%s326 + $0x62] sm:$0xff]
      %v3155 = vld [vmem:[%s326 + $0x6a] sm:$0xff]
      %v3156 = vld [vmem:[%s326 + $0x7a] sm:$0xff]
      %v3157 = vld [vmem:[%s326 + $0x82] sm:$0xff]
      %v3158 = vld [vmem:[%s326 + $0x92] sm:$0xff]
      %v3159 = vld [vmem:[%s326 + $0x9a] sm:$0xff]
      %v3160 = vld [vmem:[%s326 + $0xaa] sm:$0xff]
      %v3161 = vld [vmem:[%s326 + $0xb2] sm:$0xff]
      %v3162 = vld [vmem:[%s326 + $0xc2] sm:$0xff]
      %v3163 = vld [vmem:[%s326 + $0xca] sm:$0xff]
      %v3164 = vld [vmem:[%s326 + $0xda] sm:$0xff]
      %v3165 = vld [vmem:[%s326 + $0xe2] sm:$0xff]
      %v3166 = vld [vmem:[%s326 + $0xf2] sm:$0xff]
      %v3167 = vld [vmem:[%s326 + $0xfa] sm:$0xff]
      %v3168 = vld [vmem:[%s326 + $0x10a] sm:$0xff]
      %v3169 = vld [vmem:[%s326 + $0x112] sm:$0xff]
      %v3170 = vld [vmem:[%s326 + $0x122] sm:$0xff]
      %v3171 = vld [vmem:[%s326 + $0x12a] sm:$0xff]
      %v3172 = vld [vmem:[%s326 + $0x13a] sm:$0xff]
      %v3173 = vld [vmem:[%s326 + $0x142] sm:$0xff]
      %v3174 = vld [vmem:[%s326 + $0x152] sm:$0xff]
      %v3175 = vld [vmem:[%s326 + $0x15a] sm:$0xff]
      %v3176 = vld [vmem:[%s326 + $0x16a] sm:$0xff]
      %v3177 = vld [vmem:[%s326 + $0x172] sm:$0xff]
      %s3178 = scalar_lea.vmem %s4, 640
      %v3179 = vld [vmem:[%s3178] sm:$0xff]
      %v3180 = vld [vmem:[%s3178 + $0x8] sm:$0xff]
      %v3181 = vld [vmem:[%s3178 + $0x10] sm:$0xff]
      %v3182 = vld [vmem:[%s3178 + $0x18] sm:$0xff]
      %v3183 = vld [vmem:[%s3178 + $0x20] sm:$0xff]
      %v3184 = vld [vmem:[%s3178 + $0x28] sm:$0xff]
      %v3185 = vld [vmem:[%s3178 + $0x30] sm:$0xff]
      %v3186 = vld [vmem:[%s3178 + $0x38] sm:$0xff]
      %v3187 = vld [vmem:[%s3178 + $0x40] sm:$0xff]
      %v3188 = vld [vmem:[%s3178 + $0x48] sm:$0xff]
      %v3189 = vld [vmem:[%s3178 + $0x50] sm:$0xff]
      %v3190 = vld [vmem:[%s3178 + $0x58] sm:$0xff]
      %v3191 = vld [vmem:[%s3178 + $0x60] sm:$0xff]
      %v3192 = vld [vmem:[%s3178 + $0x68] sm:$0xff]
      %v3193 = vld [vmem:[%s3178 + $0x70] sm:$0xff]
      %v3194 = vld [vmem:[%s3178 + $0x78] sm:$0xff]
      %3195 = vmatpush.msra.mxu0 %v3194
      %3196 = vmatpush.msra.mxu0 %v3193
      %3197 = vmatpush.msra.mxu0 %v3192
      %3198 = vmatpush.msra.mxu0 %v3191
      %3199 = vmatpush.msra.mxu0 %v3190
      %3200 = vmatpush.msra.mxu0 %v3189
      %3201 = vmatpush.msra.mxu0 %v3188
      %3202 = vmatpush.msra.mxu0 %v3187
      %3203 = vmatpush.msra.mxu0 %v3186
      %3204 = vmatpush.msra.mxu0 %v3185
      %3205 = vmatpush.msra.mxu0 %v3184
      %3206 = vmatpush.msra.mxu0 %v3183
      %3207 = vmatpush.msra.mxu0 %v3182
      %3208 = vmatpush.msra.mxu0 %v3181
      %3209 = vmatpush.msra.mxu0 %v3180
      %3210 = vmatpush.msra.mxu0 %v3179
      %3211 = vmatmul.f32.gmra.mxu0 %v3146
      %v3212 = vpop.f32.mrf.mxu0
      %v3213 = vadd.f32 0.0, %v3212
      %3214 = vmatmul.f32.gmra.mxu0 %v3147
      %v3215 = vpop.f32.mrf.mxu0
      %v3216 = vadd.f32 0.0, %v3215
      %3217 = vmatmul.f32.gmra.mxu0 %v3148
      %v3218 = vpop.f32.mrf.mxu0
      %v3219 = vadd.f32 0.0, %v3218
      %3220 = vmatmul.f32.gmra.mxu0 %v3149
      %v3221 = vpop.f32.mrf.mxu0
      %v3222 = vadd.f32 0.0, %v3221
      %3223 = vmatmul.f32.gmra.mxu0 %v3150
      %v3224 = vpop.f32.mrf.mxu0
      %v3225 = vadd.f32 0.0, %v3224
      %3226 = vmatmul.f32.gmra.mxu0 %v3151
      %v3227 = vpop.f32.mrf.mxu0
      %v3228 = vadd.f32 0.0, %v3227
      %3229 = vmatmul.f32.gmra.mxu0 %v3152
      %v3230 = vpop.f32.mrf.mxu0
      %v3231 = vadd.f32 0.0, %v3230
      %3232 = vmatmul.f32.gmra.mxu0 %v3153
      %v3233 = vpop.f32.mrf.mxu0
      %v3234 = vadd.f32 0.0, %v3233
      %3235 = vmatmul.f32.gmra.mxu0 %v3154
      %v3236 = vpop.f32.mrf.mxu0
      %v3237 = vadd.f32 0.0, %v3236
      %3238 = vmatmul.f32.gmra.mxu0 %v3155
      %v3239 = vpop.f32.mrf.mxu0
      %v3240 = vadd.f32 0.0, %v3239
      %3241 = vmatmul.f32.gmra.mxu0 %v3156
      %v3242 = vpop.f32.mrf.mxu0
      %v3243 = vadd.f32 0.0, %v3242
      %3244 = vmatmul.f32.gmra.mxu0 %v3157
      %v3245 = vpop.f32.mrf.mxu0
      %v3246 = vadd.f32 0.0, %v3245
      %3247 = vmatmul.f32.gmra.mxu0 %v3158
      %v3248 = vpop.f32.mrf.mxu0
      %v3249 = vadd.f32 0.0, %v3248
      %3250 = vmatmul.f32.gmra.mxu0 %v3159
      %v3251 = vpop.f32.mrf.mxu0
      %v3252 = vadd.f32 0.0, %v3251
      %3253 = vmatmul.f32.gmra.mxu0 %v3160
      %v3254 = vpop.f32.mrf.mxu0
      %v3255 = vadd.f32 0.0, %v3254
      %3256 = vmatmul.f32.gmra.mxu0 %v3161
      %v3257 = vpop.f32.mrf.mxu0
      %v3258 = vadd.f32 0.0, %v3257
      %3259 = vmatmul.f32.gmra.mxu0 %v3162
      %v3260 = vpop.f32.mrf.mxu0
      %v3261 = vadd.f32 0.0, %v3260
      %3262 = vmatmul.f32.gmra.mxu0 %v3163
      %v3263 = vpop.f32.mrf.mxu0
      %v3264 = vadd.f32 0.0, %v3263
      %3265 = vmatmul.f32.gmra.mxu0 %v3164
      %v3266 = vpop.f32.mrf.mxu0
      %v3267 = vadd.f32 0.0, %v3266
      %3268 = vmatmul.f32.gmra.mxu0 %v3165
      %v3269 = vpop.f32.mrf.mxu0
      %v3270 = vadd.f32 0.0, %v3269
      %3271 = vmatmul.f32.gmra.mxu0 %v3166
      %v3272 = vpop.f32.mrf.mxu0
      %v3273 = vadd.f32 0.0, %v3272
      %3274 = vmatmul.f32.gmra.mxu0 %v3167
      %v3275 = vpop.f32.mrf.mxu0
      %v3276 = vadd.f32 0.0, %v3275
      %3277 = vmatmul.f32.gmra.mxu0 %v3168
      %v3278 = vpop.f32.mrf.mxu0
      %v3279 = vadd.f32 0.0, %v3278
      %3280 = vmatmul.f32.gmra.mxu0 %v3169
      %v3281 = vpop.f32.mrf.mxu0
      %v3282 = vadd.f32 0.0, %v3281
      %3283 = vmatmul.f32.gmra.mxu0 %v3170
      %v3284 = vpop.f32.mrf.mxu0
      %v3285 = vadd.f32 0.0, %v3284
      %3286 = vmatmul.f32.gmra.mxu0 %v3171
      %v3287 = vpop.f32.mrf.mxu0
      %v3288 = vadd.f32 0.0, %v3287
      %3289 = vmatmul.f32.gmra.mxu0 %v3172
      %v3290 = vpop.f32.mrf.mxu0
      %v3291 = vadd.f32 0.0, %v3290
      %3292 = vmatmul.f32.gmra.mxu0 %v3173
      %v3293 = vpop.f32.mrf.mxu0
      %v3294 = vadd.f32 0.0, %v3293
      %3295 = vmatmul.f32.gmra.mxu0 %v3174
      %v3296 = vpop.f32.mrf.mxu0
      %v3297 = vadd.f32 0.0, %v3296
      %3298 = vmatmul.f32.gmra.mxu0 %v3175
      %v3299 = vpop.f32.mrf.mxu0
      %v3300 = vadd.f32 0.0, %v3299
      %3301 = vmatmul.f32.gmra.mxu0 %v3176
      %v3302 = vpop.f32.mrf.mxu0
      %v3303 = vadd.f32 0.0, %v3302
      %3304 = vmatmul.f32.gmra.mxu0 %v3177
      %v3305 = vpop.f32.mrf.mxu0
      %v3306 = vadd.f32 0.0, %v3305
      %3307 = vdwg.mxu0
      %v3308 = vadd.f32 %v3114, %v3213
      %v3309 = vadd.f32 %v3115, %v3216
      %v3310 = vadd.f32 %v3116, %v3219
      %v3311 = vadd.f32 %v3117, %v3222
      %v3312 = vadd.f32 %v3118, %v3225
      %v3313 = vadd.f32 %v3119, %v3228
      %v3314 = vadd.f32 %v3120, %v3231
      %v3315 = vadd.f32 %v3121, %v3234
      %v3316 = vadd.f32 %v3122, %v3237
      %v3317 = vadd.f32 %v3123, %v3240
      %v3318 = vadd.f32 %v3124, %v3243
      %v3319 = vadd.f32 %v3125, %v3246
      %v3320 = vadd.f32 %v3126, %v3249
      %v3321 = vadd.f32 %v3127, %v3252
      %v3322 = vadd.f32 %v3128, %v3255
      %v3323 = vadd.f32 %v3129, %v3258
      %v3324 = vadd.f32 %v3130, %v3261
      %v3325 = vadd.f32 %v3131, %v3264
      %v3326 = vadd.f32 %v3132, %v3267
      %v3327 = vadd.f32 %v3133, %v3270
      %v3328 = vadd.f32 %v3134, %v3273
      %v3329 = vadd.f32 %v3135, %v3276
      %v3330 = vadd.f32 %v3136, %v3279
      %v3331 = vadd.f32 %v3137, %v3282
      %v3332 = vadd.f32 %v3138, %v3285
      %v3333 = vadd.f32 %v3139, %v3288
      %v3334 = vadd.f32 %v3140, %v3291
      %v3335 = vadd.f32 %v3141, %v3294
      %v3336 = vadd.f32 %v3142, %v3297
      %v3337 = vadd.f32 %v3143, %v3300
      %v3338 = vadd.f32 %v3144, %v3303
      %v3339 = vadd.f32 %v3145, %v3306
      %s3340 = scalar_lea.vmem [#allocation3], 48
      %v3341 = vld [vmem:[%s3340] sm:$0xff]
      %v3342 = vld [vmem:[%s3340 + $0x8] sm:$0xff]
      %v3343 = vld [vmem:[%s3340 + $0x18] sm:$0xff]
      %v3344 = vld [vmem:[%s3340 + $0x20] sm:$0xff]
      %v3345 = vld [vmem:[%s3340 + $0x30] sm:$0xff]
      %v3346 = vld [vmem:[%s3340 + $0x38] sm:$0xff]
      %v3347 = vld [vmem:[%s3340 + $0x48] sm:$0xff]
      %v3348 = vld [vmem:[%s3340 + $0x50] sm:$0xff]
      %v3349 = vld [vmem:[%s3340 + $0x60] sm:$0xff]
      %v3350 = vld [vmem:[%s3340 + $0x68] sm:$0xff]
      %v3351 = vld [vmem:[%s3340 + $0x78] sm:$0xff]
      %v3352 = vld [vmem:[%s3340 + $0x80] sm:$0xff]
      %v3353 = vld [vmem:[%s3340 + $0x90] sm:$0xff]
      %v3354 = vld [vmem:[%s3340 + $0x98] sm:$0xff]
      %v3355 = vld [vmem:[%s3340 + $0xa8] sm:$0xff]
      %v3356 = vld [vmem:[%s3340 + $0xb0] sm:$0xff]
      %v3357 = vld [vmem:[%s3340 + $0xc0] sm:$0xff]
      %v3358 = vld [vmem:[%s3340 + $0xc8] sm:$0xff]
      %v3359 = vld [vmem:[%s3340 + $0xd8] sm:$0xff]
      %v3360 = vld [vmem:[%s3340 + $0xe0] sm:$0xff]
      %v3361 = vld [vmem:[%s3340 + $0xf0] sm:$0xff]
      %v3362 = vld [vmem:[%s3340 + $0xf8] sm:$0xff]
      %v3363 = vld [vmem:[%s3340 + $0x108] sm:$0xff]
      %v3364 = vld [vmem:[%s3340 + $0x110] sm:$0xff]
      %v3365 = vld [vmem:[%s3340 + $0x120] sm:$0xff]
      %v3366 = vld [vmem:[%s3340 + $0x128] sm:$0xff]
      %v3367 = vld [vmem:[%s3340 + $0x138] sm:$0xff]
      %v3368 = vld [vmem:[%s3340 + $0x140] sm:$0xff]
      %v3369 = vld [vmem:[%s3340 + $0x150] sm:$0xff]
      %v3370 = vld [vmem:[%s3340 + $0x158] sm:$0xff]
      %v3371 = vld [vmem:[%s3340 + $0x168] sm:$0xff]
      %v3372 = vld [vmem:[%s3340 + $0x170] sm:$0xff]
      %s3373 = scalar_lea.vmem %s4, 768
      %v3374 = vld [vmem:[%s3373] sm:$0xff]
      %v3375 = vld [vmem:[%s3373 + $0x8] sm:$0xff]
      %v3376 = vld [vmem:[%s3373 + $0x10] sm:$0xff]
      %v3377 = vld [vmem:[%s3373 + $0x18] sm:$0xff]
      %v3378 = vld [vmem:[%s3373 + $0x20] sm:$0xff]
      %v3379 = vld [vmem:[%s3373 + $0x28] sm:$0xff]
      %v3380 = vld [vmem:[%s3373 + $0x30] sm:$0xff]
      %v3381 = vld [vmem:[%s3373 + $0x38] sm:$0xff]
      %v3382 = vld [vmem:[%s3373 + $0x40] sm:$0xff]
      %v3383 = vld [vmem:[%s3373 + $0x48] sm:$0xff]
      %v3384 = vld [vmem:[%s3373 + $0x50] sm:$0xff]
      %v3385 = vld [vmem:[%s3373 + $0x58] sm:$0xff]
      %v3386 = vld [vmem:[%s3373 + $0x60] sm:$0xff]
      %v3387 = vld [vmem:[%s3373 + $0x68] sm:$0xff]
      %v3388 = vld [vmem:[%s3373 + $0x70] sm:$0xff]
      %v3389 = vld [vmem:[%s3373 + $0x78] sm:$0xff]
      %3390 = vmatpush.msra.mxu0 %v3389
      %3391 = vmatpush.msra.mxu0 %v3388
      %3392 = vmatpush.msra.mxu0 %v3387
      %3393 = vmatpush.msra.mxu0 %v3386
      %3394 = vmatpush.msra.mxu0 %v3385
      %3395 = vmatpush.msra.mxu0 %v3384
      %3396 = vmatpush.msra.mxu0 %v3383
      %3397 = vmatpush.msra.mxu0 %v3382
      %3398 = vmatpush.msra.mxu0 %v3381
      %3399 = vmatpush.msra.mxu0 %v3380
      %3400 = vmatpush.msra.mxu0 %v3379
      %3401 = vmatpush.msra.mxu0 %v3378
      %3402 = vmatpush.msra.mxu0 %v3377
      %3403 = vmatpush.msra.mxu0 %v3376
      %3404 = vmatpush.msra.mxu0 %v3375
      %3405 = vmatpush.msra.mxu0 %v3374
      %3406 = vmatmul.f32.gmra.mxu0 %v3341
      %v3407 = vpop.f32.mrf.mxu0
      %v3408 = vadd.f32 0.0, %v3407
      %3409 = vmatmul.f32.gmra.mxu0 %v3342
      %v3410 = vpop.f32.mrf.mxu0
      %v3411 = vadd.f32 0.0, %v3410
      %3412 = vmatmul.f32.gmra.mxu0 %v3343
      %v3413 = vpop.f32.mrf.mxu0
      %v3414 = vadd.f32 0.0, %v3413
      %3415 = vmatmul.f32.gmra.mxu0 %v3344
      %v3416 = vpop.f32.mrf.mxu0
      %v3417 = vadd.f32 0.0, %v3416
      %3418 = vmatmul.f32.gmra.mxu0 %v3345
      %v3419 = vpop.f32.mrf.mxu0
      %v3420 = vadd.f32 0.0, %v3419
      %3421 = vmatmul.f32.gmra.mxu0 %v3346
      %v3422 = vpop.f32.mrf.mxu0
      %v3423 = vadd.f32 0.0, %v3422
      %3424 = vmatmul.f32.gmra.mxu0 %v3347
      %v3425 = vpop.f32.mrf.mxu0
      %v3426 = vadd.f32 0.0, %v3425
      %3427 = vmatmul.f32.gmra.mxu0 %v3348
      %v3428 = vpop.f32.mrf.mxu0
      %v3429 = vadd.f32 0.0, %v3428
      %3430 = vmatmul.f32.gmra.mxu0 %v3349
      %v3431 = vpop.f32.mrf.mxu0
      %v3432 = vadd.f32 0.0, %v3431
      %3433 = vmatmul.f32.gmra.mxu0 %v3350
      %v3434 = vpop.f32.mrf.mxu0
      %v3435 = vadd.f32 0.0, %v3434
      %3436 = vmatmul.f32.gmra.mxu0 %v3351
      %v3437 = vpop.f32.mrf.mxu0
      %v3438 = vadd.f32 0.0, %v3437
      %3439 = vmatmul.f32.gmra.mxu0 %v3352
      %v3440 = vpop.f32.mrf.mxu0
      %v3441 = vadd.f32 0.0, %v3440
      %3442 = vmatmul.f32.gmra.mxu0 %v3353
      %v3443 = vpop.f32.mrf.mxu0
      %v3444 = vadd.f32 0.0, %v3443
      %3445 = vmatmul.f32.gmra.mxu0 %v3354
      %v3446 = vpop.f32.mrf.mxu0
      %v3447 = vadd.f32 0.0, %v3446
      %3448 = vmatmul.f32.gmra.mxu0 %v3355
      %v3449 = vpop.f32.mrf.mxu0
      %v3450 = vadd.f32 0.0, %v3449
      %3451 = vmatmul.f32.gmra.mxu0 %v3356
      %v3452 = vpop.f32.mrf.mxu0
      %v3453 = vadd.f32 0.0, %v3452
      %3454 = vmatmul.f32.gmra.mxu0 %v3357
      %v3455 = vpop.f32.mrf.mxu0
      %v3456 = vadd.f32 0.0, %v3455
      %3457 = vmatmul.f32.gmra.mxu0 %v3358
      %v3458 = vpop.f32.mrf.mxu0
      %v3459 = vadd.f32 0.0, %v3458
      %3460 = vmatmul.f32.gmra.mxu0 %v3359
      %v3461 = vpop.f32.mrf.mxu0
      %v3462 = vadd.f32 0.0, %v3461
      %3463 = vmatmul.f32.gmra.mxu0 %v3360
      %v3464 = vpop.f32.mrf.mxu0
      %v3465 = vadd.f32 0.0, %v3464
      %3466 = vmatmul.f32.gmra.mxu0 %v3361
      %v3467 = vpop.f32.mrf.mxu0
      %v3468 = vadd.f32 0.0, %v3467
      %3469 = vmatmul.f32.gmra.mxu0 %v3362
      %v3470 = vpop.f32.mrf.mxu0
      %v3471 = vadd.f32 0.0, %v3470
      %3472 = vmatmul.f32.gmra.mxu0 %v3363
      %v3473 = vpop.f32.mrf.mxu0
      %v3474 = vadd.f32 0.0, %v3473
      %3475 = vmatmul.f32.gmra.mxu0 %v3364
      %v3476 = vpop.f32.mrf.mxu0
      %v3477 = vadd.f32 0.0, %v3476
      %3478 = vmatmul.f32.gmra.mxu0 %v3365
      %v3479 = vpop.f32.mrf.mxu0
      %v3480 = vadd.f32 0.0, %v3479
      %3481 = vmatmul.f32.gmra.mxu0 %v3366
      %v3482 = vpop.f32.mrf.mxu0
      %v3483 = vadd.f32 0.0, %v3482
      %3484 = vmatmul.f32.gmra.mxu0 %v3367
      %v3485 = vpop.f32.mrf.mxu0
      %v3486 = vadd.f32 0.0, %v3485
      %3487 = vmatmul.f32.gmra.mxu0 %v3368
      %v3488 = vpop.f32.mrf.mxu0
      %v3489 = vadd.f32 0.0, %v3488
      %3490 = vmatmul.f32.gmra.mxu0 %v3369
      %v3491 = vpop.f32.mrf.mxu0
      %v3492 = vadd.f32 0.0, %v3491
      %3493 = vmatmul.f32.gmra.mxu0 %v3370
      %v3494 = vpop.f32.mrf.mxu0
      %v3495 = vadd.f32 0.0, %v3494
      %3496 = vmatmul.f32.gmra.mxu0 %v3371
      %v3497 = vpop.f32.mrf.mxu0
      %v3498 = vadd.f32 0.0, %v3497
      %3499 = vmatmul.f32.gmra.mxu0 %v3372
      %v3500 = vpop.f32.mrf.mxu0
      %v3501 = vadd.f32 0.0, %v3500
      %3502 = vdwg.mxu0
      %v3503 = vadd.f32 %v3308, %v3408
      %v3504 = vadd.f32 %v3309, %v3411
      %v3505 = vadd.f32 %v3310, %v3414
      %v3506 = vadd.f32 %v3311, %v3417
      %v3507 = vadd.f32 %v3312, %v3420
      %v3508 = vadd.f32 %v3313, %v3423
      %v3509 = vadd.f32 %v3314, %v3426
      %v3510 = vadd.f32 %v3315, %v3429
      %v3511 = vadd.f32 %v3316, %v3432
      %v3512 = vadd.f32 %v3317, %v3435
      %v3513 = vadd.f32 %v3318, %v3438
      %v3514 = vadd.f32 %v3319, %v3441
      %v3515 = vadd.f32 %v3320, %v3444
      %v3516 = vadd.f32 %v3321, %v3447
      %v3517 = vadd.f32 %v3322, %v3450
      %v3518 = vadd.f32 %v3323, %v3453
      %v3519 = vadd.f32 %v3324, %v3456
      %v3520 = vadd.f32 %v3325, %v3459
      %v3521 = vadd.f32 %v3326, %v3462
      %v3522 = vadd.f32 %v3327, %v3465
      %v3523 = vadd.f32 %v3328, %v3468
      %v3524 = vadd.f32 %v3329, %v3471
      %v3525 = vadd.f32 %v3330, %v3474
      %v3526 = vadd.f32 %v3331, %v3477
      %v3527 = vadd.f32 %v3332, %v3480
      %v3528 = vadd.f32 %v3333, %v3483
      %v3529 = vadd.f32 %v3334, %v3486
      %v3530 = vadd.f32 %v3335, %v3489
      %v3531 = vadd.f32 %v3336, %v3492
      %v3532 = vadd.f32 %v3337, %v3495
      %v3533 = vadd.f32 %v3338, %v3498
      %v3534 = vadd.f32 %v3339, %v3501
      %v3535 = vld [vmem:[%s3340 + $0x1] sm:$0xff]
      %v3536 = vld [vmem:[%s3340 + $0x9] sm:$0xff]
      %v3537 = vld [vmem:[%s3340 + $0x19] sm:$0xff]
      %v3538 = vld [vmem:[%s3340 + $0x21] sm:$0xff]
      %v3539 = vld [vmem:[%s3340 + $0x31] sm:$0xff]
      %v3540 = vld [vmem:[%s3340 + $0x39] sm:$0xff]
      %v3541 = vld [vmem:[%s3340 + $0x49] sm:$0xff]
      %v3542 = vld [vmem:[%s3340 + $0x51] sm:$0xff]
      %v3543 = vld [vmem:[%s3340 + $0x61] sm:$0xff]
      %v3544 = vld [vmem:[%s3340 + $0x69] sm:$0xff]
      %v3545 = vld [vmem:[%s3340 + $0x79] sm:$0xff]
      %v3546 = vld [vmem:[%s3340 + $0x81] sm:$0xff]
      %v3547 = vld [vmem:[%s3340 + $0x91] sm:$0xff]
      %v3548 = vld [vmem:[%s3340 + $0x99] sm:$0xff]
      %v3549 = vld [vmem:[%s3340 + $0xa9] sm:$0xff]
      %v3550 = vld [vmem:[%s3340 + $0xb1] sm:$0xff]
      %v3551 = vld [vmem:[%s3340 + $0xc1] sm:$0xff]
      %v3552 = vld [vmem:[%s3340 + $0xc9] sm:$0xff]
      %v3553 = vld [vmem:[%s3340 + $0xd9] sm:$0xff]
      %v3554 = vld [vmem:[%s3340 + $0xe1] sm:$0xff]
      %v3555 = vld [vmem:[%s3340 + $0xf1] sm:$0xff]
      %v3556 = vld [vmem:[%s3340 + $0xf9] sm:$0xff]
      %v3557 = vld [vmem:[%s3340 + $0x109] sm:$0xff]
      %v3558 = vld [vmem:[%s3340 + $0x111] sm:$0xff]
      %v3559 = vld [vmem:[%s3340 + $0x121] sm:$0xff]
      %v3560 = vld [vmem:[%s3340 + $0x129] sm:$0xff]
      %v3561 = vld [vmem:[%s3340 + $0x139] sm:$0xff]
      %v3562 = vld [vmem:[%s3340 + $0x141] sm:$0xff]
      %v3563 = vld [vmem:[%s3340 + $0x151] sm:$0xff]
      %v3564 = vld [vmem:[%s3340 + $0x159] sm:$0xff]
      %v3565 = vld [vmem:[%s3340 + $0x169] sm:$0xff]
      %v3566 = vld [vmem:[%s3340 + $0x171] sm:$0xff]
      %s3567 = scalar_lea.vmem %s4, 896
      %v3568 = vld [vmem:[%s3567] sm:$0xff]
      %v3569 = vld [vmem:[%s3567 + $0x8] sm:$0xff]
      %v3570 = vld [vmem:[%s3567 + $0x10] sm:$0xff]
      %v3571 = vld [vmem:[%s3567 + $0x18] sm:$0xff]
      %v3572 = vld [vmem:[%s3567 + $0x20] sm:$0xff]
      %v3573 = vld [vmem:[%s3567 + $0x28] sm:$0xff]
      %v3574 = vld [vmem:[%s3567 + $0x30] sm:$0xff]
      %v3575 = vld [vmem:[%s3567 + $0x38] sm:$0xff]
      %v3576 = vld [vmem:[%s3567 + $0x40] sm:$0xff]
      %v3577 = vld [vmem:[%s3567 + $0x48] sm:$0xff]
      %v3578 = vld [vmem:[%s3567 + $0x50] sm:$0xff]
      %v3579 = vld [vmem:[%s3567 + $0x58] sm:$0xff]
      %v3580 = vld [vmem:[%s3567 + $0x60] sm:$0xff]
      %v3581 = vld [vmem:[%s3567 + $0x68] sm:$0xff]
      %v3582 = vld [vmem:[%s3567 + $0x70] sm:$0xff]
      %v3583 = vld [vmem:[%s3567 + $0x78] sm:$0xff]
      %3584 = vmatpush.msra.mxu0 %v3583
      %3585 = vmatpush.msra.mxu0 %v3582
      %3586 = vmatpush.msra.mxu0 %v3581
      %3587 = vmatpush.msra.mxu0 %v3580
      %3588 = vmatpush.msra.mxu0 %v3579
      %3589 = vmatpush.msra.mxu0 %v3578
      %3590 = vmatpush.msra.mxu0 %v3577
      %3591 = vmatpush.msra.mxu0 %v3576
      %3592 = vmatpush.msra.mxu0 %v3575
      %3593 = vmatpush.msra.mxu0 %v3574
      %3594 = vmatpush.msra.mxu0 %v3573
      %3595 = vmatpush.msra.mxu0 %v3572
      %3596 = vmatpush.msra.mxu0 %v3571
      %3597 = vmatpush.msra.mxu0 %v3570
      %3598 = vmatpush.msra.mxu0 %v3569
      %3599 = vmatpush.msra.mxu0 %v3568
      %3600 = vmatmul.f32.gmra.mxu0 %v3535
      %v3601 = vpop.f32.mrf.mxu0
      %v3602 = vadd.f32 0.0, %v3601
      %3603 = vmatmul.f32.gmra.mxu0 %v3536
      %v3604 = vpop.f32.mrf.mxu0
      %v3605 = vadd.f32 0.0, %v3604
      %3606 = vmatmul.f32.gmra.mxu0 %v3537
      %v3607 = vpop.f32.mrf.mxu0
      %v3608 = vadd.f32 0.0, %v3607
      %3609 = vmatmul.f32.gmra.mxu0 %v3538
      %v3610 = vpop.f32.mrf.mxu0
      %v3611 = vadd.f32 0.0, %v3610
      %3612 = vmatmul.f32.gmra.mxu0 %v3539
      %v3613 = vpop.f32.mrf.mxu0
      %v3614 = vadd.f32 0.0, %v3613
      %3615 = vmatmul.f32.gmra.mxu0 %v3540
      %v3616 = vpop.f32.mrf.mxu0
      %v3617 = vadd.f32 0.0, %v3616
      %3618 = vmatmul.f32.gmra.mxu0 %v3541
      %v3619 = vpop.f32.mrf.mxu0
      %v3620 = vadd.f32 0.0, %v3619
      %3621 = vmatmul.f32.gmra.mxu0 %v3542
      %v3622 = vpop.f32.mrf.mxu0
      %v3623 = vadd.f32 0.0, %v3622
      %3624 = vmatmul.f32.gmra.mxu0 %v3543
      %v3625 = vpop.f32.mrf.mxu0
      %v3626 = vadd.f32 0.0, %v3625
      %3627 = vmatmul.f32.gmra.mxu0 %v3544
      %v3628 = vpop.f32.mrf.mxu0
      %v3629 = vadd.f32 0.0, %v3628
      %3630 = vmatmul.f32.gmra.mxu0 %v3545
      %v3631 = vpop.f32.mrf.mxu0
      %v3632 = vadd.f32 0.0, %v3631
      %3633 = vmatmul.f32.gmra.mxu0 %v3546
      %v3634 = vpop.f32.mrf.mxu0
      %v3635 = vadd.f32 0.0, %v3634
      %3636 = vmatmul.f32.gmra.mxu0 %v3547
      %v3637 = vpop.f32.mrf.mxu0
      %v3638 = vadd.f32 0.0, %v3637
      %3639 = vmatmul.f32.gmra.mxu0 %v3548
      %v3640 = vpop.f32.mrf.mxu0
      %v3641 = vadd.f32 0.0, %v3640
      %3642 = vmatmul.f32.gmra.mxu0 %v3549
      %v3643 = vpop.f32.mrf.mxu0
      %v3644 = vadd.f32 0.0, %v3643
      %3645 = vmatmul.f32.gmra.mxu0 %v3550
      %v3646 = vpop.f32.mrf.mxu0
      %v3647 = vadd.f32 0.0, %v3646
      %3648 = vmatmul.f32.gmra.mxu0 %v3551
      %v3649 = vpop.f32.mrf.mxu0
      %v3650 = vadd.f32 0.0, %v3649
      %3651 = vmatmul.f32.gmra.mxu0 %v3552
      %v3652 = vpop.f32.mrf.mxu0
      %v3653 = vadd.f32 0.0, %v3652
      %3654 = vmatmul.f32.gmra.mxu0 %v3553
      %v3655 = vpop.f32.mrf.mxu0
      %v3656 = vadd.f32 0.0, %v3655
      %3657 = vmatmul.f32.gmra.mxu0 %v3554
      %v3658 = vpop.f32.mrf.mxu0
      %v3659 = vadd.f32 0.0, %v3658
      %3660 = vmatmul.f32.gmra.mxu0 %v3555
      %v3661 = vpop.f32.mrf.mxu0
      %v3662 = vadd.f32 0.0, %v3661
      %3663 = vmatmul.f32.gmra.mxu0 %v3556
      %v3664 = vpop.f32.mrf.mxu0
      %v3665 = vadd.f32 0.0, %v3664
      %3666 = vmatmul.f32.gmra.mxu0 %v3557
      %v3667 = vpop.f32.mrf.mxu0
      %v3668 = vadd.f32 0.0, %v3667
      %3669 = vmatmul.f32.gmra.mxu0 %v3558
      %v3670 = vpop.f32.mrf.mxu0
      %v3671 = vadd.f32 0.0, %v3670
      %3672 = vmatmul.f32.gmra.mxu0 %v3559
      %v3673 = vpop.f32.mrf.mxu0
      %v3674 = vadd.f32 0.0, %v3673
      %3675 = vmatmul.f32.gmra.mxu0 %v3560
      %v3676 = vpop.f32.mrf.mxu0
      %v3677 = vadd.f32 0.0, %v3676
      %3678 = vmatmul.f32.gmra.mxu0 %v3561
      %v3679 = vpop.f32.mrf.mxu0
      %v3680 = vadd.f32 0.0, %v3679
      %3681 = vmatmul.f32.gmra.mxu0 %v3562
      %v3682 = vpop.f32.mrf.mxu0
      %v3683 = vadd.f32 0.0, %v3682
      %3684 = vmatmul.f32.gmra.mxu0 %v3563
      %v3685 = vpop.f32.mrf.mxu0
      %v3686 = vadd.f32 0.0, %v3685
      %3687 = vmatmul.f32.gmra.mxu0 %v3564
      %v3688 = vpop.f32.mrf.mxu0
      %v3689 = vadd.f32 0.0, %v3688
      %3690 = vmatmul.f32.gmra.mxu0 %v3565
      %v3691 = vpop.f32.mrf.mxu0
      %v3692 = vadd.f32 0.0, %v3691
      %3693 = vmatmul.f32.gmra.mxu0 %v3566
      %v3694 = vpop.f32.mrf.mxu0
      %v3695 = vadd.f32 0.0, %v3694
      %3696 = vdwg.mxu0
      %v3697 = vadd.f32 %v3503, %v3602
      %v3698 = vadd.f32 %v3504, %v3605
      %v3699 = vadd.f32 %v3505, %v3608
      %v3700 = vadd.f32 %v3506, %v3611
      %v3701 = vadd.f32 %v3507, %v3614
      %v3702 = vadd.f32 %v3508, %v3617
      %v3703 = vadd.f32 %v3509, %v3620
      %v3704 = vadd.f32 %v3510, %v3623
      %v3705 = vadd.f32 %v3511, %v3626
      %v3706 = vadd.f32 %v3512, %v3629
      %v3707 = vadd.f32 %v3513, %v3632
      %v3708 = vadd.f32 %v3514, %v3635
      %v3709 = vadd.f32 %v3515, %v3638
      %v3710 = vadd.f32 %v3516, %v3641
      %v3711 = vadd.f32 %v3517, %v3644
      %v3712 = vadd.f32 %v3518, %v3647
      %v3713 = vadd.f32 %v3519, %v3650
      %v3714 = vadd.f32 %v3520, %v3653
      %v3715 = vadd.f32 %v3521, %v3656
      %v3716 = vadd.f32 %v3522, %v3659
      %v3717 = vadd.f32 %v3523, %v3662
      %v3718 = vadd.f32 %v3524, %v3665
      %v3719 = vadd.f32 %v3525, %v3668
      %v3720 = vadd.f32 %v3526, %v3671
      %v3721 = vadd.f32 %v3527, %v3674
      %v3722 = vadd.f32 %v3528, %v3677
      %v3723 = vadd.f32 %v3529, %v3680
      %v3724 = vadd.f32 %v3530, %v3683
      %v3725 = vadd.f32 %v3531, %v3686
      %v3726 = vadd.f32 %v3532, %v3689
      %v3727 = vadd.f32 %v3533, %v3692
      %v3728 = vadd.f32 %v3534, %v3695
      %v3729 = vld [vmem:[%s3340 + $0x2] sm:$0xff]
      %v3730 = vld [vmem:[%s3340 + $0xa] sm:$0xff]
      %v3731 = vld [vmem:[%s3340 + $0x1a] sm:$0xff]
      %v3732 = vld [vmem:[%s3340 + $0x22] sm:$0xff]
      %v3733 = vld [vmem:[%s3340 + $0x32] sm:$0xff]
      %v3734 = vld [vmem:[%s3340 + $0x3a] sm:$0xff]
      %v3735 = vld [vmem:[%s3340 + $0x4a] sm:$0xff]
      %v3736 = vld [vmem:[%s3340 + $0x52] sm:$0xff]
      %v3737 = vld [vmem:[%s3340 + $0x62] sm:$0xff]
      %v3738 = vld [vmem:[%s3340 + $0x6a] sm:$0xff]
      %v3739 = vld [vmem:[%s3340 + $0x7a] sm:$0xff]
      %v3740 = vld [vmem:[%s3340 + $0x82] sm:$0xff]
      %v3741 = vld [vmem:[%s3340 + $0x92] sm:$0xff]
      %v3742 = vld [vmem:[%s3340 + $0x9a] sm:$0xff]
      %v3743 = vld [vmem:[%s3340 + $0xaa] sm:$0xff]
      %v3744 = vld [vmem:[%s3340 + $0xb2] sm:$0xff]
      %v3745 = vld [vmem:[%s3340 + $0xc2] sm:$0xff]
      %v3746 = vld [vmem:[%s3340 + $0xca] sm:$0xff]
      %v3747 = vld [vmem:[%s3340 + $0xda] sm:$0xff]
      %v3748 = vld [vmem:[%s3340 + $0xe2] sm:$0xff]
      %v3749 = vld [vmem:[%s3340 + $0xf2] sm:$0xff]
      %v3750 = vld [vmem:[%s3340 + $0xfa] sm:$0xff]
      %v3751 = vld [vmem:[%s3340 + $0x10a] sm:$0xff]
      %v3752 = vld [vmem:[%s3340 + $0x112] sm:$0xff]
      %v3753 = vld [vmem:[%s3340 + $0x122] sm:$0xff]
      %v3754 = vld [vmem:[%s3340 + $0x12a] sm:$0xff]
      %v3755 = vld [vmem:[%s3340 + $0x13a] sm:$0xff]
      %v3756 = vld [vmem:[%s3340 + $0x142] sm:$0xff]
      %v3757 = vld [vmem:[%s3340 + $0x152] sm:$0xff]
      %v3758 = vld [vmem:[%s3340 + $0x15a] sm:$0xff]
      %v3759 = vld [vmem:[%s3340 + $0x16a] sm:$0xff]
      %v3760 = vld [vmem:[%s3340 + $0x172] sm:$0xff]
      %s3761 = scalar_lea.vmem %s4, 1024
      %v3762 = vld [vmem:[%s3761] sm:$0xff]
      %v3763 = vld [vmem:[%s3761 + $0x8] sm:$0xff]
      %v3764 = vld [vmem:[%s3761 + $0x10] sm:$0xff]
      %v3765 = vld [vmem:[%s3761 + $0x18] sm:$0xff]
      %v3766 = vld [vmem:[%s3761 + $0x20] sm:$0xff]
      %v3767 = vld [vmem:[%s3761 + $0x28] sm:$0xff]
      %v3768 = vld [vmem:[%s3761 + $0x30] sm:$0xff]
      %v3769 = vld [vmem:[%s3761 + $0x38] sm:$0xff]
      %v3770 = vld [vmem:[%s3761 + $0x40] sm:$0xff]
      %v3771 = vld [vmem:[%s3761 + $0x48] sm:$0xff]
      %v3772 = vld [vmem:[%s3761 + $0x50] sm:$0xff]
      %v3773 = vld [vmem:[%s3761 + $0x58] sm:$0xff]
      %v3774 = vld [vmem:[%s3761 + $0x60] sm:$0xff]
      %v3775 = vld [vmem:[%s3761 + $0x68] sm:$0xff]
      %v3776 = vld [vmem:[%s3761 + $0x70] sm:$0xff]
      %v3777 = vld [vmem:[%s3761 + $0x78] sm:$0xff]
      %3778 = vmatpush.msra.mxu0 %v3777
      %3779 = vmatpush.msra.mxu0 %v3776
      %3780 = vmatpush.msra.mxu0 %v3775
      %3781 = vmatpush.msra.mxu0 %v3774
      %3782 = vmatpush.msra.mxu0 %v3773
      %3783 = vmatpush.msra.mxu0 %v3772
      %3784 = vmatpush.msra.mxu0 %v3771
      %3785 = vmatpush.msra.mxu0 %v3770
      %3786 = vmatpush.msra.mxu0 %v3769
      %3787 = vmatpush.msra.mxu0 %v3768
      %3788 = vmatpush.msra.mxu0 %v3767
      %3789 = vmatpush.msra.mxu0 %v3766
      %3790 = vmatpush.msra.mxu0 %v3765
      %3791 = vmatpush.msra.mxu0 %v3764
      %3792 = vmatpush.msra.mxu0 %v3763
      %3793 = vmatpush.msra.mxu0 %v3762
      %3794 = vmatmul.f32.gmra.mxu0 %v3729
      %v3795 = vpop.f32.mrf.mxu0
      %v3796 = vadd.f32 0.0, %v3795
      %3797 = vmatmul.f32.gmra.mxu0 %v3730
      %v3798 = vpop.f32.mrf.mxu0
      %v3799 = vadd.f32 0.0, %v3798
      %3800 = vmatmul.f32.gmra.mxu0 %v3731
      %v3801 = vpop.f32.mrf.mxu0
      %v3802 = vadd.f32 0.0, %v3801
      %3803 = vmatmul.f32.gmra.mxu0 %v3732
      %v3804 = vpop.f32.mrf.mxu0
      %v3805 = vadd.f32 0.0, %v3804
      %3806 = vmatmul.f32.gmra.mxu0 %v3733
      %v3807 = vpop.f32.mrf.mxu0
      %v3808 = vadd.f32 0.0, %v3807
      %3809 = vmatmul.f32.gmra.mxu0 %v3734
      %v3810 = vpop.f32.mrf.mxu0
      %v3811 = vadd.f32 0.0, %v3810
      %3812 = vmatmul.f32.gmra.mxu0 %v3735
      %v3813 = vpop.f32.mrf.mxu0
      %v3814 = vadd.f32 0.0, %v3813
      %3815 = vmatmul.f32.gmra.mxu0 %v3736
      %v3816 = vpop.f32.mrf.mxu0
      %v3817 = vadd.f32 0.0, %v3816
      %3818 = vmatmul.f32.gmra.mxu0 %v3737
      %v3819 = vpop.f32.mrf.mxu0
      %v3820 = vadd.f32 0.0, %v3819
      %3821 = vmatmul.f32.gmra.mxu0 %v3738
      %v3822 = vpop.f32.mrf.mxu0
      %v3823 = vadd.f32 0.0, %v3822
      %3824 = vmatmul.f32.gmra.mxu0 %v3739
      %v3825 = vpop.f32.mrf.mxu0
      %v3826 = vadd.f32 0.0, %v3825
      %3827 = vmatmul.f32.gmra.mxu0 %v3740
      %v3828 = vpop.f32.mrf.mxu0
      %v3829 = vadd.f32 0.0, %v3828
      %3830 = vmatmul.f32.gmra.mxu0 %v3741
      %v3831 = vpop.f32.mrf.mxu0
      %v3832 = vadd.f32 0.0, %v3831
      %3833 = vmatmul.f32.gmra.mxu0 %v3742
      %v3834 = vpop.f32.mrf.mxu0
      %v3835 = vadd.f32 0.0, %v3834
      %3836 = vmatmul.f32.gmra.mxu0 %v3743
      %v3837 = vpop.f32.mrf.mxu0
      %v3838 = vadd.f32 0.0, %v3837
      %3839 = vmatmul.f32.gmra.mxu0 %v3744
      %v3840 = vpop.f32.mrf.mxu0
      %v3841 = vadd.f32 0.0, %v3840
      %3842 = vmatmul.f32.gmra.mxu0 %v3745
      %v3843 = vpop.f32.mrf.mxu0
      %v3844 = vadd.f32 0.0, %v3843
      %3845 = vmatmul.f32.gmra.mxu0 %v3746
      %v3846 = vpop.f32.mrf.mxu0
      %v3847 = vadd.f32 0.0, %v3846
      %3848 = vmatmul.f32.gmra.mxu0 %v3747
      %v3849 = vpop.f32.mrf.mxu0
      %v3850 = vadd.f32 0.0, %v3849
      %3851 = vmatmul.f32.gmra.mxu0 %v3748
      %v3852 = vpop.f32.mrf.mxu0
      %v3853 = vadd.f32 0.0, %v3852
      %3854 = vmatmul.f32.gmra.mxu0 %v3749
      %v3855 = vpop.f32.mrf.mxu0
      %v3856 = vadd.f32 0.0, %v3855
      %3857 = vmatmul.f32.gmra.mxu0 %v3750
      %v3858 = vpop.f32.mrf.mxu0
      %v3859 = vadd.f32 0.0, %v3858
      %3860 = vmatmul.f32.gmra.mxu0 %v3751
      %v3861 = vpop.f32.mrf.mxu0
      %v3862 = vadd.f32 0.0, %v3861
      %3863 = vmatmul.f32.gmra.mxu0 %v3752
      %v3864 = vpop.f32.mrf.mxu0
      %v3865 = vadd.f32 0.0, %v3864
      %3866 = vmatmul.f32.gmra.mxu0 %v3753
      %v3867 = vpop.f32.mrf.mxu0
      %v3868 = vadd.f32 0.0, %v3867
      %3869 = vmatmul.f32.gmra.mxu0 %v3754
      %v3870 = vpop.f32.mrf.mxu0
      %v3871 = vadd.f32 0.0, %v3870
      %3872 = vmatmul.f32.gmra.mxu0 %v3755
      %v3873 = vpop.f32.mrf.mxu0
      %v3874 = vadd.f32 0.0, %v3873
      %3875 = vmatmul.f32.gmra.mxu0 %v3756
      %v3876 = vpop.f32.mrf.mxu0
      %v3877 = vadd.f32 0.0, %v3876
      %3878 = vmatmul.f32.gmra.mxu0 %v3757
      %v3879 = vpop.f32.mrf.mxu0
      %v3880 = vadd.f32 0.0, %v3879
      %3881 = vmatmul.f32.gmra.mxu0 %v3758
      %v3882 = vpop.f32.mrf.mxu0
      %v3883 = vadd.f32 0.0, %v3882
      %3884 = vmatmul.f32.gmra.mxu0 %v3759
      %v3885 = vpop.f32.mrf.mxu0
      %v3886 = vadd.f32 0.0, %v3885
      %3887 = vmatmul.f32.gmra.mxu0 %v3760
      %v3888 = vpop.f32.mrf.mxu0
      %v3889 = vadd.f32 0.0, %v3888
      %3890 = vdwg.mxu0
      %v3891 = vadd.f32 %v3697, %v3796
      %v3892 = vadd.f32 %v3698, %v3799
      %v3893 = vadd.f32 %v3699, %v3802
      %v3894 = vadd.f32 %v3700, %v3805
      %v3895 = vadd.f32 %v3701, %v3808
      %v3896 = vadd.f32 %v3702, %v3811
      %v3897 = vadd.f32 %v3703, %v3814
      %v3898 = vadd.f32 %v3704, %v3817
      %v3899 = vadd.f32 %v3705, %v3820
      %v3900 = vadd.f32 %v3706, %v3823
      %v3901 = vadd.f32 %v3707, %v3826
      %v3902 = vadd.f32 %v3708, %v3829
      %v3903 = vadd.f32 %v3709, %v3832
      %v3904 = vadd.f32 %v3710, %v3835
      %v3905 = vadd.f32 %v3711, %v3838
      %v3906 = vadd.f32 %v3712, %v3841
      %v3907 = vadd.f32 %v3713, %v3844
      %v3908 = vadd.f32 %v3714, %v3847
      %v3909 = vadd.f32 %v3715, %v3850
      %v3910 = vadd.f32 %v3716, %v3853
      %v3911 = vadd.f32 %v3717, %v3856
      %v3912 = vadd.f32 %v3718, %v3859
      %v3913 = vadd.f32 %v3719, %v3862
      %v3914 = vadd.f32 %v3720, %v3865
      %v3915 = vadd.f32 %v3721, %v3868
      %v3916 = vadd.f32 %v3722, %v3871
      %v3917 = vadd.f32 %v3723, %v3874
      %v3918 = vadd.f32 %v3724, %v3877
      %v3919 = vadd.f32 %v3725, %v3880
      %v3920 = vadd.f32 %v3726, %v3883
      %v3921 = vadd.f32 %v3727, %v3886
      %v3922 = vadd.f32 %v3728, %v3889
      %v3923 = vld [vmem:[%s5] sm:$0x1]
      %v3925 = vperm.slane %v3923, 0
      %v3927 = vmul.f32 %v3891, %v3925
      %v3928 = vmul.f32 %v3892, %v3925
      %v3929 = vmul.f32 %v3893, %v3925
      %v3930 = vmul.f32 %v3894, %v3925
      %v3931 = vmul.f32 %v3895, %v3925
      %v3932 = vmul.f32 %v3896, %v3925
      %v3933 = vmul.f32 %v3897, %v3925
      %v3934 = vmul.f32 %v3898, %v3925
      %v3935 = vmul.f32 %v3899, %v3925
      %v3936 = vmul.f32 %v3900, %v3925
      %v3937 = vmul.f32 %v3901, %v3925
      %v3938 = vmul.f32 %v3902, %v3925
      %v3939 = vmul.f32 %v3903, %v3925
      %v3940 = vmul.f32 %v3904, %v3925
      %v3941 = vmul.f32 %v3905, %v3925
      %v3942 = vmul.f32 %v3906, %v3925
      %v3943 = vmul.f32 %v3907, %v3925
      %v3944 = vmul.f32 %v3908, %v3925
      %v3945 = vmul.f32 %v3909, %v3925
      %v3946 = vmul.f32 %v3910, %v3925
      %v3947 = vmul.f32 %v3911, %v3925
      %v3948 = vmul.f32 %v3912, %v3925
      %v3949 = vmul.f32 %v3913, %v3925
      %v3950 = vmul.f32 %v3914, %v3925
      %v3951 = vmul.f32 %v3915, %v3925
      %v3952 = vmul.f32 %v3916, %v3925
      %v3953 = vmul.f32 %v3917, %v3925
      %v3954 = vmul.f32 %v3918, %v3925
      %v3955 = vmul.f32 %v3919, %v3925
      %v3956 = vmul.f32 %v3920, %v3925
      %v3957 = vmul.f32 %v3921, %v3925
      %v3958 = vmul.f32 %v3922, %v3925
      %v3959 = vld [vmem:[%s6] sm:$0x1]
      %v3961 = vperm.slane %v3959, 0
      %v3963 = vadd.f32 %v3927, %v3961
      %v3964 = vadd.f32 %v3928, %v3961
      %v3965 = vadd.f32 %v3929, %v3961
      %v3966 = vadd.f32 %v3930, %v3961
      %v3967 = vadd.f32 %v3931, %v3961
      %v3968 = vadd.f32 %v3932, %v3961
      %v3969 = vadd.f32 %v3933, %v3961
      %v3970 = vadd.f32 %v3934, %v3961
      %v3971 = vadd.f32 %v3935, %v3961
      %v3972 = vadd.f32 %v3936, %v3961
      %v3973 = vadd.f32 %v3937, %v3961
      %v3974 = vadd.f32 %v3938, %v3961
      %v3975 = vadd.f32 %v3939, %v3961
      %v3976 = vadd.f32 %v3940, %v3961
      %v3977 = vadd.f32 %v3941, %v3961
      %v3978 = vadd.f32 %v3942, %v3961
      %v3979 = vadd.f32 %v3943, %v3961
      %v3980 = vadd.f32 %v3944, %v3961
      %v3981 = vadd.f32 %v3945, %v3961
      %v3982 = vadd.f32 %v3946, %v3961
      %v3983 = vadd.f32 %v3947, %v3961
      %v3984 = vadd.f32 %v3948, %v3961
      %v3985 = vadd.f32 %v3949, %v3961
      %v3986 = vadd.f32 %v3950, %v3961
      %v3987 = vadd.f32 %v3951, %v3961
      %v3988 = vadd.f32 %v3952, %v3961
      %v3989 = vadd.f32 %v3953, %v3961
      %v3990 = vadd.f32 %v3954, %v3961
      %v3991 = vadd.f32 %v3955, %v3961
      %v3992 = vadd.f32 %v3956, %v3961
      %v3993 = vadd.f32 %v3957, %v3961
      %v3994 = vadd.f32 %v3958, %v3961
      %v3995 = vld [vmem:[%s286 + $0x1] sm:$0xff]
      %v3996 = vld [vmem:[%s286 + $0x9] sm:$0xff]
      %v3997 = vld [vmem:[%s286 + $0x19] sm:$0xff]
      %v3998 = vld [vmem:[%s286 + $0x21] sm:$0xff]
      %v3999 = vld [vmem:[%s286 + $0x31] sm:$0xff]
      %v4000 = vld [vmem:[%s286 + $0x39] sm:$0xff]
      %v4001 = vld [vmem:[%s286 + $0x49] sm:$0xff]
      %v4002 = vld [vmem:[%s286 + $0x51] sm:$0xff]
      %v4003 = vld [vmem:[%s286 + $0x61] sm:$0xff]
      %v4004 = vld [vmem:[%s286 + $0x69] sm:$0xff]
      %v4005 = vld [vmem:[%s286 + $0x79] sm:$0xff]
      %v4006 = vld [vmem:[%s286 + $0x81] sm:$0xff]
      %v4007 = vld [vmem:[%s286 + $0x91] sm:$0xff]
      %v4008 = vld [vmem:[%s286 + $0x99] sm:$0xff]
      %v4009 = vld [vmem:[%s286 + $0xa9] sm:$0xff]
      %v4010 = vld [vmem:[%s286 + $0xb1] sm:$0xff]
      %v4011 = vld [vmem:[%s286 + $0xc1] sm:$0xff]
      %v4012 = vld [vmem:[%s286 + $0xc9] sm:$0xff]
      %v4013 = vld [vmem:[%s286 + $0xd9] sm:$0xff]
      %v4014 = vld [vmem:[%s286 + $0xe1] sm:$0xff]
      %v4015 = vld [vmem:[%s286 + $0xf1] sm:$0xff]
      %v4016 = vld [vmem:[%s286 + $0xf9] sm:$0xff]
      %v4017 = vld [vmem:[%s286 + $0x109] sm:$0xff]
      %v4018 = vld [vmem:[%s286 + $0x111] sm:$0xff]
      %v4019 = vld [vmem:[%s286 + $0x121] sm:$0xff]
      %v4020 = vld [vmem:[%s286 + $0x129] sm:$0xff]
      %v4021 = vld [vmem:[%s286 + $0x139] sm:$0xff]
      %v4022 = vld [vmem:[%s286 + $0x141] sm:$0xff]
      %v4023 = vld [vmem:[%s286 + $0x151] sm:$0xff]
      %v4024 = vld [vmem:[%s286 + $0x159] sm:$0xff]
      %v4025 = vld [vmem:[%s286 + $0x169] sm:$0xff]
      %v4026 = vld [vmem:[%s286 + $0x171] sm:$0xff]
      %v4027 = vadd.f32 %v3963, %v3995
      %v4028 = vadd.f32 %v3964, %v3996
      %v4029 = vadd.f32 %v3965, %v3997
      %v4030 = vadd.f32 %v3966, %v3998
      %v4031 = vadd.f32 %v3967, %v3999
      %v4032 = vadd.f32 %v3968, %v4000
      %v4033 = vadd.f32 %v3969, %v4001
      %v4034 = vadd.f32 %v3970, %v4002
      %v4035 = vadd.f32 %v3971, %v4003
      %v4036 = vadd.f32 %v3972, %v4004
      %v4037 = vadd.f32 %v3973, %v4005
      %v4038 = vadd.f32 %v3974, %v4006
      %v4039 = vadd.f32 %v3975, %v4007
      %v4040 = vadd.f32 %v3976, %v4008
      %v4041 = vadd.f32 %v3977, %v4009
      %v4042 = vadd.f32 %v3978, %v4010
      %v4043 = vadd.f32 %v3979, %v4011
      %v4044 = vadd.f32 %v3980, %v4012
      %v4045 = vadd.f32 %v3981, %v4013
      %v4046 = vadd.f32 %v3982, %v4014
      %v4047 = vadd.f32 %v3983, %v4015
      %v4048 = vadd.f32 %v3984, %v4016
      %v4049 = vadd.f32 %v3985, %v4017
      %v4050 = vadd.f32 %v3986, %v4018
      %v4051 = vadd.f32 %v3987, %v4019
      %v4052 = vadd.f32 %v3988, %v4020
      %v4053 = vadd.f32 %v3989, %v4021
      %v4054 = vadd.f32 %v3990, %v4022
      %v4055 = vadd.f32 %v3991, %v4023
      %v4056 = vadd.f32 %v3992, %v4024
      %v4057 = vadd.f32 %v3993, %v4025
      %v4058 = vadd.f32 %v3994, %v4026
      %v4059 = vmax.f32 %v4027, 0.0
      %v4060 = vmax.f32 %v4028, 0.0
      %v4061 = vmax.f32 %v4029, 0.0
      %v4062 = vmax.f32 %v4030, 0.0
      %v4063 = vmax.f32 %v4031, 0.0
      %v4064 = vmax.f32 %v4032, 0.0
      %v4065 = vmax.f32 %v4033, 0.0
      %v4066 = vmax.f32 %v4034, 0.0
      %v4067 = vmax.f32 %v4035, 0.0
      %v4068 = vmax.f32 %v4036, 0.0
      %v4069 = vmax.f32 %v4037, 0.0
      %v4070 = vmax.f32 %v4038, 0.0
      %v4071 = vmax.f32 %v4039, 0.0
      %v4072 = vmax.f32 %v4040, 0.0
      %v4073 = vmax.f32 %v4041, 0.0
      %v4074 = vmax.f32 %v4042, 0.0
      %v4075 = vmax.f32 %v4043, 0.0
      %v4076 = vmax.f32 %v4044, 0.0
      %v4077 = vmax.f32 %v4045, 0.0
      %v4078 = vmax.f32 %v4046, 0.0
      %v4079 = vmax.f32 %v4047, 0.0
      %v4080 = vmax.f32 %v4048, 0.0
      %v4081 = vmax.f32 %v4049, 0.0
      %v4082 = vmax.f32 %v4050, 0.0
      %v4083 = vmax.f32 %v4051, 0.0
      %v4084 = vmax.f32 %v4052, 0.0
      %v4085 = vmax.f32 %v4053, 0.0
      %v4086 = vmax.f32 %v4054, 0.0
      %v4087 = vmax.f32 %v4055, 0.0
      %v4088 = vmax.f32 %v4056, 0.0
      %v4089 = vmax.f32 %v4057, 0.0
      %v4090 = vmax.f32 %v4058, 0.0
      %4091 = vst [vmem:[%s278] sm:$0xff] %v4059
      %4092 = vst [vmem:[%s278 + $0x8] sm:$0xff] %v4060
      %4093 = vst [vmem:[%s278 + $0x10] sm:$0xff] %v4061
      %4094 = vst [vmem:[%s278 + $0x18] sm:$0xff] %v4062
      %4095 = vst [vmem:[%s278 + $0x20] sm:$0xff] %v4063
      %4096 = vst [vmem:[%s278 + $0x28] sm:$0xff] %v4064
      %4097 = vst [vmem:[%s278 + $0x30] sm:$0xff] %v4065
      %4098 = vst [vmem:[%s278 + $0x38] sm:$0xff] %v4066
      %4099 = vst [vmem:[%s278 + $0x40] sm:$0xff] %v4067
      %4100 = vst [vmem:[%s278 + $0x48] sm:$0xff] %v4068
      %4101 = vst [vmem:[%s278 + $0x50] sm:$0xff] %v4069
      %4102 = vst [vmem:[%s278 + $0x58] sm:$0xff] %v4070
      %4103 = vst [vmem:[%s278 + $0x60] sm:$0xff] %v4071
      %4104 = vst [vmem:[%s278 + $0x68] sm:$0xff] %v4072
      %4105 = vst [vmem:[%s278 + $0x70] sm:$0xff] %v4073
      %4106 = vst [vmem:[%s278 + $0x78] sm:$0xff] %v4074
      %4107 = vst [vmem:[%s278 + $0x80] sm:$0xff] %v4075
      %4108 = vst [vmem:[%s278 + $0x88] sm:$0xff] %v4076
      %4109 = vst [vmem:[%s278 + $0x90] sm:$0xff] %v4077
      %4110 = vst [vmem:[%s278 + $0x98] sm:$0xff] %v4078
      %4111 = vst [vmem:[%s278 + $0xa0] sm:$0xff] %v4079
      %4112 = vst [vmem:[%s278 + $0xa8] sm:$0xff] %v4080
      %4113 = vst [vmem:[%s278 + $0xb0] sm:$0xff] %v4081
      %4114 = vst [vmem:[%s278 + $0xb8] sm:$0xff] %v4082
      %4115 = vst [vmem:[%s278 + $0xc0] sm:$0xff] %v4083
      %4116 = vst [vmem:[%s278 + $0xc8] sm:$0xff] %v4084
      %4117 = vst [vmem:[%s278 + $0xd0] sm:$0xff] %v4085
      %4118 = vst [vmem:[%s278 + $0xd8] sm:$0xff] %v4086
      %4119 = vst [vmem:[%s278 + $0xe0] sm:$0xff] %v4087
      %4120 = vst [vmem:[%s278 + $0xe8] sm:$0xff] %v4088
      %4121 = vst [vmem:[%s278 + $0xf0] sm:$0xff] %v4089
      %4122 = vst [vmem:[%s278 + $0xf8] sm:$0xff] %v4090
      %p4123 = scmp.lt.s32.totalorder %s18, 1
      %s4124 = scalar_select %p4123, %s18, 1
      %s4125 = smul.addr %s4124, 32
      %s4126 = smul.addr %s4125, 8
      %s4127 = scalar_lea.vmem %s7, %s4126
      // Predicated region
      $region49: #{basic_block_forward.1} parent=47 // pred_check
        %p4128 = pneg %p188
      $region50: #{basic_block_forward.1} parent=47 // pred_check_branch
        %4130 = sbr.rel (%p4128) target = $region52
      $region51: #{basic_block_forward.1} parent=47 // pred_region
        _
      $region52: #{basic_block_forward.1} parent=47 // pred_fallthru
        _
    $region48: #{basic_block_forward.1} parent=5 // pred_fallthru
      _
    %p4131 = scmp.le.s32.totalorder 2, %s13
    // Predicated region
    $region53: #{basic_block_forward.1} parent=5 // pred_check
      %p4132 = pneg %p4131
    $region54: #{basic_block_forward.1} parent=5 // pred_check_branch
      %4134 = sbr.rel (%p4132) target = $region56
    $region55: #{basic_block_forward.1} parent=5 // pred_region
      %s4135 = ssub.s32 %s13, 2
      // Predicated region
      $region57: #{basic_block_forward.1} parent=55 // pred_check
        %p4136 = pneg %p194
      $region58: #{basic_block_forward.1} parent=55 // pred_check_branch
        %4138 = sbr.rel (%p4136) target = $region60
      $region59: #{basic_block_forward.1} parent=55 // pred_region
        %p4139 = scmp.lt.s32.totalorder %s19, 1
        %s4140 = scalar_select %p4139, %s19, 1
        %s4141 = smul.addr %s4140, 32
        %s4142 = smul.addr %s4141, 8
        %s4143 = scalar_lea.vmem %s7, %s4142
      $region60: #{basic_block_forward.1} parent=55 // pred_fallthru
        _
    $region56: #{basic_block_forward.1} parent=5 // pred_fallthru
      _
  $region6: #{basic_block_forward.1} parent=0 // loop_footer
    %s17 = sadd.s32 1, %s13
  $region7: #{basic_block_forward.1} parent=0 // loop_footer_branch
    %12 = sbr.rel target = $region3
  $region8: #{basic_block_forward.1} parent=0 // loop_exit
    _

</llo_original>
